<compile_context>
chip_gen: v7x
topology: tpu7x:2x2x1
jax: 0.10.0
libtpu: 0.0.40
codegen_flags: <defaults>
</compile_context>

<pallas_src>
import functools

import jax
import jax.numpy as jnp
from jax.experimental import pallas as pl
from jax.experimental.pallas import tpu as pltpu

_LANE = 128
_GATE_PERM = (0, 1, 3, 2)   # packed block p holds PyTorch gate _GATE_PERM[p]


def _round_up(n, m):
    return ((n + m - 1) // m) * m


def _lstm_kernel(x_ref, wih0_ref, whh0_ref, b0_ref, wih1_ref, whh1_ref,
                 b1_ref, wlin_ref, blin_ref, out_ref, xp_scr, h1_scr):
    """Whole-sequence 2-layer LSTM + Linear head, one kernel invocation."""
    seq_len = x_ref.shape[0]
    hp = whh0_ref.shape[0]            # lane-padded hidden size (multiple of 128)

    # Hoist weight reads; cast recurrent-matmul RHS to bf16 once.
    whh0 = whh0_ref[...].astype(jnp.bfloat16)   # (HP, 4*HP)
    wih1 = wih1_ref[...].astype(jnp.bfloat16)   # (HP, 4*HP)
    whh1 = whh1_ref[...].astype(jnp.bfloat16)   # (HP, 4*HP)
    b1 = b1_ref[...]                            # (1, 4*HP) f32

    # Hoisted layer-0 input projection for ALL timesteps (off critical path,
    # kept f32; biases b_ih_l0 + b_hh_l0 already folded into b0).
    xp_scr[...] = jnp.dot(x_ref[...], wih0_ref[...],
                          preferred_element_type=jnp.float32) + b0_ref[...]

    def gate_act(gates):
        # Packed gate order [i, f, o, g]: one wide sigmoid + one tanh per cell.
        sig = jax.nn.sigmoid(gates[:, 0:3 * hp])
        i = sig[:, 0 * hp:1 * hp]
        f = sig[:, 1 * hp:2 * hp]
        o = sig[:, 2 * hp:3 * hp]
        g = jnp.tanh(gates[:, 3 * hp:4 * hp])
        return i, f, o, g

    zeros = jnp.zeros((1, hp), jnp.float32)   # zero-init h/c (matches module)
    h0, c0, h1, c1 = zeros, zeros, zeros, zeros

    # seq_len is small & static: full unroll gives the scheduler cross-step
    # visibility; only the h-dependent matmuls sit on the serial path.
    for t in range(seq_len):
        # ---- layer-1 recurrent half: depends only on h1(t-1); issued early
        #      so it hides under layer-0's EUP/VPU work for this step. ----
        pre1 = jnp.dot(h1.astype(jnp.bfloat16), whh1,
                       preferred_element_type=jnp.float32) + b1

        # ---- layer 0: only h0 @ W_hh_l0 remains in the recurrence ----
        g0 = xp_scr[t:t + 1, :] + jnp.dot(h0.astype(jnp.bfloat16), whh0,
                                          preferred_element_type=jnp.float32)
        i, f, o, g = gate_act(g0)
        c0 = f * c0 + i * g
        h0 = o * jnp.tanh(c0)

        # ---- layer 1: only h0(t) @ W_ih_l1 on the serial path ----
        g1 = pre1 + jnp.dot(h0.astype(jnp.bfloat16), wih1,
                            preferred_element_type=jnp.float32)
        i, f, o, g = gate_act(g1)
        c1 = f * c1 + i * g
        h1 = o * jnp.tanh(c1)
        h1_scr[t:t + 1, :] = h1           # row store, vst slot, off chain

    # Hoisted Linear head: one (S, HP) @ (HP, out_pad) matmul (f32, off the
    # critical path) + one unmasked dense store (out lane-padded to 128).
    y = jnp.dot(h1_scr[...], wlin_ref[...],
                preferred_element_type=jnp.float32) + blin_ref[...]
    out_ref[...] = y.astype(out_ref.dtype)


def lstm_forward(x, packed):
    """x: (seq_len, 1, in_size) f32 -> (seq_len, 1, out_size) f32."""
    seq_len, batch, in_size = x.shape
    assert batch == 1, "module fixes batch=1 via its zero-initialized hiddens"
    out_size = packed["out_size"]
    out_pad = packed["wlin_p"].shape[1]
    hp = packed["whh0_p"].shape[0]
    x2d = x.reshape(seq_len, in_size)

    vmem = functools.partial(pl.BlockSpec, memory_space=pltpu.MemorySpace.VMEM)
    y = pl.pallas_call(
        _lstm_kernel,
        out_shape=jax.ShapeDtypeStruct((seq_len, out_pad), jnp.float32),
        in_specs=[vmem() for _ in range(9)],
        out_specs=vmem(),
        scratch_shapes=[pltpu.VMEM((seq_len, 4 * hp), jnp.float32),  # xp slab
                        pltpu.VMEM((seq_len, hp), jnp.float32)],     # h1 slab
    )(x2d, packed["wih0_p"], packed["whh0_p"], packed["b0_p"],
      packed["wih1_p"], packed["whh1_p"], packed["b1_p"],
      packed["wlin_p"], packed["blin_p"])
    return y[:, :out_size].reshape(seq_len, 1, out_size)


# ------------------------- parameter construction -------------------------

def init_raw_params(key, in_size, hidden_size, out_size):
    """Deterministic synthetic params in PyTorch nn.LSTM / nn.Linear layout."""
    H = hidden_size
    ks = jax.random.split(key, 10)
    bound = 1.0 / (H ** 0.5)

    def u(k, shape):
        return jax.random.uniform(k, shape, jnp.float32, -bound, bound)

    return dict(
        w_ih_l0=u(ks[0], (4 * H, in_size)), w_hh_l0=u(ks[1], (4 * H, H)),
        b_ih_l0=u(ks[2], (4 * H,)), b_hh_l0=u(ks[3], (4 * H,)),
        w_ih_l1=u(ks[4], (4 * H, H)), w_hh_l1=u(ks[5], (4 * H, H)),
        b_ih_l1=u(ks[6], (4 * H,)), b_hh_l1=u(ks[7], (4 * H,)),
        w_lin=u(ks[8], (out_size, H)), b_lin=u(ks[9], (out_size,)),
    )


def pack_params(raw):
    """Transpose, gate-reorder to [i,f,o,g], lane-pad H -> HP=round_up(H,128)."""
    H = raw["w_hh_l0"].shape[1]
    HP = _round_up(H, _LANE)
    out_size = raw["w_lin"].shape[0]
    out_pad = _round_up(out_size, _LANE)

    def gate_pad_cols(w_t):      # (K, 4H) -> (K, 4HP), reordered [i,f,o,g]
        K = w_t.shape[0]
        out = jnp.zeros((K, 4 * HP), jnp.float32)
        for p, g in enumerate(_GATE_PERM):
            out = out.at[:, p * HP:p * HP + H].set(w_t[:, g * H:(g + 1) * H])
        return out

    def row_pad(w, rows):        # (r, N) -> (rows, N), zero-padded rows
        return jnp.zeros((rows, w.shape[1]), jnp.float32).at[:w.shape[0]].set(w)

    def col_pad(w, cols):        # (R, c) -> (R, cols), zero-padded lanes
        return jnp.zeros((w.shape[0], cols), jnp.float32).at[:, :w.shape[1]].set(w)

    wih0_p = gate_pad_cols(raw["w_ih_l0"].T)                          # (in, 4HP)
    whh0_p = row_pad(gate_pad_cols(raw["w_hh_l0"].T), HP)             # (HP, 4HP)
    b0_p = gate_pad_cols((raw["b_ih_l0"] + raw["b_hh_l0"])[None, :])  # (1, 4HP)

    wih1_p = row_pad(gate_pad_cols(raw["w_ih_l1"].T), HP)             # (HP, 4HP)
    whh1_p = row_pad(gate_pad_cols(raw["w_hh_l1"].T), HP)             # (HP, 4HP)
    b1_p = gate_pad_cols((raw["b_ih_l1"] + raw["b_hh_l1"])[None, :])  # (1, 4HP)

    wlin_p = col_pad(row_pad(raw["w_lin"].T, HP), out_pad)            # (HP, OP)
    blin_p = col_pad(raw["b_lin"][None, :], out_pad)                  # (1, OP)

    return dict(wih0_p=wih0_p, whh0_p=whh0_p, b0_p=b0_p,
                wih1_p=wih1_p, whh1_p=whh1_p, b1_p=b1_p,
                wlin_p=wlin_p, blin_p=blin_p, out_size=out_size)


# ------------------------------ reference ---------------------------------

def lstm_forward_ref(x, raw):
    """Pure-JAX f32 reference using the raw PyTorch-layout weights (lax.scan)."""
    H = raw["w_hh_l0"].shape[1]

    def cell(x_in, h, c, w_ih, w_hh, b_ih, b_hh):
        gates = x_in @ w_ih.T + h @ w_hh.T + b_ih + b_hh
        i = jax.nn.sigmoid(gates[:, 0:H])
        f = jax.nn.sigmoid(gates[:, H:2 * H])
        g = jnp.tanh(gates[:, 2 * H:3 * H])
        o = jax.nn.sigmoid(gates[:, 3 * H:4 * H])
        c_new = f * c + i * g
        h_new = o * jnp.tanh(c_new)
        return h_new, c_new

    def step(carry, x_t):
        h0, c0, h1, c1 = carry
        h0, c0 = cell(x_t, h0, c0, raw["w_ih_l0"], raw["w_hh_l0"],
                      raw["b_ih_l0"], raw["b_hh_l0"])
        h1, c1 = cell(h0, h1, c1, raw["w_ih_l1"], raw["w_hh_l1"],
                      raw["b_ih_l1"], raw["b_hh_l1"])
        y = h1 @ raw["w_lin"].T + raw["b_lin"]
        return (h0, c0, h1, c1), y

    z = jnp.zeros((1, H), jnp.float32)
    _, ys = jax.lax.scan(step, (z, z, z, z), x)
    return ys


if __name__ == "__main__":
    seq_len, in_size, hidden_size, out_size = 8, 16, 32, 8

    key = jax.random.PRNGKey(0)
    k_x, k_p = jax.random.split(key)
    x = jax.random.normal(k_x, (seq_len, 1, in_size), jnp.float32)
    raw = init_raw_params(k_p, in_size, hidden_size, out_size)
    packed = pack_params(raw)

    out = jax.block_until_ready(lstm_forward(x, packed))
    ref = jax.block_until_ready(lstm_forward_ref(x, raw))

    assert out.shape == (seq_len, 1, out_size)
    # bf16 MXU operands on the recurrent chain -> loosened tolerance vs f32 ref.
    assert jnp.allclose(out, ref, atol=1e-2, rtol=1e-2), \
        "mismatch vs JAX reference"

    print("KERNEL_OK")
</pallas_src>

<mosaic_0001>
module attributes {stable_mosaic.version = 11 : i64} {
  func.func @_lstm_kernel(%arg0: memref<8x16xf32, #tpu.memory_space<vmem>>, %arg1: memref<16x512xf32, #tpu.memory_space<vmem>>, %arg2: memref<128x512xf32, #tpu.memory_space<vmem>>, %arg3: memref<1x512xf32, #tpu.memory_space<vmem>>, %arg4: memref<128x512xf32, #tpu.memory_space<vmem>>, %arg5: memref<128x512xf32, #tpu.memory_space<vmem>>, %arg6: memref<1x512xf32, #tpu.memory_space<vmem>>, %arg7: memref<128x128xf32, #tpu.memory_space<vmem>>, %arg8: memref<1x128xf32, #tpu.memory_space<vmem>>, %arg9: memref<8x128xf32, #tpu.memory_space<vmem>>, %arg10: memref<8x512xf32, #tpu.memory_space<vmem>>, %arg11: memref<8x128xf32, #tpu.memory_space<vmem>>) attributes {dimension_semantics = [], scalar_prefetch = 0 : i64, scratch_operands = 2 : i64, tpu.core_type = #tpu.core_type<tc>} {
    %c0 = arith.constant 0 : index
    %c0_0 = arith.constant 0 : index
    %0 = vector.load %arg2[%c0, %c0_0] : memref<128x512xf32, #tpu.memory_space<vmem>>, vector<128x512xf32>
    %1 = arith.truncf %0 : vector<128x512xf32> to vector<128x512xbf16>
    %c0_1 = arith.constant 0 : index
    %c0_2 = arith.constant 0 : index
    %2 = vector.load %arg4[%c0_1, %c0_2] : memref<128x512xf32, #tpu.memory_space<vmem>>, vector<128x512xf32>
    %3 = arith.truncf %2 : vector<128x512xf32> to vector<128x512xbf16>
    %c0_3 = arith.constant 0 : index
    %c0_4 = arith.constant 0 : index
    %4 = vector.load %arg5[%c0_3, %c0_4] : memref<128x512xf32, #tpu.memory_space<vmem>>, vector<128x512xf32>
    %5 = arith.truncf %4 : vector<128x512xf32> to vector<128x512xbf16>
    %c0_5 = arith.constant 0 : index
    %c0_6 = arith.constant 0 : index
    %6 = vector.load %arg6[%c0_5, %c0_6] : memref<1x512xf32, #tpu.memory_space<vmem>>, vector<1x512xf32>
    %c0_7 = arith.constant 0 : index
    %c0_8 = arith.constant 0 : index
    %7 = vector.load %arg0[%c0_7, %c0_8] : memref<8x16xf32, #tpu.memory_space<vmem>>, vector<8x16xf32>
    %c0_9 = arith.constant 0 : index
    %c0_10 = arith.constant 0 : index
    %8 = vector.load %arg1[%c0_9, %c0_10] : memref<16x512xf32, #tpu.memory_space<vmem>>, vector<16x512xf32>
    %cst = arith.constant dense<0.000000e+00> : vector<8x512xf32>
    %9 = tpu.matmul %7, %8, %cst {dimension_numbers = #tpu.dot_dimension_numbers<[1], [0], [0], [1], [0, 0, 1, 1], [], []>} : vector<8x16xf32>, vector<16x512xf32>, vector<8x512xf32> -> vector<8x512xf32>
    %c0_11 = arith.constant 0 : index
    %c0_12 = arith.constant 0 : index
    %10 = vector.load %arg3[%c0_11, %c0_12] : memref<1x512xf32, #tpu.memory_space<vmem>>, vector<1x512xf32>
    %11 = vector.broadcast %10 : vector<1x512xf32> to vector<8x512xf32>
    %12 = arith.addf %9, %11 : vector<8x512xf32>
    %c0_13 = arith.constant 0 : index
    %c0_14 = arith.constant 0 : index
    %13 = vector.load %arg10[%c0_13, %c0_14] : memref<8x512xf32, #tpu.memory_space<vmem>>, vector<8x512xf32>
    tpu.vector_store %arg10[%c0_13, %c0_14], %12 {strides = array<i32>} : memref<8x512xf32, #tpu.memory_space<vmem>>, vector<8x512xf32>,
    %cst_15 = arith.constant 0.000000e+00 : f32
    %14 = vector.broadcast %cst_15 : f32 to vector<1x128xf32>
    %15 = arith.truncf %14 : vector<1x128xf32> to vector<1x128xbf16>
    %cst_16 = arith.constant dense<0.000000e+00> : vector<1x512xf32>
    %16 = tpu.matmul %15, %5, %cst_16 {dimension_numbers = #tpu.dot_dimension_numbers<[1], [0], [0], [1], [0, 0, 1, 1], [], []>} : vector<1x128xbf16>, vector<128x512xbf16>, vector<1x512xf32> -> vector<1x512xf32>
    %17 = arith.addf %16, %6 : vector<1x512xf32>
    %c0_17 = arith.constant 0 : index
    %c0_18 = arith.constant 0 : index
    %18 = vector.load %arg10[%c0_17, %c0_18] : memref<8x512xf32, #tpu.memory_space<vmem>>, vector<1x512xf32>
    %19 = arith.truncf %14 : vector<1x128xf32> to vector<1x128xbf16>
    %cst_19 = arith.constant dense<0.000000e+00> : vector<1x512xf32>
    %20 = tpu.matmul %19, %1, %cst_19 {dimension_numbers = #tpu.dot_dimension_numbers<[1], [0], [0], [1], [0, 0, 1, 1], [], []>} : vector<1x128xbf16>, vector<128x512xbf16>, vector<1x512xf32> -> vector<1x512xf32>
    %21 = arith.addf %18, %20 : vector<1x512xf32>
    %22 = vector.extract_strided_slice %21 {offsets = [0, 0], sizes = [1, 384], strides = [1, 1]} : vector<1x512xf32> to vector<1x384xf32>
    %23 = arith.negf %22 : vector<1x384xf32>
    %24 = math.exp %23 : vector<1x384xf32>
    %cst_20 = arith.constant 1.000000e+00 : f32
    %25 = vector.broadcast %cst_20 : f32 to vector<1x384xf32>
    %26 = arith.addf %25, %24 : vector<1x384xf32>
    %27 = arith.divf %25, %26 : vector<1x384xf32>
    %28 = vector.extract_strided_slice %27 {offsets = [0, 0], sizes = [1, 128], strides = [1, 1]} : vector<1x384xf32> to vector<1x128xf32>
    %29 = vector.extract_strided_slice %27 {offsets = [0, 128], sizes = [1, 128], strides = [1, 1]} : vector<1x384xf32> to vector<1x128xf32>
    %30 = vector.extract_strided_slice %27 {offsets = [0, 256], sizes = [1, 128], strides = [1, 1]} : vector<1x384xf32> to vector<1x128xf32>
    %31 = vector.extract_strided_slice %21 {offsets = [0, 384], sizes = [1, 128], strides = [1, 1]} : vector<1x512xf32> to vector<1x128xf32>
    %32 = math.tanh %31 : vector<1x128xf32>
    %33 = arith.mulf %29, %14 : vector<1x128xf32>
    %34 = arith.mulf %28, %32 : vector<1x128xf32>
    %35 = arith.addf %33, %34 : vector<1x128xf32>
    %36 = math.tanh %35 : vector<1x128xf32>
    %37 = arith.mulf %30, %36 : vector<1x128xf32>
    %38 = arith.truncf %37 : vector<1x128xf32> to vector<1x128xbf16>
    %cst_21 = arith.constant dense<0.000000e+00> : vector<1x512xf32>
    %39 = tpu.matmul %38, %3, %cst_21 {dimension_numbers = #tpu.dot_dimension_numbers<[1], [0], [0], [1], [0, 0, 1, 1], [], []>} : vector<1x128xbf16>, vector<128x512xbf16>, vector<1x512xf32> -> vector<1x512xf32>
    %40 = arith.addf %17, %39 : vector<1x512xf32>
    %41 = vector.extract_strided_slice %40 {offsets = [0, 0], sizes = [1, 384], strides = [1, 1]} : vector<1x512xf32> to vector<1x384xf32>
    %42 = arith.negf %41 : vector<1x384xf32>
    %43 = math.exp %42 : vector<1x384xf32>
    %cst_22 = arith.constant 1.000000e+00 : f32
    %44 = vector.broadcast %cst_22 : f32 to vector<1x384xf32>
    %45 = arith.addf %44, %43 : vector<1x384xf32>
    %46 = arith.divf %44, %45 : vector<1x384xf32>
    %47 = vector.extract_strided_slice %46 {offsets = [0, 0], sizes = [1, 128], strides = [1, 1]} : vector<1x384xf32> to vector<1x128xf32>
    %48 = vector.extract_strided_slice %46 {offsets = [0, 128], sizes = [1, 128], strides = [1, 1]} : vector<1x384xf32> to vector<1x128xf32>
    %49 = vector.extract_strided_slice %46 {offsets = [0, 256], sizes = [1, 128], strides = [1, 1]} : vector<1x384xf32> to vector<1x128xf32>
    %50 = vector.extract_strided_slice %40 {offsets = [0, 384], sizes = [1, 128], strides = [1, 1]} : vector<1x512xf32> to vector<1x128xf32>
    %51 = math.tanh %50 : vector<1x128xf32>
    %52 = arith.mulf %48, %14 : vector<1x128xf32>
    %53 = arith.mulf %47, %51 : vector<1x128xf32>
    %54 = arith.addf %52, %53 : vector<1x128xf32>
    %55 = math.tanh %54 : vector<1x128xf32>
    %56 = arith.mulf %49, %55 : vector<1x128xf32>
    %c0_23 = arith.constant 0 : index
    %c0_24 = arith.constant 0 : index
    %57 = vector.load %arg11[%c0_23, %c0_24] : memref<8x128xf32, #tpu.memory_space<vmem>>, vector<1x128xf32>
    tpu.vector_store %arg11[%c0_23, %c0_24], %56 {strides = array<i32>} : memref<8x128xf32, #tpu.memory_space<vmem>>, vector<1x128xf32>,
    %58 = arith.truncf %56 : vector<1x128xf32> to vector<1x128xbf16>
    %cst_25 = arith.constant dense<0.000000e+00> : vector<1x512xf32>
    %59 = tpu.matmul %58, %5, %cst_25 {dimension_numbers = #tpu.dot_dimension_numbers<[1], [0], [0], [1], [0, 0, 1, 1], [], []>} : vector<1x128xbf16>, vector<128x512xbf16>, vector<1x512xf32> -> vector<1x512xf32>
    %60 = arith.addf %59, %6 : vector<1x512xf32>
    %c1 = arith.constant 1 : index
    %c0_26 = arith.constant 0 : index
    %61 = vector.load %arg10[%c1, %c0_26] : memref<8x512xf32, #tpu.memory_space<vmem>>, vector<1x512xf32>
    %62 = arith.truncf %37 : vector<1x128xf32> to vector<1x128xbf16>
    %cst_27 = arith.constant dense<0.000000e+00> : vector<1x512xf32>
    %63 = tpu.matmul %62, %1, %cst_27 {dimension_numbers = #tpu.dot_dimension_numbers<[1], [0], [0], [1], [0, 0, 1, 1], [], []>} : vector<1x128xbf16>, vector<128x512xbf16>, vector<1x512xf32> -> vector<1x512xf32>
    %64 = arith.addf %61, %63 : vector<1x512xf32>
    %65 = vector.extract_strided_slice %64 {offsets = [0, 0], sizes = [1, 384], strides = [1, 1]} : vector<1x512xf32> to vector<1x384xf32>
    %66 = arith.negf %65 : vector<1x384xf32>
    %67 = math.exp %66 : vector<1x384xf32>
    %cst_28 = arith.constant 1.000000e+00 : f32
    %68 = vector.broadcast %cst_28 : f32 to vector<1x384xf32>
    %69 = arith.addf %68, %67 : vector<1x384xf32>
    %70 = arith.divf %68, %69 : vector<1x384xf32>
    %71 = vector.extract_strided_slice %70 {offsets = [0, 0], sizes = [1, 128], strides = [1, 1]} : vector<1x384xf32> to vector<1x128xf32>
    %72 = vector.extract_strided_slice %70 {offsets = [0, 128], sizes = [1, 128], strides = [1, 1]} : vector<1x384xf32> to vector<1x128xf32>
    %73 = vector.extract_strided_slice %70 {offsets = [0, 256], sizes = [1, 128], strides = [1, 1]} : vector<1x384xf32> to vector<1x128xf32>
    %74 = vector.extract_strided_slice %64 {offsets = [0, 384], sizes = [1, 128], strides = [1, 1]} : vector<1x512xf32> to vector<1x128xf32>
    %75 = math.tanh %74 : vector<1x128xf32>
    %76 = arith.mulf %72, %35 : vector<1x128xf32>
    %77 = arith.mulf %71, %75 : vector<1x128xf32>
    %78 = arith.addf %76, %77 : vector<1x128xf32>
    %79 = math.tanh %78 : vector<1x128xf32>
    %80 = arith.mulf %73, %79 : vector<1x128xf32>
    %81 = arith.truncf %80 : vector<1x128xf32> to vector<1x128xbf16>
    %cst_29 = arith.constant dense<0.000000e+00> : vector<1x512xf32>
    %82 = tpu.matmul %81, %3, %cst_29 {dimension_numbers = #tpu.dot_dimension_numbers<[1], [0], [0], [1], [0, 0, 1, 1], [], []>} : vector<1x128xbf16>, vector<128x512xbf16>, vector<1x512xf32> -> vector<1x512xf32>
    %83 = arith.addf %60, %82 : vector<1x512xf32>
    %84 = vector.extract_strided_slice %83 {offsets = [0, 0], sizes = [1, 384], strides = [1, 1]} : vector<1x512xf32> to vector<1x384xf32>
    %85 = arith.negf %84 : vector<1x384xf32>
    %86 = math.exp %85 : vector<1x384xf32>
    %cst_30 = arith.constant 1.000000e+00 : f32
    %87 = vector.broadcast %cst_30 : f32 to vector<1x384xf32>
    %88 = arith.addf %87, %86 : vector<1x384xf32>
    %89 = arith.divf %87, %88 : vector<1x384xf32>
    %90 = vector.extract_strided_slice %89 {offsets = [0, 0], sizes = [1, 128], strides = [1, 1]} : vector<1x384xf32> to vector<1x128xf32>
    %91 = vector.extract_strided_slice %89 {offsets = [0, 128], sizes = [1, 128], strides = [1, 1]} : vector<1x384xf32> to vector<1x128xf32>
    %92 = vector.extract_strided_slice %89 {offsets = [0, 256], sizes = [1, 128], strides = [1, 1]} : vector<1x384xf32> to vector<1x128xf32>
    %93 = vector.extract_strided_slice %83 {offsets = [0, 384], sizes = [1, 128], strides = [1, 1]} : vector<1x512xf32> to vector<1x128xf32>
    %94 = math.tanh %93 : vector<1x128xf32>
    %95 = arith.mulf %91, %54 : vector<1x128xf32>
    %96 = arith.mulf %90, %94 : vector<1x128xf32>
    %97 = arith.addf %95, %96 : vector<1x128xf32>
    %98 = math.tanh %97 : vector<1x128xf32>
    %99 = arith.mulf %92, %98 : vector<1x128xf32>
    %c1_31 = arith.constant 1 : index
    %c0_32 = arith.constant 0 : index
    %100 = vector.load %arg11[%c1_31, %c0_32] : memref<8x128xf32, #tpu.memory_space<vmem>>, vector<1x128xf32>
    tpu.vector_store %arg11[%c1_31, %c0_32], %99 {strides = array<i32>} : memref<8x128xf32, #tpu.memory_space<vmem>>, vector<1x128xf32>,
    %101 = arith.truncf %99 : vector<1x128xf32> to vector<1x128xbf16>
    %cst_33 = arith.constant dense<0.000000e+00> : vector<1x512xf32>
    %102 = tpu.matmul %101, %5, %cst_33 {dimension_numbers = #tpu.dot_dimension_numbers<[1], [0], [0], [1], [0, 0, 1, 1], [], []>} : vector<1x128xbf16>, vector<128x512xbf16>, vector<1x512xf32> -> vector<1x512xf32>
    %103 = arith.addf %102, %6 : vector<1x512xf32>
    %c2 = arith.constant 2 : index
    %c0_34 = arith.constant 0 : index
    %104 = vector.load %arg10[%c2, %c0_34] : memref<8x512xf32, #tpu.memory_space<vmem>>, vector<1x512xf32>
    %105 = arith.truncf %80 : vector<1x128xf32> to vector<1x128xbf16>
    %cst_35 = arith.constant dense<0.000000e+00> : vector<1x512xf32>
    %106 = tpu.matmul %105, %1, %cst_35 {dimension_numbers = #tpu.dot_dimension_numbers<[1], [0], [0], [1], [0, 0, 1, 1], [], []>} : vector<1x128xbf16>, vector<128x512xbf16>, vector<1x512xf32> -> vector<1x512xf32>
    %107 = arith.addf %104, %106 : vector<1x512xf32>
    %108 = vector.extract_strided_slice %107 {offsets = [0, 0], sizes = [1, 384], strides = [1, 1]} : vector<1x512xf32> to vector<1x384xf32>
    %109 = arith.negf %108 : vector<1x384xf32>
    %110 = math.exp %109 : vector<1x384xf32>
    %cst_36 = arith.constant 1.000000e+00 : f32
    %111 = vector.broadcast %cst_36 : f32 to vector<1x384xf32>
    %112 = arith.addf %111, %110 : vector<1x384xf32>
    %113 = arith.divf %111, %112 : vector<1x384xf32>
    %114 = vector.extract_strided_slice %113 {offsets = [0, 0], sizes = [1, 128], strides = [1, 1]} : vector<1x384xf32> to vector<1x128xf32>
    %115 = vector.extract_strided_slice %113 {offsets = [0, 128], sizes = [1, 128], strides = [1, 1]} : vector<1x384xf32> to vector<1x128xf32>
    %116 = vector.extract_strided_slice %113 {offsets = [0, 256], sizes = [1, 128], strides = [1, 1]} : vector<1x384xf32> to vector<1x128xf32>
    %117 = vector.extract_strided_slice %107 {offsets = [0, 384], sizes = [1, 128], strides = [1, 1]} : vector<1x512xf32> to vector<1x128xf32>
    %118 = math.tanh %117 : vector<1x128xf32>
    %119 = arith.mulf %115, %78 : vector<1x128xf32>
    %120 = arith.mulf %114, %118 : vector<1x128xf32>
    %121 = arith.addf %119, %120 : vector<1x128xf32>
    %122 = math.tanh %121 : vector<1x128xf32>
    %123 = arith.mulf %116, %122 : vector<1x128xf32>
    %124 = arith.truncf %123 : vector<1x128xf32> to vector<1x128xbf16>
    %cst_37 = arith.constant dense<0.000000e+00> : vector<1x512xf32>
    %125 = tpu.matmul %124, %3, %cst_37 {dimension_numbers = #tpu.dot_dimension_numbers<[1], [0], [0], [1], [0, 0, 1, 1], [], []>} : vector<1x128xbf16>, vector<128x512xbf16>, vector<1x512xf32> -> vector<1x512xf32>
    %126 = arith.addf %103, %125 : vector<1x512xf32>
    %127 = vector.extract_strided_slice %126 {offsets = [0, 0], sizes = [1, 384], strides = [1, 1]} : vector<1x512xf32> to vector<1x384xf32>
    %128 = arith.negf %127 : vector<1x384xf32>
    %129 = math.exp %128 : vector<1x384xf32>
    %cst_38 = arith.constant 1.000000e+00 : f32
    %130 = vector.broadcast %cst_38 : f32 to vector<1x384xf32>
    %131 = arith.addf %130, %129 : vector<1x384xf32>
    %132 = arith.divf %130, %131 : vector<1x384xf32>
    %133 = vector.extract_strided_slice %132 {offsets = [0, 0], sizes = [1, 128], strides = [1, 1]} : vector<1x384xf32> to vector<1x128xf32>
    %134 = vector.extract_strided_slice %132 {offsets = [0, 128], sizes = [1, 128], strides = [1, 1]} : vector<1x384xf32> to vector<1x128xf32>
    %135 = vector.extract_strided_slice %132 {offsets = [0, 256], sizes = [1, 128], strides = [1, 1]} : vector<1x384xf32> to vector<1x128xf32>
    %136 = vector.extract_strided_slice %126 {offsets = [0, 384], sizes = [1, 128], strides = [1, 1]} : vector<1x512xf32> to vector<1x128xf32>
    %137 = math.tanh %136 : vector<1x128xf32>
    %138 = arith.mulf %134, %97 : vector<1x128xf32>
    %139 = arith.mulf %133, %137 : vector<1x128xf32>
    %140 = arith.addf %138, %139 : vector<1x128xf32>
    %141 = math.tanh %140 : vector<1x128xf32>
    %142 = arith.mulf %135, %141 : vector<1x128xf32>
    %c2_39 = arith.constant 2 : index
    %c0_40 = arith.constant 0 : index
    %143 = vector.load %arg11[%c2_39, %c0_40] : memref<8x128xf32, #tpu.memory_space<vmem>>, vector<1x128xf32>
    tpu.vector_store %arg11[%c2_39, %c0_40], %142 {strides = array<i32>} : memref<8x128xf32, #tpu.memory_space<vmem>>, vector<1x128xf32>,
    %144 = arith.truncf %142 : vector<1x128xf32> to vector<1x128xbf16>
    %cst_41 = arith.constant dense<0.000000e+00> : vector<1x512xf32>
    %145 = tpu.matmul %144, %5, %cst_41 {dimension_numbers = #tpu.dot_dimension_numbers<[1], [0], [0], [1], [0, 0, 1, 1], [], []>} : vector<1x128xbf16>, vector<128x512xbf16>, vector<1x512xf32> -> vector<1x512xf32>
    %146 = arith.addf %145, %6 : vector<1x512xf32>
    %c3 = arith.constant 3 : index
    %c0_42 = arith.constant 0 : index
    %147 = vector.load %arg10[%c3, %c0_42] : memref<8x512xf32, #tpu.memory_space<vmem>>, vector<1x512xf32>
    %148 = arith.truncf %123 : vector<1x128xf32> to vector<1x128xbf16>
    %cst_43 = arith.constant dense<0.000000e+00> : vector<1x512xf32>
    %149 = tpu.matmul %148, %1, %cst_43 {dimension_numbers = #tpu.dot_dimension_numbers<[1], [0], [0], [1], [0, 0, 1, 1], [], []>} : vector<1x128xbf16>, vector<128x512xbf16>, vector<1x512xf32> -> vector<1x512xf32>
    %150 = arith.addf %147, %149 : vector<1x512xf32>
    %151 = vector.extract_strided_slice %150 {offsets = [0, 0], sizes = [1, 384], strides = [1, 1]} : vector<1x512xf32> to vector<1x384xf32>
    %152 = arith.negf %151 : vector<1x384xf32>
    %153 = math.exp %152 : vector<1x384xf32>
    %cst_44 = arith.constant 1.000000e+00 : f32
    %154 = vector.broadcast %cst_44 : f32 to vector<1x384xf32>
    %155 = arith.addf %154, %153 : vector<1x384xf32>
    %156 = arith.divf %154, %155 : vector<1x384xf32>
    %157 = vector.extract_strided_slice %156 {offsets = [0, 0], sizes = [1, 128], strides = [1, 1]} : vector<1x384xf32> to vector<1x128xf32>
    %158 = vector.extract_strided_slice %156 {offsets = [0, 128], sizes = [1, 128], strides = [1, 1]} : vector<1x384xf32> to vector<1x128xf32>
    %159 = vector.extract_strided_slice %156 {offsets = [0, 256], sizes = [1, 128], strides = [1, 1]} : vector<1x384xf32> to vector<1x128xf32>
    %160 = vector.extract_strided_slice %150 {offsets = [0, 384], sizes = [1, 128], strides = [1, 1]} : vector<1x512xf32> to vector<1x128xf32>
    %161 = math.tanh %160 : vector<1x128xf32>
    %162 = arith.mulf %158, %121 : vector<1x128xf32>
    %163 = arith.mulf %157, %161 : vector<1x128xf32>
    %164 = arith.addf %162, %163 : vector<1x128xf32>
    %165 = math.tanh %164 : vector<1x128xf32>
    %166 = arith.mulf %159, %165 : vector<1x128xf32>
    %167 = arith.truncf %166 : vector<1x128xf32> to vector<1x128xbf16>
    %cst_45 = arith.constant dense<0.000000e+00> : vector<1x512xf32>
    %168 = tpu.matmul %167, %3, %cst_45 {dimension_numbers = #tpu.dot_dimension_numbers<[1], [0], [0], [1], [0, 0, 1, 1], [], []>} : vector<1x128xbf16>, vector<128x512xbf16>, vector<1x512xf32> -> vector<1x512xf32>
    %169 = arith.addf %146, %168 : vector<1x512xf32>
    %170 = vector.extract_strided_slice %169 {offsets = [0, 0], sizes = [1, 384], strides = [1, 1]} : vector<1x512xf32> to vector<1x384xf32>
    %171 = arith.negf %170 : vector<1x384xf32>
    %172 = math.exp %171 : vector<1x384xf32>
    %cst_46 = arith.constant 1.000000e+00 : f32
    %173 = vector.broadcast %cst_46 : f32 to vector<1x384xf32>
    %174 = arith.addf %173, %172 : vector<1x384xf32>
    %175 = arith.divf %173, %174 : vector<1x384xf32>
    %176 = vector.extract_strided_slice %175 {offsets = [0, 0], sizes = [1, 128], strides = [1, 1]} : vector<1x384xf32> to vector<1x128xf32>
    %177 = vector.extract_strided_slice %175 {offsets = [0, 128], sizes = [1, 128], strides = [1, 1]} : vector<1x384xf32> to vector<1x128xf32>
    %178 = vector.extract_strided_slice %175 {offsets = [0, 256], sizes = [1, 128], strides = [1, 1]} : vector<1x384xf32> to vector<1x128xf32>
    %179 = vector.extract_strided_slice %169 {offsets = [0, 384], sizes = [1, 128], strides = [1, 1]} : vector<1x512xf32> to vector<1x128xf32>
    %180 = math.tanh %179 : vector<1x128xf32>
    %181 = arith.mulf %177, %140 : vector<1x128xf32>
    %182 = arith.mulf %176, %180 : vector<1x128xf32>
    %183 = arith.addf %181, %182 : vector<1x128xf32>
    %184 = math.tanh %183 : vector<1x128xf32>
    %185 = arith.mulf %178, %184 : vector<1x128xf32>
    %c3_47 = arith.constant 3 : index
    %c0_48 = arith.constant 0 : index
    %186 = vector.load %arg11[%c3_47, %c0_48] : memref<8x128xf32, #tpu.memory_space<vmem>>, vector<1x128xf32>
    tpu.vector_store %arg11[%c3_47, %c0_48], %185 {strides = array<i32>} : memref<8x128xf32, #tpu.memory_space<vmem>>, vector<1x128xf32>,
    %187 = arith.truncf %185 : vector<1x128xf32> to vector<1x128xbf16>
    %cst_49 = arith.constant dense<0.000000e+00> : vector<1x512xf32>
    %188 = tpu.matmul %187, %5, %cst_49 {dimension_numbers = #tpu.dot_dimension_numbers<[1], [0], [0], [1], [0, 0, 1, 1], [], []>} : vector<1x128xbf16>, vector<128x512xbf16>, vector<1x512xf32> -> vector<1x512xf32>
    %189 = arith.addf %188, %6 : vector<1x512xf32>
    %c4 = arith.constant 4 : index
    %c0_50 = arith.constant 0 : index
    %190 = vector.load %arg10[%c4, %c0_50] : memref<8x512xf32, #tpu.memory_space<vmem>>, vector<1x512xf32>
    %191 = arith.truncf %166 : vector<1x128xf32> to vector<1x128xbf16>
    %cst_51 = arith.constant dense<0.000000e+00> : vector<1x512xf32>
    %192 = tpu.matmul %191, %1, %cst_51 {dimension_numbers = #tpu.dot_dimension_numbers<[1], [0], [0], [1], [0, 0, 1, 1], [], []>} : vector<1x128xbf16>, vector<128x512xbf16>, vector<1x512xf32> -> vector<1x512xf32>
    %193 = arith.addf %190, %192 : vector<1x512xf32>
    %194 = vector.extract_strided_slice %193 {offsets = [0, 0], sizes = [1, 384], strides = [1, 1]} : vector<1x512xf32> to vector<1x384xf32>
    %195 = arith.negf %194 : vector<1x384xf32>
    %196 = math.exp %195 : vector<1x384xf32>
    %cst_52 = arith.constant 1.000000e+00 : f32
    %197 = vector.broadcast %cst_52 : f32 to vector<1x384xf32>
    %198 = arith.addf %197, %196 : vector<1x384xf32>
    %199 = arith.divf %197, %198 : vector<1x384xf32>
    %200 = vector.extract_strided_slice %199 {offsets = [0, 0], sizes = [1, 128], strides = [1, 1]} : vector<1x384xf32> to vector<1x128xf32>
    %201 = vector.extract_strided_slice %199 {offsets = [0, 128], sizes = [1, 128], strides = [1, 1]} : vector<1x384xf32> to vector<1x128xf32>
    %202 = vector.extract_strided_slice %199 {offsets = [0, 256], sizes = [1, 128], strides = [1, 1]} : vector<1x384xf32> to vector<1x128xf32>
    %203 = vector.extract_strided_slice %193 {offsets = [0, 384], sizes = [1, 128], strides = [1, 1]} : vector<1x512xf32> to vector<1x128xf32>
    %204 = math.tanh %203 : vector<1x128xf32>
    %205 = arith.mulf %201, %164 : vector<1x128xf32>
    %206 = arith.mulf %200, %204 : vector<1x128xf32>
    %207 = arith.addf %205, %206 : vector<1x128xf32>
    %208 = math.tanh %207 : vector<1x128xf32>
    %209 = arith.mulf %202, %208 : vector<1x128xf32>
    %210 = arith.truncf %209 : vector<1x128xf32> to vector<1x128xbf16>
    %cst_53 = arith.constant dense<0.000000e+00> : vector<1x512xf32>
    %211 = tpu.matmul %210, %3, %cst_53 {dimension_numbers = #tpu.dot_dimension_numbers<[1], [0], [0], [1], [0, 0, 1, 1], [], []>} : vector<1x128xbf16>, vector<128x512xbf16>, vector<1x512xf32> -> vector<1x512xf32>
    %212 = arith.addf %189, %211 : vector<1x512xf32>
    %213 = vector.extract_strided_slice %212 {offsets = [0, 0], sizes = [1, 384], strides = [1, 1]} : vector<1x512xf32> to vector<1x384xf32>
    %214 = arith.negf %213 : vector<1x384xf32>
    %215 = math.exp %214 : vector<1x384xf32>
    %cst_54 = arith.constant 1.000000e+00 : f32
    %216 = vector.broadcast %cst_54 : f32 to vector<1x384xf32>
    %217 = arith.addf %216, %215 : vector<1x384xf32>
    %218 = arith.divf %216, %217 : vector<1x384xf32>
    %219 = vector.extract_strided_slice %218 {offsets = [0, 0], sizes = [1, 128], strides = [1, 1]} : vector<1x384xf32> to vector<1x128xf32>
    %220 = vector.extract_strided_slice %218 {offsets = [0, 128], sizes = [1, 128], strides = [1, 1]} : vector<1x384xf32> to vector<1x128xf32>
    %221 = vector.extract_strided_slice %218 {offsets = [0, 256], sizes = [1, 128], strides = [1, 1]} : vector<1x384xf32> to vector<1x128xf32>
    %222 = vector.extract_strided_slice %212 {offsets = [0, 384], sizes = [1, 128], strides = [1, 1]} : vector<1x512xf32> to vector<1x128xf32>
    %223 = math.tanh %222 : vector<1x128xf32>
    %224 = arith.mulf %220, %183 : vector<1x128xf32>
    %225 = arith.mulf %219, %223 : vector<1x128xf32>
    %226 = arith.addf %224, %225 : vector<1x128xf32>
    %227 = math.tanh %226 : vector<1x128xf32>
    %228 = arith.mulf %221, %227 : vector<1x128xf32>
    %c4_55 = arith.constant 4 : index
    %c0_56 = arith.constant 0 : index
    %229 = vector.load %arg11[%c4_55, %c0_56] : memref<8x128xf32, #tpu.memory_space<vmem>>, vector<1x128xf32>
    tpu.vector_store %arg11[%c4_55, %c0_56], %228 {strides = array<i32>} : memref<8x128xf32, #tpu.memory_space<vmem>>, vector<1x128xf32>,
    %230 = arith.truncf %228 : vector<1x128xf32> to vector<1x128xbf16>
    %cst_57 = arith.constant dense<0.000000e+00> : vector<1x512xf32>
    %231 = tpu.matmul %230, %5, %cst_57 {dimension_numbers = #tpu.dot_dimension_numbers<[1], [0], [0], [1], [0, 0, 1, 1], [], []>} : vector<1x128xbf16>, vector<128x512xbf16>, vector<1x512xf32> -> vector<1x512xf32>
    %232 = arith.addf %231, %6 : vector<1x512xf32>
    %c5 = arith.constant 5 : index
    %c0_58 = arith.constant 0 : index
    %233 = vector.load %arg10[%c5, %c0_58] : memref<8x512xf32, #tpu.memory_space<vmem>>, vector<1x512xf32>
    %234 = arith.truncf %209 : vector<1x128xf32> to vector<1x128xbf16>
    %cst_59 = arith.constant dense<0.000000e+00> : vector<1x512xf32>
    %235 = tpu.matmul %234, %1, %cst_59 {dimension_numbers = #tpu.dot_dimension_numbers<[1], [0], [0], [1], [0, 0, 1, 1], [], []>} : vector<1x128xbf16>, vector<128x512xbf16>, vector<1x512xf32> -> vector<1x512xf32>
    %236 = arith.addf %233, %235 : vector<1x512xf32>
    %237 = vector.extract_strided_slice %236 {offsets = [0, 0], sizes = [1, 384], strides = [1, 1]} : vector<1x512xf32> to vector<1x384xf32>
    %238 = arith.negf %237 : vector<1x384xf32>
    %239 = math.exp %238 : vector<1x384xf32>
    %cst_60 = arith.constant 1.000000e+00 : f32
    %240 = vector.broadcast %cst_60 : f32 to vector<1x384xf32>
    %241 = arith.addf %240, %239 : vector<1x384xf32>
    %242 = arith.divf %240, %241 : vector<1x384xf32>
    %243 = vector.extract_strided_slice %242 {offsets = [0, 0], sizes = [1, 128], strides = [1, 1]} : vector<1x384xf32> to vector<1x128xf32>
    %244 = vector.extract_strided_slice %242 {offsets = [0, 128], sizes = [1, 128], strides = [1, 1]} : vector<1x384xf32> to vector<1x128xf32>
    %245 = vector.extract_strided_slice %242 {offsets = [0, 256], sizes = [1, 128], strides = [1, 1]} : vector<1x384xf32> to vector<1x128xf32>
    %246 = vector.extract_strided_slice %236 {offsets = [0, 384], sizes = [1, 128], strides = [1, 1]} : vector<1x512xf32> to vector<1x128xf32>
    %247 = math.tanh %246 : vector<1x128xf32>
    %248 = arith.mulf %244, %207 : vector<1x128xf32>
    %249 = arith.mulf %243, %247 : vector<1x128xf32>
    %250 = arith.addf %248, %249 : vector<1x128xf32>
    %251 = math.tanh %250 : vector<1x128xf32>
    %252 = arith.mulf %245, %251 : vector<1x128xf32>
    %253 = arith.truncf %252 : vector<1x128xf32> to vector<1x128xbf16>
    %cst_61 = arith.constant dense<0.000000e+00> : vector<1x512xf32>
    %254 = tpu.matmul %253, %3, %cst_61 {dimension_numbers = #tpu.dot_dimension_numbers<[1], [0], [0], [1], [0, 0, 1, 1], [], []>} : vector<1x128xbf16>, vector<128x512xbf16>, vector<1x512xf32> -> vector<1x512xf32>
    %255 = arith.addf %232, %254 : vector<1x512xf32>
    %256 = vector.extract_strided_slice %255 {offsets = [0, 0], sizes = [1, 384], strides = [1, 1]} : vector<1x512xf32> to vector<1x384xf32>
    %257 = arith.negf %256 : vector<1x384xf32>
    %258 = math.exp %257 : vector<1x384xf32>
    %cst_62 = arith.constant 1.000000e+00 : f32
    %259 = vector.broadcast %cst_62 : f32 to vector<1x384xf32>
    %260 = arith.addf %259, %258 : vector<1x384xf32>
    %261 = arith.divf %259, %260 : vector<1x384xf32>
    %262 = vector.extract_strided_slice %261 {offsets = [0, 0], sizes = [1, 128], strides = [1, 1]} : vector<1x384xf32> to vector<1x128xf32>
    %263 = vector.extract_strided_slice %261 {offsets = [0, 128], sizes = [1, 128], strides = [1, 1]} : vector<1x384xf32> to vector<1x128xf32>
    %264 = vector.extract_strided_slice %261 {offsets = [0, 256], sizes = [1, 128], strides = [1, 1]} : vector<1x384xf32> to vector<1x128xf32>
    %265 = vector.extract_strided_slice %255 {offsets = [0, 384], sizes = [1, 128], strides = [1, 1]} : vector<1x512xf32> to vector<1x128xf32>
    %266 = math.tanh %265 : vector<1x128xf32>
    %267 = arith.mulf %263, %226 : vector<1x128xf32>
    %268 = arith.mulf %262, %266 : vector<1x128xf32>
    %269 = arith.addf %267, %268 : vector<1x128xf32>
    %270 = math.tanh %269 : vector<1x128xf32>
    %271 = arith.mulf %264, %270 : vector<1x128xf32>
    %c5_63 = arith.constant 5 : index
    %c0_64 = arith.constant 0 : index
    %272 = vector.load %arg11[%c5_63, %c0_64] : memref<8x128xf32, #tpu.memory_space<vmem>>, vector<1x128xf32>
    tpu.vector_store %arg11[%c5_63, %c0_64], %271 {strides = array<i32>} : memref<8x128xf32, #tpu.memory_space<vmem>>, vector<1x128xf32>,
    %273 = arith.truncf %271 : vector<1x128xf32> to vector<1x128xbf16>
    %cst_65 = arith.constant dense<0.000000e+00> : vector<1x512xf32>
    %274 = tpu.matmul %273, %5, %cst_65 {dimension_numbers = #tpu.dot_dimension_numbers<[1], [0], [0], [1], [0, 0, 1, 1], [], []>} : vector<1x128xbf16>, vector<128x512xbf16>, vector<1x512xf32> -> vector<1x512xf32>
    %275 = arith.addf %274, %6 : vector<1x512xf32>
    %c6 = arith.constant 6 : index
    %c0_66 = arith.constant 0 : index
    %276 = vector.load %arg10[%c6, %c0_66] : memref<8x512xf32, #tpu.memory_space<vmem>>, vector<1x512xf32>
    %277 = arith.truncf %252 : vector<1x128xf32> to vector<1x128xbf16>
    %cst_67 = arith.constant dense<0.000000e+00> : vector<1x512xf32>
    %278 = tpu.matmul %277, %1, %cst_67 {dimension_numbers = #tpu.dot_dimension_numbers<[1], [0], [0], [1], [0, 0, 1, 1], [], []>} : vector<1x128xbf16>, vector<128x512xbf16>, vector<1x512xf32> -> vector<1x512xf32>
    %279 = arith.addf %276, %278 : vector<1x512xf32>
    %280 = vector.extract_strided_slice %279 {offsets = [0, 0], sizes = [1, 384], strides = [1, 1]} : vector<1x512xf32> to vector<1x384xf32>
    %281 = arith.negf %280 : vector<1x384xf32>
    %282 = math.exp %281 : vector<1x384xf32>
    %cst_68 = arith.constant 1.000000e+00 : f32
    %283 = vector.broadcast %cst_68 : f32 to vector<1x384xf32>
    %284 = arith.addf %283, %282 : vector<1x384xf32>
    %285 = arith.divf %283, %284 : vector<1x384xf32>
    %286 = vector.extract_strided_slice %285 {offsets = [0, 0], sizes = [1, 128], strides = [1, 1]} : vector<1x384xf32> to vector<1x128xf32>
    %287 = vector.extract_strided_slice %285 {offsets = [0, 128], sizes = [1, 128], strides = [1, 1]} : vector<1x384xf32> to vector<1x128xf32>
    %288 = vector.extract_strided_slice %285 {offsets = [0, 256], sizes = [1, 128], strides = [1, 1]} : vector<1x384xf32> to vector<1x128xf32>
    %289 = vector.extract_strided_slice %279 {offsets = [0, 384], sizes = [1, 128], strides = [1, 1]} : vector<1x512xf32> to vector<1x128xf32>
    %290 = math.tanh %289 : vector<1x128xf32>
    %291 = arith.mulf %287, %250 : vector<1x128xf32>
    %292 = arith.mulf %286, %290 : vector<1x128xf32>
    %293 = arith.addf %291, %292 : vector<1x128xf32>
    %294 = math.tanh %293 : vector<1x128xf32>
    %295 = arith.mulf %288, %294 : vector<1x128xf32>
    %296 = arith.truncf %295 : vector<1x128xf32> to vector<1x128xbf16>
    %cst_69 = arith.constant dense<0.000000e+00> : vector<1x512xf32>
    %297 = tpu.matmul %296, %3, %cst_69 {dimension_numbers = #tpu.dot_dimension_numbers<[1], [0], [0], [1], [0, 0, 1, 1], [], []>} : vector<1x128xbf16>, vector<128x512xbf16>, vector<1x512xf32> -> vector<1x512xf32>
    %298 = arith.addf %275, %297 : vector<1x512xf32>
    %299 = vector.extract_strided_slice %298 {offsets = [0, 0], sizes = [1, 384], strides = [1, 1]} : vector<1x512xf32> to vector<1x384xf32>
    %300 = arith.negf %299 : vector<1x384xf32>
    %301 = math.exp %300 : vector<1x384xf32>
    %cst_70 = arith.constant 1.000000e+00 : f32
    %302 = vector.broadcast %cst_70 : f32 to vector<1x384xf32>
    %303 = arith.addf %302, %301 : vector<1x384xf32>
    %304 = arith.divf %302, %303 : vector<1x384xf32>
    %305 = vector.extract_strided_slice %304 {offsets = [0, 0], sizes = [1, 128], strides = [1, 1]} : vector<1x384xf32> to vector<1x128xf32>
    %306 = vector.extract_strided_slice %304 {offsets = [0, 128], sizes = [1, 128], strides = [1, 1]} : vector<1x384xf32> to vector<1x128xf32>
    %307 = vector.extract_strided_slice %304 {offsets = [0, 256], sizes = [1, 128], strides = [1, 1]} : vector<1x384xf32> to vector<1x128xf32>
    %308 = vector.extract_strided_slice %298 {offsets = [0, 384], sizes = [1, 128], strides = [1, 1]} : vector<1x512xf32> to vector<1x128xf32>
    %309 = math.tanh %308 : vector<1x128xf32>
    %310 = arith.mulf %306, %269 : vector<1x128xf32>
    %311 = arith.mulf %305, %309 : vector<1x128xf32>
    %312 = arith.addf %310, %311 : vector<1x128xf32>
    %313 = math.tanh %312 : vector<1x128xf32>
    %314 = arith.mulf %307, %313 : vector<1x128xf32>
    %c6_71 = arith.constant 6 : index
    %c0_72 = arith.constant 0 : index
    %315 = vector.load %arg11[%c6_71, %c0_72] : memref<8x128xf32, #tpu.memory_space<vmem>>, vector<1x128xf32>
    tpu.vector_store %arg11[%c6_71, %c0_72], %314 {strides = array<i32>} : memref<8x128xf32, #tpu.memory_space<vmem>>, vector<1x128xf32>,
    %316 = arith.truncf %314 : vector<1x128xf32> to vector<1x128xbf16>
    %cst_73 = arith.constant dense<0.000000e+00> : vector<1x512xf32>
    %317 = tpu.matmul %316, %5, %cst_73 {dimension_numbers = #tpu.dot_dimension_numbers<[1], [0], [0], [1], [0, 0, 1, 1], [], []>} : vector<1x128xbf16>, vector<128x512xbf16>, vector<1x512xf32> -> vector<1x512xf32>
    %318 = arith.addf %317, %6 : vector<1x512xf32>
    %c7 = arith.constant 7 : index
    %c0_74 = arith.constant 0 : index
    %319 = vector.load %arg10[%c7, %c0_74] : memref<8x512xf32, #tpu.memory_space<vmem>>, vector<1x512xf32>
    %320 = arith.truncf %295 : vector<1x128xf32> to vector<1x128xbf16>
    %cst_75 = arith.constant dense<0.000000e+00> : vector<1x512xf32>
    %321 = tpu.matmul %320, %1, %cst_75 {dimension_numbers = #tpu.dot_dimension_numbers<[1], [0], [0], [1], [0, 0, 1, 1], [], []>} : vector<1x128xbf16>, vector<128x512xbf16>, vector<1x512xf32> -> vector<1x512xf32>
    %322 = arith.addf %319, %321 : vector<1x512xf32>
    %323 = vector.extract_strided_slice %322 {offsets = [0, 0], sizes = [1, 384], strides = [1, 1]} : vector<1x512xf32> to vector<1x384xf32>
    %324 = arith.negf %323 : vector<1x384xf32>
    %325 = math.exp %324 : vector<1x384xf32>
    %cst_76 = arith.constant 1.000000e+00 : f32
    %326 = vector.broadcast %cst_76 : f32 to vector<1x384xf32>
    %327 = arith.addf %326, %325 : vector<1x384xf32>
    %328 = arith.divf %326, %327 : vector<1x384xf32>
    %329 = vector.extract_strided_slice %328 {offsets = [0, 0], sizes = [1, 128], strides = [1, 1]} : vector<1x384xf32> to vector<1x128xf32>
    %330 = vector.extract_strided_slice %328 {offsets = [0, 128], sizes = [1, 128], strides = [1, 1]} : vector<1x384xf32> to vector<1x128xf32>
    %331 = vector.extract_strided_slice %328 {offsets = [0, 256], sizes = [1, 128], strides = [1, 1]} : vector<1x384xf32> to vector<1x128xf32>
    %332 = vector.extract_strided_slice %322 {offsets = [0, 384], sizes = [1, 128], strides = [1, 1]} : vector<1x512xf32> to vector<1x128xf32>
    %333 = math.tanh %332 : vector<1x128xf32>
    %334 = arith.mulf %330, %293 : vector<1x128xf32>
    %335 = arith.mulf %329, %333 : vector<1x128xf32>
    %336 = arith.addf %334, %335 : vector<1x128xf32>
    %337 = math.tanh %336 : vector<1x128xf32>
    %338 = arith.mulf %331, %337 : vector<1x128xf32>
    %339 = arith.truncf %338 : vector<1x128xf32> to vector<1x128xbf16>
    %cst_77 = arith.constant dense<0.000000e+00> : vector<1x512xf32>
    %340 = tpu.matmul %339, %3, %cst_77 {dimension_numbers = #tpu.dot_dimension_numbers<[1], [0], [0], [1], [0, 0, 1, 1], [], []>} : vector<1x128xbf16>, vector<128x512xbf16>, vector<1x512xf32> -> vector<1x512xf32>
    %341 = arith.addf %318, %340 : vector<1x512xf32>
    %342 = vector.extract_strided_slice %341 {offsets = [0, 0], sizes = [1, 384], strides = [1, 1]} : vector<1x512xf32> to vector<1x384xf32>
    %343 = arith.negf %342 : vector<1x384xf32>
    %344 = math.exp %343 : vector<1x384xf32>
    %cst_78 = arith.constant 1.000000e+00 : f32
    %345 = vector.broadcast %cst_78 : f32 to vector<1x384xf32>
    %346 = arith.addf %345, %344 : vector<1x384xf32>
    %347 = arith.divf %345, %346 : vector<1x384xf32>
    %348 = vector.extract_strided_slice %347 {offsets = [0, 0], sizes = [1, 128], strides = [1, 1]} : vector<1x384xf32> to vector<1x128xf32>
    %349 = vector.extract_strided_slice %347 {offsets = [0, 128], sizes = [1, 128], strides = [1, 1]} : vector<1x384xf32> to vector<1x128xf32>
    %350 = vector.extract_strided_slice %347 {offsets = [0, 256], sizes = [1, 128], strides = [1, 1]} : vector<1x384xf32> to vector<1x128xf32>
    %351 = vector.extract_strided_slice %341 {offsets = [0, 384], sizes = [1, 128], strides = [1, 1]} : vector<1x512xf32> to vector<1x128xf32>
    %352 = math.tanh %351 : vector<1x128xf32>
    %353 = arith.mulf %349, %312 : vector<1x128xf32>
    %354 = arith.mulf %348, %352 : vector<1x128xf32>
    %355 = arith.addf %353, %354 : vector<1x128xf32>
    %356 = math.tanh %355 : vector<1x128xf32>
    %357 = arith.mulf %350, %356 : vector<1x128xf32>
    %c7_79 = arith.constant 7 : index
    %c0_80 = arith.constant 0 : index
    %358 = vector.load %arg11[%c7_79, %c0_80] : memref<8x128xf32, #tpu.memory_space<vmem>>, vector<1x128xf32>
    tpu.vector_store %arg11[%c7_79, %c0_80], %357 {strides = array<i32>} : memref<8x128xf32, #tpu.memory_space<vmem>>, vector<1x128xf32>,
    %c0_81 = arith.constant 0 : index
    %c0_82 = arith.constant 0 : index
    %359 = vector.load %arg11[%c0_81, %c0_82] : memref<8x128xf32, #tpu.memory_space<vmem>>, vector<8x128xf32>
    %c0_83 = arith.constant 0 : index
    %c0_84 = arith.constant 0 : index
    %360 = vector.load %arg7[%c0_83, %c0_84] : memref<128x128xf32, #tpu.memory_space<vmem>>, vector<128x128xf32>
    %cst_85 = arith.constant dense<0.000000e+00> : vector<8x128xf32>
    %361 = tpu.matmul %359, %360, %cst_85 {dimension_numbers = #tpu.dot_dimension_numbers<[1], [0], [0], [1], [0, 0, 1, 1], [], []>} : vector<8x128xf32>, vector<128x128xf32>, vector<8x128xf32> -> vector<8x128xf32>
    %c0_86 = arith.constant 0 : index
    %c0_87 = arith.constant 0 : index
    %362 = vector.load %arg8[%c0_86, %c0_87] : memref<1x128xf32, #tpu.memory_space<vmem>>, vector<1x128xf32>
    %363 = vector.broadcast %362 : vector<1x128xf32> to vector<8x128xf32>
    %364 = arith.addf %361, %363 : vector<8x128xf32>
    %c0_88 = arith.constant 0 : index
    %c0_89 = arith.constant 0 : index
    %365 = vector.load %arg9[%c0_88, %c0_89] : memref<8x128xf32, #tpu.memory_space<vmem>>, vector<8x128xf32>
    tpu.vector_store %arg9[%c0_88, %c0_89], %364 {strides = array<i32>} : memref<8x128xf32, #tpu.memory_space<vmem>>, vector<8x128xf32>,
    return
  }
}

</mosaic_0001>

<llo_original>
// kernel: tpu_custom_call.1
$region0: #{tpu_custom_call.1}
  #allocation0 [shape = 'u32[]', space=smem, size = 0x4, offset = 0x4, fixed_abs, tag = 'smem constant byte address 0x4 - core index']
  #allocation1 [shape = 'u32[144,128]{1,0:T(1,128)}', space=vmem, size = 0x12000, scoped, tag = 'internal scratch']
  #allocation2 [shape = 'f32[8,512]{1,0:T(8,128)}', space=vmem, size = 0x4000, scoped, tag = 'scratch operand']
  #allocation3 [shape = 'f32[8,128]{1,0:T(8,128)}', space=vmem, size = 0x1000, scoped, tag = 'scratch operand']
  %s0 = inlined_call_operand.hbm [shape: f32[8,16], index: 0, kind: input, shape index: {}]
  %s1 = inlined_call_operand.hbm [shape: f32[16,512], index: 1, kind: input, shape index: {}]
  %s2 = inlined_call_operand.hbm [shape: f32[128,512], index: 2, kind: input, shape index: {}]
  %s3 = inlined_call_operand.vmem [shape: f32[1,512], index: 3, kind: input, shape index: {}]
  %s4 = inlined_call_operand.hbm [shape: f32[128,512], index: 4, kind: input, shape index: {}]
  %s5 = inlined_call_operand.hbm [shape: f32[128,512], index: 5, kind: input, shape index: {}]
  %s6 = inlined_call_operand.vmem [shape: f32[1,512], index: 6, kind: input, shape index: {}]
  %s7 = inlined_call_operand.hbm [shape: f32[128,128], index: 7, kind: input, shape index: {}]
  %s8 = inlined_call_operand.vmem [shape: f32[1,128], index: 8, kind: input, shape index: {}]
  %s9 = inlined_call_operand.hbm [shape: f32[8,128], index: 9, kind: output, shape index: {}]
  %s10 = sld [smem:[#allocation0]]
  $region70: #{tpu_custom_call.1} parent=0
    _
  %s12 = ssub.s32 1, %s10
  %s13 = scalar_select 0, %s12, %s10
  $region1: #{tpu_custom_call.1} parent=0
    #allocation4 [shape = 'u8[4096]{0}', space=vmem, size = 0x1000, scoped, tag = 'input window, operand 0, single buffered']
    #allocation5 [shape = 's32[1]{0}', space=sflag, size = 0x4, scoped, tag = 'scoped memory for tpu_custom_call.1']
    #allocation6 [shape = 's32[1]{0}', space=sflag, size = 0x4, scoped, tag = 'scoped memory for tpu_custom_call.1']
    #allocation7 [shape = 'u8[32768]{0}', space=vmem, size = 0x8000, scoped, tag = 'input window, operand 1, single buffered']
    #allocation8 [shape = 's32[1]{0}', space=sflag, size = 0x4, scoped, tag = 'scoped memory for tpu_custom_call.1']
    #allocation9 [shape = 'u8[262144]{0}', space=vmem, size = 0x40000, scoped, tag = 'input window, operand 2, single buffered']
    #allocation10 [shape = 'u8[262144]{0}', space=vmem, size = 0x40000, scoped, tag = 'input window, operand 4, single buffered']
    #allocation11 [shape = 's32[1]{0}', space=sflag, size = 0x4, scoped, tag = 'scoped memory for tpu_custom_call.1']
    #allocation12 [shape = 'u8[262144]{0}', space=vmem, size = 0x40000, scoped, tag = 'input window, operand 5, single buffered']
    #allocation13 [shape = 'u8[65536]{0}', space=vmem, size = 0x10000, scoped, tag = 'input window, operand 7, single buffered']
    #allocation14 [shape = 's32[1]{0}', space=sflag, size = 0x4, scoped, tag = 'scoped memory for tpu_custom_call.1']
    #allocation15 [shape = 'u8[4096]{0}', space=vmem, size = 0x1000, scoped, tag = 'output window, operand 0, single buffered']
    %14 = vsyncpa [#allocation5], 0
    %15 = vsyncpa [#allocation8], 0
    %16 = vsyncpa [#allocation11], 0
    %17 = vsyncpa [#allocation14], 0
    %18 = vsyncpa [#allocation6], 0
    // Predicated region
    $region2: #{tpu_custom_call.1} parent=1 // pred_check
      _
    $region3: #{tpu_custom_call.1} parent=1 // pred_check_branch
      %20 = sbr.rel (0) target = $region5
    $region4: #{tpu_custom_call.1} parent=1 // pred_region
      %s22 = ssub.s32 128, 128
      %23 = vsyncadd [#allocation5], %s22
      %s25 = sshll.u32 [#allocation4], 4
      %s26 = int_to_ptr.vmem [resolvable:$true] %s25
      %28 = dma.hbm_to_vmem [thread:$0]  %s0, 128, %s26, [#allocation5]
    $region5: #{tpu_custom_call.1} parent=1 // pred_fallthru
      _
    // Predicated region
    $region6: #{tpu_custom_call.1} parent=1 // pred_check
      _
    $region7: #{tpu_custom_call.1} parent=1 // pred_check_branch
      %30 = sbr.rel (0) target = $region9
    $region8: #{tpu_custom_call.1} parent=1 // pred_region
      %s32 = ssub.s32 1024, 1024
      %33 = vsyncadd [#allocation8], %s32
      %s34 = sshll.u32 [#allocation7], 4
      %s35 = int_to_ptr.vmem [resolvable:$true] %s34
      %40 = dma.hbm_to_vmem [thread:$0]  %s1, 1024, %s35, [#allocation8], 512, 512, 32
    $region9: #{tpu_custom_call.1} parent=1 // pred_fallthru
      _
    // Predicated region
    $region10: #{tpu_custom_call.1} parent=1 // pred_check
      _
    $region11: #{tpu_custom_call.1} parent=1 // pred_check_branch
      %42 = sbr.rel (0) target = $region13
    $region12: #{tpu_custom_call.1} parent=1 // pred_region
      %s44 = ssub.s32 8192, 8192
      %45 = vsyncadd [#allocation8], %s44
      %s46 = sshll.u32 [#allocation9], 4
      %s47 = int_to_ptr.vmem [resolvable:$true] %s46
      %52 = dma.hbm_to_vmem [thread:$0]  %s2, 8192, %s47, [#allocation8], 512, 512, 32
    $region13: #{tpu_custom_call.1} parent=1 // pred_fallthru
      _
    // Predicated region
    $region14: #{tpu_custom_call.1} parent=1 // pred_check
      _
    $region15: #{tpu_custom_call.1} parent=1 // pred_check_branch
      %54 = sbr.rel (0) target = $region17
    $region16: #{tpu_custom_call.1} parent=1 // pred_region
      _
    $region17: #{tpu_custom_call.1} parent=1 // pred_fallthru
      _
    // Predicated region
    $region18: #{tpu_custom_call.1} parent=1 // pred_check
      _
    $region19: #{tpu_custom_call.1} parent=1 // pred_check_branch
      %56 = sbr.rel (0) target = $region21
    $region20: #{tpu_custom_call.1} parent=1 // pred_region
      %s58 = ssub.s32 8192, 8192
      %59 = vsyncadd [#allocation11], %s58
      %s60 = sshll.u32 [#allocation10], 4
      %s61 = int_to_ptr.vmem [resolvable:$true] %s60
      %66 = dma.hbm_to_vmem [thread:$0]  %s4, 8192, %s61, [#allocation11], 512, 512, 32
    $region21: #{tpu_custom_call.1} parent=1 // pred_fallthru
      _
    // Predicated region
    $region22: #{tpu_custom_call.1} parent=1 // pred_check
      _
    $region23: #{tpu_custom_call.1} parent=1 // pred_check_branch
      %68 = sbr.rel (0) target = $region25
    $region24: #{tpu_custom_call.1} parent=1 // pred_region
      %s70 = ssub.s32 8192, 8192
      %71 = vsyncadd [#allocation11], %s70
      %s72 = sshll.u32 [#allocation12], 4
      %s73 = int_to_ptr.vmem [resolvable:$true] %s72
      %78 = dma.hbm_to_vmem [thread:$0]  %s5, 8192, %s73, [#allocation11], 512, 512, 32
    $region25: #{tpu_custom_call.1} parent=1 // pred_fallthru
      _
    // Predicated region
    $region26: #{tpu_custom_call.1} parent=1 // pred_check
      _
    $region27: #{tpu_custom_call.1} parent=1 // pred_check_branch
      %80 = sbr.rel (0) target = $region29
    $region28: #{tpu_custom_call.1} parent=1 // pred_region
      _
    $region29: #{tpu_custom_call.1} parent=1 // pred_fallthru
      _
    // Predicated region
    $region30: #{tpu_custom_call.1} parent=1 // pred_check
      _
    $region31: #{tpu_custom_call.1} parent=1 // pred_check_branch
      %82 = sbr.rel (0) target = $region33
    $region32: #{tpu_custom_call.1} parent=1 // pred_region
      %s84 = ssub.s32 2048, 2048
      %85 = vsyncadd [#allocation14], %s84
      %s86 = sshll.u32 [#allocation13], 4
      %s87 = int_to_ptr.vmem [resolvable:$true] %s86
      %92 = dma.hbm_to_vmem [thread:$0]  %s7, 2048, %s87, [#allocation14], 128, 128, 8
    $region33: #{tpu_custom_call.1} parent=1 // pred_fallthru
      _
    // Predicated region
    $region34: #{tpu_custom_call.1} parent=1 // pred_check
      _
    $region35: #{tpu_custom_call.1} parent=1 // pred_check_branch
      %94 = sbr.rel (0) target = $region37
    $region36: #{tpu_custom_call.1} parent=1 // pred_region
      _
    $region37: #{tpu_custom_call.1} parent=1 // pred_fallthru
      _
    // Predicated region
    $region38: #{tpu_custom_call.1} parent=1 // pred_check
      _
    $region39: #{tpu_custom_call.1} parent=1 // pred_check_branch
      %96 = sbr.rel (0) target = $region41
    $region40: #{tpu_custom_call.1} parent=1 // pred_region
      %97 = dma.done [#allocation5], 128
    $region41: #{tpu_custom_call.1} parent=1 // pred_fallthru
      _
    // Predicated region
    $region42: #{tpu_custom_call.1} parent=1 // pred_check
      _
    $region43: #{tpu_custom_call.1} parent=1 // pred_check_branch
      %99 = sbr.rel (0) target = $region45
    $region44: #{tpu_custom_call.1} parent=1 // pred_region
      %100 = dma.done [#allocation8], 1024
    $region45: #{tpu_custom_call.1} parent=1 // pred_fallthru
      _
    // Predicated region
    $region46: #{tpu_custom_call.1} parent=1 // pred_check
      _
    $region47: #{tpu_custom_call.1} parent=1 // pred_check_branch
      %102 = sbr.rel (0) target = $region49
    $region48: #{tpu_custom_call.1} parent=1 // pred_region
      %103 = dma.done [#allocation8], 8192
    $region49: #{tpu_custom_call.1} parent=1 // pred_fallthru
      _
    // Predicated region
    $region50: #{tpu_custom_call.1} parent=1 // pred_check
      _
    $region51: #{tpu_custom_call.1} parent=1 // pred_check_branch
      %105 = sbr.rel (0) target = $region53
    $region52: #{tpu_custom_call.1} parent=1 // pred_region
      %106 = dma.done [#allocation11], 8192
    $region53: #{tpu_custom_call.1} parent=1 // pred_fallthru
      _
    // Predicated region
    $region54: #{tpu_custom_call.1} parent=1 // pred_check
      _
    $region55: #{tpu_custom_call.1} parent=1 // pred_check_branch
      %108 = sbr.rel (0) target = $region57
    $region56: #{tpu_custom_call.1} parent=1 // pred_region
      %109 = dma.done [#allocation11], 8192
    $region57: #{tpu_custom_call.1} parent=1 // pred_fallthru
      _
    // Predicated region
    $region58: #{tpu_custom_call.1} parent=1 // pred_check
      _
    $region59: #{tpu_custom_call.1} parent=1 // pred_check_branch
      %111 = sbr.rel (0) target = $region61
    $region60: #{tpu_custom_call.1} parent=1 // pred_region
      %112 = dma.done [#allocation14], 2048
    $region61: #{tpu_custom_call.1} parent=1 // pred_fallthru
      _
    %v114 = vld [vmem:[#allocation9] sm:$0xff]
    %v115 = vld [vmem:[#allocation9 + $0x8] sm:$0xff]
    %v116 = vld [vmem:[#allocation9 + $0x10] sm:$0xff]
    %v117 = vld [vmem:[#allocation9 + $0x18] sm:$0xff]
    %v118 = vld [vmem:[#allocation9 + $0x20] sm:$0xff]
    %v119 = vld [vmem:[#allocation9 + $0x28] sm:$0xff]
    %v120 = vld [vmem:[#allocation9 + $0x30] sm:$0xff]
    %v121 = vld [vmem:[#allocation9 + $0x38] sm:$0xff]
    %v122 = vld [vmem:[#allocation9 + $0x40] sm:$0xff]
    %v123 = vld [vmem:[#allocation9 + $0x48] sm:$0xff]
    %v124 = vld [vmem:[#allocation9 + $0x50] sm:$0xff]
    %v125 = vld [vmem:[#allocation9 + $0x58] sm:$0xff]
    %v126 = vld [vmem:[#allocation9 + $0x60] sm:$0xff]
    %v127 = vld [vmem:[#allocation9 + $0x68] sm:$0xff]
    %v128 = vld [vmem:[#allocation9 + $0x70] sm:$0xff]
    %v129 = vld [vmem:[#allocation9 + $0x78] sm:$0xff]
    %v130 = vld [vmem:[#allocation9 + $0x80] sm:$0xff]
    %v131 = vld [vmem:[#allocation9 + $0x88] sm:$0xff]
    %v132 = vld [vmem:[#allocation9 + $0x90] sm:$0xff]
    %v133 = vld [vmem:[#allocation9 + $0x98] sm:$0xff]
    %v134 = vld [vmem:[#allocation9 + $0xa0] sm:$0xff]
    %v135 = vld [vmem:[#allocation9 + $0xa8] sm:$0xff]
    %v136 = vld [vmem:[#allocation9 + $0xb0] sm:$0xff]
    %v137 = vld [vmem:[#allocation9 + $0xb8] sm:$0xff]
    %v138 = vld [vmem:[#allocation9 + $0xc0] sm:$0xff]
    %v139 = vld [vmem:[#allocation9 + $0xc8] sm:$0xff]
    %v140 = vld [vmem:[#allocation9 + $0xd0] sm:$0xff]
    %v141 = vld [vmem:[#allocation9 + $0xd8] sm:$0xff]
    %v142 = vld [vmem:[#allocation9 + $0xe0] sm:$0xff]
    %v143 = vld [vmem:[#allocation9 + $0xe8] sm:$0xff]
    %v144 = vld [vmem:[#allocation9 + $0xf0] sm:$0xff]
    %v145 = vld [vmem:[#allocation9 + $0xf8] sm:$0xff]
    %v146 = vld [vmem:[#allocation9 + $0x100] sm:$0xff]
    %v147 = vld [vmem:[#allocation9 + $0x108] sm:$0xff]
    %v148 = vld [vmem:[#allocation9 + $0x110] sm:$0xff]
    %v149 = vld [vmem:[#allocation9 + $0x118] sm:$0xff]
    %v150 = vld [vmem:[#allocation9 + $0x120] sm:$0xff]
    %v151 = vld [vmem:[#allocation9 + $0x128] sm:$0xff]
    %v152 = vld [vmem:[#allocation9 + $0x130] sm:$0xff]
    %v153 = vld [vmem:[#allocation9 + $0x138] sm:$0xff]
    %v154 = vld [vmem:[#allocation9 + $0x140] sm:$0xff]
    %v155 = vld [vmem:[#allocation9 + $0x148] sm:$0xff]
    %v156 = vld [vmem:[#allocation9 + $0x150] sm:$0xff]
    %v157 = vld [vmem:[#allocation9 + $0x158] sm:$0xff]
    %v158 = vld [vmem:[#allocation9 + $0x160] sm:$0xff]
    %v159 = vld [vmem:[#allocation9 + $0x168] sm:$0xff]
    %v160 = vld [vmem:[#allocation9 + $0x170] sm:$0xff]
    %v161 = vld [vmem:[#allocation9 + $0x178] sm:$0xff]
    %v162 = vld [vmem:[#allocation9 + $0x180] sm:$0xff]
    %v163 = vld [vmem:[#allocation9 + $0x188] sm:$0xff]
    %v164 = vld [vmem:[#allocation9 + $0x190] sm:$0xff]
    %v165 = vld [vmem:[#allocation9 + $0x198] sm:$0xff]
    %v166 = vld [vmem:[#allocation9 + $0x1a0] sm:$0xff]
    %v167 = vld [vmem:[#allocation9 + $0x1a8] sm:$0xff]
    %v168 = vld [vmem:[#allocation9 + $0x1b0] sm:$0xff]
    %v169 = vld [vmem:[#allocation9 + $0x1b8] sm:$0xff]
    %v170 = vld [vmem:[#allocation9 + $0x1c0] sm:$0xff]
    %v171 = vld [vmem:[#allocation9 + $0x1c8] sm:$0xff]
    %v172 = vld [vmem:[#allocation9 + $0x1d0] sm:$0xff]
    %v173 = vld [vmem:[#allocation9 + $0x1d8] sm:$0xff]
    %v174 = vld [vmem:[#allocation9 + $0x1e0] sm:$0xff]
    %v175 = vld [vmem:[#allocation9 + $0x1e8] sm:$0xff]
    %v176 = vld [vmem:[#allocation9 + $0x1f0] sm:$0xff]
    %v177 = vld [vmem:[#allocation9 + $0x1f8] sm:$0xff]
    %v178 = vpack.c.bf16 %v118, %v114
    %v179 = vpack.c.bf16 %v119, %v115
    %v180 = vpack.c.bf16 %v120, %v116
    %v181 = vpack.c.bf16 %v121, %v117
    %v182 = vpack.c.bf16 %v126, %v122
    %v183 = vpack.c.bf16 %v127, %v123
    %v184 = vpack.c.bf16 %v128, %v124
    %v185 = vpack.c.bf16 %v129, %v125
    %v186 = vpack.c.bf16 %v134, %v130
    %v187 = vpack.c.bf16 %v135, %v131
    %v188 = vpack.c.bf16 %v136, %v132
    %v189 = vpack.c.bf16 %v137, %v133
    %v190 = vpack.c.bf16 %v142, %v138
    %v191 = vpack.c.bf16 %v143, %v139
    %v192 = vpack.c.bf16 %v144, %v140
    %v193 = vpack.c.bf16 %v145, %v141
    %v194 = vpack.c.bf16 %v150, %v146
    %v195 = vpack.c.bf16 %v151, %v147
    %v196 = vpack.c.bf16 %v152, %v148
    %v197 = vpack.c.bf16 %v153, %v149
    %v198 = vpack.c.bf16 %v158, %v154
    %v199 = vpack.c.bf16 %v159, %v155
    %v200 = vpack.c.bf16 %v160, %v156
    %v201 = vpack.c.bf16 %v161, %v157
    %v202 = vpack.c.bf16 %v166, %v162
    %v203 = vpack.c.bf16 %v167, %v163
    %v204 = vpack.c.bf16 %v168, %v164
    %v205 = vpack.c.bf16 %v169, %v165
    %v206 = vpack.c.bf16 %v174, %v170
    %v207 = vpack.c.bf16 %v175, %v171
    %v208 = vpack.c.bf16 %v176, %v172
    %v209 = vpack.c.bf16 %v177, %v173
    %v210 = vld [vmem:[#allocation10] sm:$0xff]
    %v211 = vld [vmem:[#allocation10 + $0x8] sm:$0xff]
    %v212 = vld [vmem:[#allocation10 + $0x10] sm:$0xff]
    %v213 = vld [vmem:[#allocation10 + $0x18] sm:$0xff]
    %v214 = vld [vmem:[#allocation10 + $0x20] sm:$0xff]
    %v215 = vld [vmem:[#allocation10 + $0x28] sm:$0xff]
    %v216 = vld [vmem:[#allocation10 + $0x30] sm:$0xff]
    %v217 = vld [vmem:[#allocation10 + $0x38] sm:$0xff]
    %v218 = vld [vmem:[#allocation10 + $0x40] sm:$0xff]
    %v219 = vld [vmem:[#allocation10 + $0x48] sm:$0xff]
    %v220 = vld [vmem:[#allocation10 + $0x50] sm:$0xff]
    %v221 = vld [vmem:[#allocation10 + $0x58] sm:$0xff]
    %v222 = vld [vmem:[#allocation10 + $0x60] sm:$0xff]
    %v223 = vld [vmem:[#allocation10 + $0x68] sm:$0xff]
    %v224 = vld [vmem:[#allocation10 + $0x70] sm:$0xff]
    %v225 = vld [vmem:[#allocation10 + $0x78] sm:$0xff]
    %v226 = vld [vmem:[#allocation10 + $0x80] sm:$0xff]
    %v227 = vld [vmem:[#allocation10 + $0x88] sm:$0xff]
    %v228 = vld [vmem:[#allocation10 + $0x90] sm:$0xff]
    %v229 = vld [vmem:[#allocation10 + $0x98] sm:$0xff]
    %v230 = vld [vmem:[#allocation10 + $0xa0] sm:$0xff]
    %v231 = vld [vmem:[#allocation10 + $0xa8] sm:$0xff]
    %v232 = vld [vmem:[#allocation10 + $0xb0] sm:$0xff]
    %v233 = vld [vmem:[#allocation10 + $0xb8] sm:$0xff]
    %v234 = vld [vmem:[#allocation10 + $0xc0] sm:$0xff]
    %v235 = vld [vmem:[#allocation10 + $0xc8] sm:$0xff]
    %v236 = vld [vmem:[#allocation10 + $0xd0] sm:$0xff]
    %v237 = vld [vmem:[#allocation10 + $0xd8] sm:$0xff]
    %v238 = vld [vmem:[#allocation10 + $0xe0] sm:$0xff]
    %v239 = vld [vmem:[#allocation10 + $0xe8] sm:$0xff]
    %v240 = vld [vmem:[#allocation10 + $0xf0] sm:$0xff]
    %v241 = vld [vmem:[#allocation10 + $0xf8] sm:$0xff]
    %v242 = vld [vmem:[#allocation10 + $0x100] sm:$0xff]
    %v243 = vld [vmem:[#allocation10 + $0x108] sm:$0xff]
    %v244 = vld [vmem:[#allocation10 + $0x110] sm:$0xff]
    %v245 = vld [vmem:[#allocation10 + $0x118] sm:$0xff]
    %v246 = vld [vmem:[#allocation10 + $0x120] sm:$0xff]
    %v247 = vld [vmem:[#allocation10 + $0x128] sm:$0xff]
    %v248 = vld [vmem:[#allocation10 + $0x130] sm:$0xff]
    %v249 = vld [vmem:[#allocation10 + $0x138] sm:$0xff]
    %v250 = vld [vmem:[#allocation10 + $0x140] sm:$0xff]
    %v251 = vld [vmem:[#allocation10 + $0x148] sm:$0xff]
    %v252 = vld [vmem:[#allocation10 + $0x150] sm:$0xff]
    %v253 = vld [vmem:[#allocation10 + $0x158] sm:$0xff]
    %v254 = vld [vmem:[#allocation10 + $0x160] sm:$0xff]
    %v255 = vld [vmem:[#allocation10 + $0x168] sm:$0xff]
    %v256 = vld [vmem:[#allocation10 + $0x170] sm:$0xff]
    %v257 = vld [vmem:[#allocation10 + $0x178] sm:$0xff]
    %v258 = vld [vmem:[#allocation10 + $0x180] sm:$0xff]
    %v259 = vld [vmem:[#allocation10 + $0x188] sm:$0xff]
    %v260 = vld [vmem:[#allocation10 + $0x190] sm:$0xff]
    %v261 = vld [vmem:[#allocation10 + $0x198] sm:$0xff]
    %v262 = vld [vmem:[#allocation10 + $0x1a0] sm:$0xff]
    %v263 = vld [vmem:[#allocation10 + $0x1a8] sm:$0xff]
    %v264 = vld [vmem:[#allocation10 + $0x1b0] sm:$0xff]
    %v265 = vld [vmem:[#allocation10 + $0x1b8] sm:$0xff]
    %v266 = vld [vmem:[#allocation10 + $0x1c0] sm:$0xff]
    %v267 = vld [vmem:[#allocation10 + $0x1c8] sm:$0xff]
    %v268 = vld [vmem:[#allocation10 + $0x1d0] sm:$0xff]
    %v269 = vld [vmem:[#allocation10 + $0x1d8] sm:$0xff]
    %v270 = vld [vmem:[#allocation10 + $0x1e0] sm:$0xff]
    %v271 = vld [vmem:[#allocation10 + $0x1e8] sm:$0xff]
    %v272 = vld [vmem:[#allocation10 + $0x1f0] sm:$0xff]
    %v273 = vld [vmem:[#allocation10 + $0x1f8] sm:$0xff]
    %v274 = vpack.c.bf16 %v214, %v210
    %v275 = vpack.c.bf16 %v215, %v211
    %v276 = vpack.c.bf16 %v216, %v212
    %v277 = vpack.c.bf16 %v217, %v213
    %v278 = vpack.c.bf16 %v222, %v218
    %v279 = vpack.c.bf16 %v223, %v219
    %v280 = vpack.c.bf16 %v224, %v220
    %v281 = vpack.c.bf16 %v225, %v221
    %v282 = vpack.c.bf16 %v230, %v226
    %v283 = vpack.c.bf16 %v231, %v227
    %v284 = vpack.c.bf16 %v232, %v228
    %v285 = vpack.c.bf16 %v233, %v229
    %v286 = vpack.c.bf16 %v238, %v234
    %v287 = vpack.c.bf16 %v239, %v235
    %v288 = vpack.c.bf16 %v240, %v236
    %v289 = vpack.c.bf16 %v241, %v237
    %v290 = vpack.c.bf16 %v246, %v242
    %v291 = vpack.c.bf16 %v247, %v243
    %v292 = vpack.c.bf16 %v248, %v244
    %v293 = vpack.c.bf16 %v249, %v245
    %v294 = vpack.c.bf16 %v254, %v250
    %v295 = vpack.c.bf16 %v255, %v251
    %v296 = vpack.c.bf16 %v256, %v252
    %v297 = vpack.c.bf16 %v257, %v253
    %v298 = vpack.c.bf16 %v262, %v258
    %v299 = vpack.c.bf16 %v263, %v259
    %v300 = vpack.c.bf16 %v264, %v260
    %v301 = vpack.c.bf16 %v265, %v261
    %v302 = vpack.c.bf16 %v270, %v266
    %v303 = vpack.c.bf16 %v271, %v267
    %v304 = vpack.c.bf16 %v272, %v268
    %v305 = vpack.c.bf16 %v273, %v269
    %v306 = vld [vmem:[#allocation12] sm:$0xff]
    %v307 = vld [vmem:[#allocation12 + $0x8] sm:$0xff]
    %v308 = vld [vmem:[#allocation12 + $0x10] sm:$0xff]
    %v309 = vld [vmem:[#allocation12 + $0x18] sm:$0xff]
    %v310 = vld [vmem:[#allocation12 + $0x20] sm:$0xff]
    %v311 = vld [vmem:[#allocation12 + $0x28] sm:$0xff]
    %v312 = vld [vmem:[#allocation12 + $0x30] sm:$0xff]
    %v313 = vld [vmem:[#allocation12 + $0x38] sm:$0xff]
    %v314 = vld [vmem:[#allocation12 + $0x40] sm:$0xff]
    %v315 = vld [vmem:[#allocation12 + $0x48] sm:$0xff]
    %v316 = vld [vmem:[#allocation12 + $0x50] sm:$0xff]
    %v317 = vld [vmem:[#allocation12 + $0x58] sm:$0xff]
    %v318 = vld [vmem:[#allocation12 + $0x60] sm:$0xff]
    %v319 = vld [vmem:[#allocation12 + $0x68] sm:$0xff]
    %v320 = vld [vmem:[#allocation12 + $0x70] sm:$0xff]
    %v321 = vld [vmem:[#allocation12 + $0x78] sm:$0xff]
    %v322 = vld [vmem:[#allocation12 + $0x80] sm:$0xff]
    %v323 = vld [vmem:[#allocation12 + $0x88] sm:$0xff]
    %v324 = vld [vmem:[#allocation12 + $0x90] sm:$0xff]
    %v325 = vld [vmem:[#allocation12 + $0x98] sm:$0xff]
    %v326 = vld [vmem:[#allocation12 + $0xa0] sm:$0xff]
    %v327 = vld [vmem:[#allocation12 + $0xa8] sm:$0xff]
    %v328 = vld [vmem:[#allocation12 + $0xb0] sm:$0xff]
    %v329 = vld [vmem:[#allocation12 + $0xb8] sm:$0xff]
    %v330 = vld [vmem:[#allocation12 + $0xc0] sm:$0xff]
    %v331 = vld [vmem:[#allocation12 + $0xc8] sm:$0xff]
    %v332 = vld [vmem:[#allocation12 + $0xd0] sm:$0xff]
    %v333 = vld [vmem:[#allocation12 + $0xd8] sm:$0xff]
    %v334 = vld [vmem:[#allocation12 + $0xe0] sm:$0xff]
    %v335 = vld [vmem:[#allocation12 + $0xe8] sm:$0xff]
    %v336 = vld [vmem:[#allocation12 + $0xf0] sm:$0xff]
    %v337 = vld [vmem:[#allocation12 + $0xf8] sm:$0xff]
    %v338 = vld [vmem:[#allocation12 + $0x100] sm:$0xff]
    %v339 = vld [vmem:[#allocation12 + $0x108] sm:$0xff]
    %v340 = vld [vmem:[#allocation12 + $0x110] sm:$0xff]
    %v341 = vld [vmem:[#allocation12 + $0x118] sm:$0xff]
    %v342 = vld [vmem:[#allocation12 + $0x120] sm:$0xff]
    %v343 = vld [vmem:[#allocation12 + $0x128] sm:$0xff]
    %v344 = vld [vmem:[#allocation12 + $0x130] sm:$0xff]
    %v345 = vld [vmem:[#allocation12 + $0x138] sm:$0xff]
    %v346 = vld [vmem:[#allocation12 + $0x140] sm:$0xff]
    %v347 = vld [vmem:[#allocation12 + $0x148] sm:$0xff]
    %v348 = vld [vmem:[#allocation12 + $0x150] sm:$0xff]
    %v349 = vld [vmem:[#allocation12 + $0x158] sm:$0xff]
    %v350 = vld [vmem:[#allocation12 + $0x160] sm:$0xff]
    %v351 = vld [vmem:[#allocation12 + $0x168] sm:$0xff]
    %v352 = vld [vmem:[#allocation12 + $0x170] sm:$0xff]
    %v353 = vld [vmem:[#allocation12 + $0x178] sm:$0xff]
    %v354 = vld [vmem:[#allocation12 + $0x180] sm:$0xff]
    %v355 = vld [vmem:[#allocation12 + $0x188] sm:$0xff]
    %v356 = vld [vmem:[#allocation12 + $0x190] sm:$0xff]
    %v357 = vld [vmem:[#allocation12 + $0x198] sm:$0xff]
    %v358 = vld [vmem:[#allocation12 + $0x1a0] sm:$0xff]
    %v359 = vld [vmem:[#allocation12 + $0x1a8] sm:$0xff]
    %v360 = vld [vmem:[#allocation12 + $0x1b0] sm:$0xff]
    %v361 = vld [vmem:[#allocation12 + $0x1b8] sm:$0xff]
    %v362 = vld [vmem:[#allocation12 + $0x1c0] sm:$0xff]
    %v363 = vld [vmem:[#allocation12 + $0x1c8] sm:$0xff]
    %v364 = vld [vmem:[#allocation12 + $0x1d0] sm:$0xff]
    %v365 = vld [vmem:[#allocation12 + $0x1d8] sm:$0xff]
    %v366 = vld [vmem:[#allocation12 + $0x1e0] sm:$0xff]
    %v367 = vld [vmem:[#allocation12 + $0x1e8] sm:$0xff]
    %v368 = vld [vmem:[#allocation12 + $0x1f0] sm:$0xff]
    %v369 = vld [vmem:[#allocation12 + $0x1f8] sm:$0xff]
    %v370 = vpack.c.bf16 %v310, %v306
    %v371 = vpack.c.bf16 %v311, %v307
    %v372 = vpack.c.bf16 %v312, %v308
    %v373 = vpack.c.bf16 %v313, %v309
    %v374 = vpack.c.bf16 %v318, %v314
    %v375 = vpack.c.bf16 %v319, %v315
    %v376 = vpack.c.bf16 %v320, %v316
    %v377 = vpack.c.bf16 %v321, %v317
    %v378 = vpack.c.bf16 %v326, %v322
    %v379 = vpack.c.bf16 %v327, %v323
    %v380 = vpack.c.bf16 %v328, %v324
    %v381 = vpack.c.bf16 %v329, %v325
    %v382 = vpack.c.bf16 %v334, %v330
    %v383 = vpack.c.bf16 %v335, %v331
    %v384 = vpack.c.bf16 %v336, %v332
    %v385 = vpack.c.bf16 %v337, %v333
    %v386 = vpack.c.bf16 %v342, %v338
    %v387 = vpack.c.bf16 %v343, %v339
    %v388 = vpack.c.bf16 %v344, %v340
    %v389 = vpack.c.bf16 %v345, %v341
    %v390 = vpack.c.bf16 %v350, %v346
    %v391 = vpack.c.bf16 %v351, %v347
    %v392 = vpack.c.bf16 %v352, %v348
    %v393 = vpack.c.bf16 %v353, %v349
    %v394 = vpack.c.bf16 %v358, %v354
    %v395 = vpack.c.bf16 %v359, %v355
    %v396 = vpack.c.bf16 %v360, %v356
    %v397 = vpack.c.bf16 %v361, %v357
    %v398 = vpack.c.bf16 %v366, %v362
    %v399 = vpack.c.bf16 %v367, %v363
    %v400 = vpack.c.bf16 %v368, %v364
    %v401 = vpack.c.bf16 %v369, %v365
    %v402 = vld [vmem:[%s6] sm:$0xf]
    %v403 = vld [vmem:[#allocation4] sm:$0xff]
    %v404 = vld [vmem:[#allocation7] sm:$0xff]
    %v405 = vld [vmem:[#allocation7 + $0x8] sm:$0xff]
    %v406 = vld [vmem:[#allocation7 + $0x10] sm:$0xff]
    %v407 = vld [vmem:[#allocation7 + $0x18] sm:$0xff]
    %v408 = vld [vmem:[#allocation7 + $0x20] sm:$0xff]
    %v409 = vld [vmem:[#allocation7 + $0x28] sm:$0xff]
    %v410 = vld [vmem:[#allocation7 + $0x30] sm:$0xff]
    %v411 = vld [vmem:[#allocation7 + $0x38] sm:$0xff]
    %v412 = vld [vmem:[%s3] sm:$0xf]
    %v414 = vlaneseq
    %v415 = vshrl.u32 %v414, 7
    %v416 = vsub.s32 0, %v415
    %v417 = vrot.slane %v412, %v416
    %v418 = vlaneseq
    %v419 = vshrl.u32 %v418, 7
    %v420 = vsub.s32 1, %v419
    %v421 = vrot.slane %v412, %v420
    %v422 = vlaneseq
    %v423 = vshrl.u32 %v422, 7
    %v424 = vsub.s32 2, %v423
    %v425 = vrot.slane %v412, %v424
    %v426 = vlaneseq
    %v427 = vshrl.u32 %v426, 7
    %v428 = vsub.s32 3, %v427
    %v429 = vrot.slane %v412, %v428
    %vm434 = vcmask 130048
    %v436 = vsel %vm434, %v403, 0
    %438 = vmatprep.subr.mxu0 %v405
    %439 = vmatpush1.msra.mxu0 %v404
    %440 = vmatprep.subr.mxu0 %v409
    %441 = vmatpush1.msra.mxu0 %v408
    %442 = vmatprep.subr.mxu0 0.0
    %443 = vmatpush1.msra.mxu0 0.0
    %444 = vmatprep.subr.mxu0 0.0
    %445 = vmatpush1.msra.mxu0 0.0
    %446 = vmatprep.subr.mxu0 0.0
    %447 = vmatpush1.msra.mxu0 0.0
    %448 = vmatprep.subr.mxu0 0.0
    %449 = vmatpush1.msra.mxu0 0.0
    %450 = vmatprep.subr.mxu0 0.0
    %451 = vmatpush1.msra.mxu0 0.0
    %452 = vmatprep.subr.mxu0 0.0
    %453 = vmatpush1.msra.mxu0 0.0
    %454 = vmatprep.subr.mxu0 0.0
    %455 = vmatpush1.msra.mxu0 0.0
    %456 = vmatprep.subr.mxu0 0.0
    %457 = vmatpush1.msra.mxu0 0.0
    %458 = vmatprep.subr.mxu0 0.0
    %459 = vmatpush1.msra.mxu0 0.0
    %460 = vmatprep.subr.mxu0 0.0
    %461 = vmatpush1.msra.mxu0 0.0
    %462 = vmatprep.subr.mxu0 0.0
    %463 = vmatpush1.msra.mxu0 0.0
    %464 = vmatprep.subr.mxu0 0.0
    %465 = vmatpush1.msra.mxu0 0.0
    %466 = vmatprep.subr.mxu0 0.0
    %467 = vmatpush1.msra.mxu0 0.0
    %468 = vmatprep.subr.mxu0 0.0
    %469 = vmatpush1.msra.mxu0 0.0
    %470 = vmatprep.subr.mxu0 0.0
    %471 = vmatpush1.msra.mxu0 0.0
    %472 = vmatprep.subr.mxu0 0.0
    %473 = vmatpush1.msra.mxu0 0.0
    %474 = vmatprep.subr.mxu0 0.0
    %475 = vmatpush1.msra.mxu0 0.0
    %476 = vmatprep.subr.mxu0 0.0
    %477 = vmatpush1.msra.mxu0 0.0
    %478 = vmatprep.subr.mxu0 0.0
    %479 = vmatpush1.msra.mxu0 0.0
    %480 = vmatprep.subr.mxu0 0.0
    %481 = vmatpush1.msra.mxu0 0.0
    %482 = vmatprep.subr.mxu0 0.0
    %483 = vmatpush1.msra.mxu0 0.0
    %484 = vmatprep.subr.mxu0 0.0
    %485 = vmatpush1.msra.mxu0 0.0
    %486 = vmatprep.subr.mxu0 0.0
    %487 = vmatpush1.msra.mxu0 0.0
    %488 = vmatprep.subr.mxu0 0.0
    %489 = vmatpush1.msra.mxu0 0.0
    %490 = vmatprep.subr.mxu0 0.0
    %491 = vmatpush1.msra.mxu0 0.0
    %492 = vmatprep.subr.mxu0 0.0
    %493 = vmatpush1.msra.mxu0 0.0
    %494 = vmatprep.subr.mxu0 0.0
    %495 = vmatpush1.msra.mxu0 0.0
    %496 = vmatprep.subr.mxu0 0.0
    %497 = vmatpush1.msra.mxu0 0.0
    %498 = vmatprep.subr.mxu0 0.0
    %499 = vmatpush1.msra.mxu0 0.0
    %500 = vmatprep.subr.mxu0 0.0
    %501 = vmatpush1.msra.mxu0 0.0
    %502 = vmatprep.mubr.f32.mxu0 0.0
    %503 = vmatmul.mubr.f32.gmra.mrb[0].mxu0 %v436
    %v504 = vpop.f32.mrb[0].mxu0
    %v505 = vadd.f32 %v417, %v504
    %v506 = vpop.f32.mrb[0].mxu0
    %v507 = vadd.f32 %v421, %v506
    %508 = vdwg.mxu0
    %509 = vmatprep.subr.mxu0 %v407
    %510 = vmatpush1.msra.mxu0 %v406
    %511 = vmatprep.subr.mxu0 %v411
    %512 = vmatpush1.msra.mxu0 %v410
    %513 = vmatprep.subr.mxu0 0.0
    %514 = vmatpush1.msra.mxu0 0.0
    %515 = vmatprep.subr.mxu0 0.0
    %516 = vmatpush1.msra.mxu0 0.0
    %517 = vmatprep.subr.mxu0 0.0
    %518 = vmatpush1.msra.mxu0 0.0
    %519 = vmatprep.subr.mxu0 0.0
    %520 = vmatpush1.msra.mxu0 0.0
    %521 = vmatprep.subr.mxu0 0.0
    %522 = vmatpush1.msra.mxu0 0.0
    %523 = vmatprep.subr.mxu0 0.0
    %524 = vmatpush1.msra.mxu0 0.0
    %525 = vmatprep.subr.mxu0 0.0
    %526 = vmatpush1.msra.mxu0 0.0
    %527 = vmatprep.subr.mxu0 0.0
    %528 = vmatpush1.msra.mxu0 0.0
    %529 = vmatprep.subr.mxu0 0.0
    %530 = vmatpush1.msra.mxu0 0.0
    %531 = vmatprep.subr.mxu0 0.0
    %532 = vmatpush1.msra.mxu0 0.0
    %533 = vmatprep.subr.mxu0 0.0
    %534 = vmatpush1.msra.mxu0 0.0
    %535 = vmatprep.subr.mxu0 0.0
    %536 = vmatpush1.msra.mxu0 0.0
    %537 = vmatprep.subr.mxu0 0.0
    %538 = vmatpush1.msra.mxu0 0.0
    %539 = vmatprep.subr.mxu0 0.0
    %540 = vmatpush1.msra.mxu0 0.0
    %541 = vmatprep.subr.mxu0 0.0
    %542 = vmatpush1.msra.mxu0 0.0
    %543 = vmatprep.subr.mxu0 0.0
    %544 = vmatpush1.msra.mxu0 0.0
    %545 = vmatprep.subr.mxu0 0.0
    %546 = vmatpush1.msra.mxu0 0.0
    %547 = vmatprep.subr.mxu0 0.0
    %548 = vmatpush1.msra.mxu0 0.0
    %549 = vmatprep.subr.mxu0 0.0
    %550 = vmatpush1.msra.mxu0 0.0
    %551 = vmatprep.subr.mxu0 0.0
    %552 = vmatpush1.msra.mxu0 0.0
    %553 = vmatprep.subr.mxu0 0.0
    %554 = vmatpush1.msra.mxu0 0.0
    %555 = vmatprep.subr.mxu0 0.0
    %556 = vmatpush1.msra.mxu0 0.0
    %557 = vmatprep.subr.mxu0 0.0
    %558 = vmatpush1.msra.mxu0 0.0
    %559 = vmatprep.subr.mxu0 0.0
    %560 = vmatpush1.msra.mxu0 0.0
    %561 = vmatprep.subr.mxu0 0.0
    %562 = vmatpush1.msra.mxu0 0.0
    %563 = vmatprep.subr.mxu0 0.0
    %564 = vmatpush1.msra.mxu0 0.0
    %565 = vmatprep.subr.mxu0 0.0
    %566 = vmatpush1.msra.mxu0 0.0
    %567 = vmatprep.subr.mxu0 0.0
    %568 = vmatpush1.msra.mxu0 0.0
    %569 = vmatprep.subr.mxu0 0.0
    %570 = vmatpush1.msra.mxu0 0.0
    %571 = vmatprep.subr.mxu0 0.0
    %572 = vmatpush1.msra.mxu0 0.0
    %573 = vmatprep.mubr.f32.mxu0 0.0
    %574 = vmatmul.mubr.f32.gmra.mrb[0].mxu0 %v436
    %v575 = vpop.f32.mrb[0].mxu0
    %v576 = vadd.f32 %v425, %v575
    %v577 = vpop.f32.mrb[0].mxu0
    %v578 = vadd.f32 %v429, %v577
    %579 = vdwg.mxu0
    %580 = vst [vmem:[#allocation2] sm:$0xff] %v505
    %581 = vst [vmem:[#allocation2 + $0x8] sm:$0xff] %v507
    %582 = vst [vmem:[#allocation2 + $0x10] sm:$0xff] %v576
    %583 = vst [vmem:[#allocation2 + $0x18] sm:$0xff] %v578
    %v585 = vlaneseq
    %v586 = vshrl.u32 %v585, 7
    %v587 = vsub.s32 0, %v586
    %v588 = vrot.slane %v402, %v587
    %v589 = vlaneseq
    %v590 = vshrl.u32 %v589, 7
    %v591 = vsub.s32 1, %v590
    %v592 = vrot.slane %v402, %v591
    %v593 = vlaneseq
    %v594 = vshrl.u32 %v593, 7
    %v595 = vsub.s32 2, %v594
    %v596 = vrot.slane %v402, %v595
    %v597 = vlaneseq
    %v598 = vshrl.u32 %v597, 7
    %v599 = vsub.s32 3, %v598
    %v600 = vrot.slane %v402, %v599
    %605 = vmatprep.subr.bf16.mxu0 %v371
    %606 = vmatpush1.bf16.msra.mxu0 %v370
    %607 = vmatprep.subr.bf16.mxu0 %v375
    %608 = vmatpush1.bf16.msra.mxu0 %v374
    %609 = vmatprep.subr.bf16.mxu0 %v379
    %610 = vmatpush1.bf16.msra.mxu0 %v378
    %611 = vmatprep.subr.bf16.mxu0 %v383
    %612 = vmatpush1.bf16.msra.mxu0 %v382
    %613 = vmatprep.subr.bf16.mxu0 %v387
    %614 = vmatpush1.bf16.msra.mxu0 %v386
    %615 = vmatprep.subr.bf16.mxu0 %v391
    %616 = vmatpush1.bf16.msra.mxu0 %v390
    %617 = vmatprep.subr.bf16.mxu0 %v395
    %618 = vmatpush1.bf16.msra.mxu0 %v394
    %619 = vmatprep.subr.bf16.mxu0 %v399
    %620 = vmatpush1.bf16.msra.mxu0 %v398
    %621 = vmatprep.subr.bf16.mxu0 0
    %622 = vmatpush1.bf16.msra.mxu0 0
    %623 = vmatprep.subr.bf16.mxu0 0
    %624 = vmatpush1.bf16.msra.mxu0 0
    %625 = vmatprep.subr.bf16.mxu0 0
    %626 = vmatpush1.bf16.msra.mxu0 0
    %627 = vmatprep.subr.bf16.mxu0 0
    %628 = vmatpush1.bf16.msra.mxu0 0
    %629 = vmatprep.subr.bf16.mxu0 0
    %630 = vmatpush1.bf16.msra.mxu0 0
    %631 = vmatprep.subr.bf16.mxu0 0
    %632 = vmatpush1.bf16.msra.mxu0 0
    %633 = vmatprep.subr.bf16.mxu0 0
    %634 = vmatpush1.bf16.msra.mxu0 0
    %635 = vmatprep.subr.bf16.mxu0 0
    %636 = vmatpush1.bf16.msra.mxu0 0
    %637 = vmatprep.mubr.bf16.mxu0 0
    %638 = vmatmul.mubr.bf16.gmra.mrb[0].mxu0 0
    %v639 = vpop.f32.mrb[0].mxu0
    %v640 = vadd.f32 %v588, %v639
    %v641 = vpop.f32.mrb[0].mxu0
    %v642 = vadd.f32 %v592, %v641
    %v643 = vpop.f32.mrb[0].mxu0
    %v644 = vpop.f32.mrb[0].mxu0
    %645 = vdwg.mxu0
    %646 = vmatprep.subr.bf16.mxu0 %v373
    %647 = vmatpush1.bf16.msra.mxu0 %v372
    %648 = vmatprep.subr.bf16.mxu0 %v377
    %649 = vmatpush1.bf16.msra.mxu0 %v376
    %650 = vmatprep.subr.bf16.mxu0 %v381
    %651 = vmatpush1.bf16.msra.mxu0 %v380
    %652 = vmatprep.subr.bf16.mxu0 %v385
    %653 = vmatpush1.bf16.msra.mxu0 %v384
    %654 = vmatprep.subr.bf16.mxu0 %v389
    %655 = vmatpush1.bf16.msra.mxu0 %v388
    %656 = vmatprep.subr.bf16.mxu0 %v393
    %657 = vmatpush1.bf16.msra.mxu0 %v392
    %658 = vmatprep.subr.bf16.mxu0 %v397
    %659 = vmatpush1.bf16.msra.mxu0 %v396
    %660 = vmatprep.subr.bf16.mxu0 %v401
    %661 = vmatpush1.bf16.msra.mxu0 %v400
    %662 = vmatprep.subr.bf16.mxu0 0
    %663 = vmatpush1.bf16.msra.mxu0 0
    %664 = vmatprep.subr.bf16.mxu0 0
    %665 = vmatpush1.bf16.msra.mxu0 0
    %666 = vmatprep.subr.bf16.mxu0 0
    %667 = vmatpush1.bf16.msra.mxu0 0
    %668 = vmatprep.subr.bf16.mxu0 0
    %669 = vmatpush1.bf16.msra.mxu0 0
    %670 = vmatprep.subr.bf16.mxu0 0
    %671 = vmatpush1.bf16.msra.mxu0 0
    %672 = vmatprep.subr.bf16.mxu0 0
    %673 = vmatpush1.bf16.msra.mxu0 0
    %674 = vmatprep.subr.bf16.mxu0 0
    %675 = vmatpush1.bf16.msra.mxu0 0
    %676 = vmatprep.subr.bf16.mxu0 0
    %677 = vmatpush1.bf16.msra.mxu0 0
    %678 = vmatprep.mubr.bf16.mxu0 0
    %679 = vmatmul.mubr.bf16.gmra.mrb[0].mxu0 0
    %v680 = vpop.f32.mrb[0].mxu0
    %v681 = vadd.f32 %v596, %v680
    %v682 = vpop.f32.mrb[0].mxu0
    %v683 = vadd.f32 %v600, %v682
    %v684 = vpop.f32.mrb[0].mxu0
    %v685 = vpop.f32.mrb[0].mxu0
    %686 = vdwg.mxu0
    %v687 = vld [vmem:[#allocation2] ss:$8 sm:$0xf]
    %688 = vmatprep.subr.bf16.mxu0 %v179
    %689 = vmatpush1.bf16.msra.mxu0 %v178
    %690 = vmatprep.subr.bf16.mxu0 %v183
    %691 = vmatpush1.bf16.msra.mxu0 %v182
    %692 = vmatprep.subr.bf16.mxu0 %v187
    %693 = vmatpush1.bf16.msra.mxu0 %v186
    %694 = vmatprep.subr.bf16.mxu0 %v191
    %695 = vmatpush1.bf16.msra.mxu0 %v190
    %696 = vmatprep.subr.bf16.mxu0 %v195
    %697 = vmatpush1.bf16.msra.mxu0 %v194
    %698 = vmatprep.subr.bf16.mxu0 %v199
    %699 = vmatpush1.bf16.msra.mxu0 %v198
    %700 = vmatprep.subr.bf16.mxu0 %v203
    %701 = vmatpush1.bf16.msra.mxu0 %v202
    %702 = vmatprep.subr.bf16.mxu0 %v207
    %703 = vmatpush1.bf16.msra.mxu0 %v206
    %704 = vmatprep.subr.bf16.mxu0 0
    %705 = vmatpush1.bf16.msra.mxu0 0
    %706 = vmatprep.subr.bf16.mxu0 0
    %707 = vmatpush1.bf16.msra.mxu0 0
    %708 = vmatprep.subr.bf16.mxu0 0
    %709 = vmatpush1.bf16.msra.mxu0 0
    %710 = vmatprep.subr.bf16.mxu0 0
    %711 = vmatpush1.bf16.msra.mxu0 0
    %712 = vmatprep.subr.bf16.mxu0 0
    %713 = vmatpush1.bf16.msra.mxu0 0
    %714 = vmatprep.subr.bf16.mxu0 0
    %715 = vmatpush1.bf16.msra.mxu0 0
    %716 = vmatprep.subr.bf16.mxu0 0
    %717 = vmatpush1.bf16.msra.mxu0 0
    %718 = vmatprep.subr.bf16.mxu0 0
    %719 = vmatpush1.bf16.msra.mxu0 0
    %720 = vmatprep.mubr.bf16.mxu0 0
    %721 = vmatmul.mubr.bf16.gmra.mrb[0].mxu0 0
    %v722 = vpop.f32.mrb[0].mxu0
    %v723 = vadd.f32 0.0, %v722
    %v724 = vpop.f32.mrb[0].mxu0
    %v725 = vadd.f32 0.0, %v724
    %v726 = vpop.f32.mrb[0].mxu0
    %v727 = vpop.f32.mrb[0].mxu0
    %728 = vdwg.mxu0
    %729 = vmatprep.subr.bf16.mxu0 %v181
    %730 = vmatpush1.bf16.msra.mxu0 %v180
    %731 = vmatprep.subr.bf16.mxu0 %v185
    %732 = vmatpush1.bf16.msra.mxu0 %v184
    %733 = vmatprep.subr.bf16.mxu0 %v189
    %734 = vmatpush1.bf16.msra.mxu0 %v188
    %735 = vmatprep.subr.bf16.mxu0 %v193
    %736 = vmatpush1.bf16.msra.mxu0 %v192
    %737 = vmatprep.subr.bf16.mxu0 %v197
    %738 = vmatpush1.bf16.msra.mxu0 %v196
    %739 = vmatprep.subr.bf16.mxu0 %v201
    %740 = vmatpush1.bf16.msra.mxu0 %v200
    %741 = vmatprep.subr.bf16.mxu0 %v205
    %742 = vmatpush1.bf16.msra.mxu0 %v204
    %743 = vmatprep.subr.bf16.mxu0 %v209
    %744 = vmatpush1.bf16.msra.mxu0 %v208
    %745 = vmatprep.subr.bf16.mxu0 0
    %746 = vmatpush1.bf16.msra.mxu0 0
    %747 = vmatprep.subr.bf16.mxu0 0
    %748 = vmatpush1.bf16.msra.mxu0 0
    %749 = vmatprep.subr.bf16.mxu0 0
    %750 = vmatpush1.bf16.msra.mxu0 0
    %751 = vmatprep.subr.bf16.mxu0 0
    %752 = vmatpush1.bf16.msra.mxu0 0
    %753 = vmatprep.subr.bf16.mxu0 0
    %754 = vmatpush1.bf16.msra.mxu0 0
    %755 = vmatprep.subr.bf16.mxu0 0
    %756 = vmatpush1.bf16.msra.mxu0 0
    %757 = vmatprep.subr.bf16.mxu0 0
    %758 = vmatpush1.bf16.msra.mxu0 0
    %759 = vmatprep.subr.bf16.mxu0 0
    %760 = vmatpush1.bf16.msra.mxu0 0
    %761 = vmatprep.mubr.bf16.mxu0 0
    %762 = vmatmul.mubr.bf16.gmra.mrb[0].mxu0 0
    %v763 = vpop.f32.mrb[0].mxu0
    %v764 = vadd.f32 0.0, %v763
    %v765 = vpop.f32.mrb[0].mxu0
    %v766 = vadd.f32 0.0, %v765
    %v767 = vpop.f32.mrb[0].mxu0
    %v768 = vpop.f32.mrb[0].mxu0
    %769 = vdwg.mxu0
    %v774 = vcombine.low %v723, %v725
    %v775 = vcombine.low %v764, %v766
    %v777 = vunpack.c.l.s4 1966171168
    %v778 = vunpack.c.0.s8 %v777
    %v779 = vlaneseq
    %v780 = vshrl.u32 %v779, 7
    %v781 = vsub.s32 %v778, %v780
    %v782 = vrot.slane %v774, %v781
    %v784 = vunpack.c.l.s4 1966171168
    %v785 = vunpack.c.0.s8 %v784
    %v786 = vlaneseq
    %v787 = vshrl.u32 %v786, 7
    %v788 = vsub.s32 %v785, %v787
    %v789 = vrot.slane %v775, %v788
    %v790 = vcombine.low %v782, %v789
    %v792 = vunpack.c.l.s4 1966171168
    %v793 = vunpack.c.0.s8 %v792
    %v794 = vlaneseq
    %v795 = vshrl.u32 %v794, 7
    %v796 = vsub.s32 %v793, %v795
    %v797 = vrot.slane %v790, %v796
    %v799 = vadd.f32 %v687, %v797
    %v800 = vxor.u32 %v799, 2147483648
    %v801 = vmul.f32 %v800, 1.442695
    %v802 = vpow.pop %v801
    %v803 = vadd.f32 %v802, 1.0
    %v804 = vrcp.pop %v803
    %v805 = vmul.f32 1.0, %v804
    %v807 = vrot.slane %v799, 3
    %v809 = vtanh.pop %v807
    %v811 = vrot.slane %v805, 1
    %v813 = vmul.f32 %v811, 0.0
    %v814 = vmul.f32 %v805, %v809
    %v815 = vadd.f32 %v813, %v814
    %v816 = vtanh.pop %v815
    %v817 = vrot.slane %v805, 2
    %v819 = vmul.f32 %v817, %v816
    %v820 = vpack.c.bf16 %v819, %v819
    %821 = vmatprep.subr.bf16.mxu0 %v275
    %822 = vmatpush1.bf16.msra.mxu0 %v274
    %823 = vmatprep.subr.bf16.mxu0 %v279
    %824 = vmatpush1.bf16.msra.mxu0 %v278
    %825 = vmatprep.subr.bf16.mxu0 %v283
    %826 = vmatpush1.bf16.msra.mxu0 %v282
    %827 = vmatprep.subr.bf16.mxu0 %v287
    %828 = vmatpush1.bf16.msra.mxu0 %v286
    %829 = vmatprep.subr.bf16.mxu0 %v291
    %830 = vmatpush1.bf16.msra.mxu0 %v290
    %831 = vmatprep.subr.bf16.mxu0 %v295
    %832 = vmatpush1.bf16.msra.mxu0 %v294
    %833 = vmatprep.subr.bf16.mxu0 %v299
    %834 = vmatpush1.bf16.msra.mxu0 %v298
    %835 = vmatprep.subr.bf16.mxu0 %v303
    %836 = vmatpush1.bf16.msra.mxu0 %v302
    %837 = vmatprep.subr.bf16.mxu0 0
    %838 = vmatpush1.bf16.msra.mxu0 0
    %839 = vmatprep.subr.bf16.mxu0 0
    %840 = vmatpush1.bf16.msra.mxu0 0
    %841 = vmatprep.subr.bf16.mxu0 0
    %842 = vmatpush1.bf16.msra.mxu0 0
    %843 = vmatprep.subr.bf16.mxu0 0
    %844 = vmatpush1.bf16.msra.mxu0 0
    %845 = vmatprep.subr.bf16.mxu0 0
    %846 = vmatpush1.bf16.msra.mxu0 0
    %847 = vmatprep.subr.bf16.mxu0 0
    %848 = vmatpush1.bf16.msra.mxu0 0
    %849 = vmatprep.subr.bf16.mxu0 0
    %850 = vmatpush1.bf16.msra.mxu0 0
    %851 = vmatprep.subr.bf16.mxu0 0
    %852 = vmatpush1.bf16.msra.mxu0 0
    %853 = vmatprep.mubr.bf16.mxu0 0
    %854 = vmatmul.mubr.bf16.gmra.mrb[0].mxu0 %v820
    %v855 = vpop.f32.mrb[0].mxu0
    %v856 = vadd.f32 0.0, %v855
    %v857 = vpop.f32.mrb[0].mxu0
    %v858 = vadd.f32 0.0, %v857
    %v859 = vpop.f32.mrb[0].mxu0
    %v860 = vpop.f32.mrb[0].mxu0
    %861 = vdwg.mxu0
    %862 = vmatprep.subr.bf16.mxu0 %v277
    %863 = vmatpush1.bf16.msra.mxu0 %v276
    %864 = vmatprep.subr.bf16.mxu0 %v281
    %865 = vmatpush1.bf16.msra.mxu0 %v280
    %866 = vmatprep.subr.bf16.mxu0 %v285
    %867 = vmatpush1.bf16.msra.mxu0 %v284
    %868 = vmatprep.subr.bf16.mxu0 %v289
    %869 = vmatpush1.bf16.msra.mxu0 %v288
    %870 = vmatprep.subr.bf16.mxu0 %v293
    %871 = vmatpush1.bf16.msra.mxu0 %v292
    %872 = vmatprep.subr.bf16.mxu0 %v297
    %873 = vmatpush1.bf16.msra.mxu0 %v296
    %874 = vmatprep.subr.bf16.mxu0 %v301
    %875 = vmatpush1.bf16.msra.mxu0 %v300
    %876 = vmatprep.subr.bf16.mxu0 %v305
    %877 = vmatpush1.bf16.msra.mxu0 %v304
    %878 = vmatprep.subr.bf16.mxu0 0
    %879 = vmatpush1.bf16.msra.mxu0 0
    %880 = vmatprep.subr.bf16.mxu0 0
    %881 = vmatpush1.bf16.msra.mxu0 0
    %882 = vmatprep.subr.bf16.mxu0 0
    %883 = vmatpush1.bf16.msra.mxu0 0
    %884 = vmatprep.subr.bf16.mxu0 0
    %885 = vmatpush1.bf16.msra.mxu0 0
    %886 = vmatprep.subr.bf16.mxu0 0
    %887 = vmatpush1.bf16.msra.mxu0 0
    %888 = vmatprep.subr.bf16.mxu0 0
    %889 = vmatpush1.bf16.msra.mxu0 0
    %890 = vmatprep.subr.bf16.mxu0 0
    %891 = vmatpush1.bf16.msra.mxu0 0
    %892 = vmatprep.subr.bf16.mxu0 0
    %893 = vmatpush1.bf16.msra.mxu0 0
    %894 = vmatprep.mubr.bf16.mxu0 0
    %895 = vmatmul.mubr.bf16.gmra.mrb[0].mxu0 %v820
    %v896 = vpop.f32.mrb[0].mxu0
    %v897 = vadd.f32 0.0, %v896
    %v898 = vpop.f32.mrb[0].mxu0
    %v899 = vadd.f32 0.0, %v898
    %v900 = vpop.f32.mrb[0].mxu0
    %v901 = vpop.f32.mrb[0].mxu0
    %902 = vdwg.mxu0
    %v903 = vadd.f32 %v640, %v856
    %v904 = vadd.f32 %v642, %v858
    %v905 = vadd.f32 %v681, %v897
    %v906 = vadd.f32 %v683, %v899
    %v907 = vxor.u32 %v903, 2147483648
    %v908 = vxor.u32 %v904, 2147483648
    %v909 = vxor.u32 %v905, 2147483648
    %v910 = vmul.f32 %v907, 1.442695
    %v911 = vpow.pop %v910
    %v912 = vmul.f32 %v908, 1.442695
    %v913 = vpow.pop %v912
    %v914 = vmul.f32 %v909, 1.442695
    %v915 = vpow.pop %v914
    %v916 = vadd.f32 %v911, 1.0
    %v917 = vadd.f32 %v913, 1.0
    %v918 = vadd.f32 %v915, 1.0
    %v919 = vrcp.pop %v916
    %v920 = vmul.f32 1.0, %v919
    %v921 = vrcp.pop %v917
    %v922 = vmul.f32 1.0, %v921
    %v923 = vrcp.pop %v918
    %v924 = vmul.f32 1.0, %v923
    %v925 = vtanh.pop %v906
    %v926 = vmul.f32 %v922, 0.0
    %v927 = vmul.f32 %v920, %v925
    %v928 = vadd.f32 %v926, %v927
    %v929 = vtanh.pop %v928
    %v930 = vmul.f32 %v924, %v929
    %931 = vst [vmem:[#allocation3] sm:$0x1] %v930
    %v932 = vpack.c.bf16 %v930, %v930
    %933 = vmatprep.subr.bf16.mxu0 %v371
    %934 = vmatpush1.bf16.msra.mxu0 %v370
    %935 = vmatprep.subr.bf16.mxu0 %v375
    %936 = vmatpush1.bf16.msra.mxu0 %v374
    %937 = vmatprep.subr.bf16.mxu0 %v379
    %938 = vmatpush1.bf16.msra.mxu0 %v378
    %939 = vmatprep.subr.bf16.mxu0 %v383
    %940 = vmatpush1.bf16.msra.mxu0 %v382
    %941 = vmatprep.subr.bf16.mxu0 %v387
    %942 = vmatpush1.bf16.msra.mxu0 %v386
    %943 = vmatprep.subr.bf16.mxu0 %v391
    %944 = vmatpush1.bf16.msra.mxu0 %v390
    %945 = vmatprep.subr.bf16.mxu0 %v395
    %946 = vmatpush1.bf16.msra.mxu0 %v394
    %947 = vmatprep.subr.bf16.mxu0 %v399
    %948 = vmatpush1.bf16.msra.mxu0 %v398
    %949 = vmatprep.subr.bf16.mxu0 0
    %950 = vmatpush1.bf16.msra.mxu0 0
    %951 = vmatprep.subr.bf16.mxu0 0
    %952 = vmatpush1.bf16.msra.mxu0 0
    %953 = vmatprep.subr.bf16.mxu0 0
    %954 = vmatpush1.bf16.msra.mxu0 0
    %955 = vmatprep.subr.bf16.mxu0 0
    %956 = vmatpush1.bf16.msra.mxu0 0
    %957 = vmatprep.subr.bf16.mxu0 0
    %958 = vmatpush1.bf16.msra.mxu0 0
    %959 = vmatprep.subr.bf16.mxu0 0
    %960 = vmatpush1.bf16.msra.mxu0 0
    %961 = vmatprep.subr.bf16.mxu0 0
    %962 = vmatpush1.bf16.msra.mxu0 0
    %963 = vmatprep.subr.bf16.mxu0 0
    %964 = vmatpush1.bf16.msra.mxu0 0
    %965 = vmatprep.mubr.bf16.mxu0 0
    %966 = vmatmul.mubr.bf16.gmra.mrb[0].mxu0 %v932
    %v967 = vpop.f32.mrb[0].mxu0
    %v968 = vadd.f32 %v588, %v967
    %v969 = vpop.f32.mrb[0].mxu0
    %v970 = vadd.f32 %v592, %v969
    %v971 = vpop.f32.mrb[0].mxu0
    %v972 = vpop.f32.mrb[0].mxu0
    %973 = vdwg.mxu0
    %974 = vmatprep.subr.bf16.mxu0 %v373
    %975 = vmatpush1.bf16.msra.mxu0 %v372
    %976 = vmatprep.subr.bf16.mxu0 %v377
    %977 = vmatpush1.bf16.msra.mxu0 %v376
    %978 = vmatprep.subr.bf16.mxu0 %v381
    %979 = vmatpush1.bf16.msra.mxu0 %v380
    %980 = vmatprep.subr.bf16.mxu0 %v385
    %981 = vmatpush1.bf16.msra.mxu0 %v384
    %982 = vmatprep.subr.bf16.mxu0 %v389
    %983 = vmatpush1.bf16.msra.mxu0 %v388
    %984 = vmatprep.subr.bf16.mxu0 %v393
    %985 = vmatpush1.bf16.msra.mxu0 %v392
    %986 = vmatprep.subr.bf16.mxu0 %v397
    %987 = vmatpush1.bf16.msra.mxu0 %v396
    %988 = vmatprep.subr.bf16.mxu0 %v401
    %989 = vmatpush1.bf16.msra.mxu0 %v400
    %990 = vmatprep.subr.bf16.mxu0 0
    %991 = vmatpush1.bf16.msra.mxu0 0
    %992 = vmatprep.subr.bf16.mxu0 0
    %993 = vmatpush1.bf16.msra.mxu0 0
    %994 = vmatprep.subr.bf16.mxu0 0
    %995 = vmatpush1.bf16.msra.mxu0 0
    %996 = vmatprep.subr.bf16.mxu0 0
    %997 = vmatpush1.bf16.msra.mxu0 0
    %998 = vmatprep.subr.bf16.mxu0 0
    %999 = vmatpush1.bf16.msra.mxu0 0
    %1000 = vmatprep.subr.bf16.mxu0 0
    %1001 = vmatpush1.bf16.msra.mxu0 0
    %1002 = vmatprep.subr.bf16.mxu0 0
    %1003 = vmatpush1.bf16.msra.mxu0 0
    %1004 = vmatprep.subr.bf16.mxu0 0
    %1005 = vmatpush1.bf16.msra.mxu0 0
    %1006 = vmatprep.mubr.bf16.mxu0 0
    %1007 = vmatmul.mubr.bf16.gmra.mrb[0].mxu0 %v932
    %v1008 = vpop.f32.mrb[0].mxu0
    %v1009 = vadd.f32 %v596, %v1008
    %v1010 = vpop.f32.mrb[0].mxu0
    %v1011 = vadd.f32 %v600, %v1010
    %v1012 = vpop.f32.mrb[0].mxu0
    %v1013 = vpop.f32.mrb[0].mxu0
    %1014 = vdwg.mxu0
    %s1015 = scalar_lea.vmem [#allocation2], 1
    %v1016 = vld [vmem:[%s1015] ss:$8 sm:$0xf]
    %1017 = vmatprep.subr.bf16.mxu0 %v179
    %1018 = vmatpush1.bf16.msra.mxu0 %v178
    %1019 = vmatprep.subr.bf16.mxu0 %v183
    %1020 = vmatpush1.bf16.msra.mxu0 %v182
    %1021 = vmatprep.subr.bf16.mxu0 %v187
    %1022 = vmatpush1.bf16.msra.mxu0 %v186
    %1023 = vmatprep.subr.bf16.mxu0 %v191
    %1024 = vmatpush1.bf16.msra.mxu0 %v190
    %1025 = vmatprep.subr.bf16.mxu0 %v195
    %1026 = vmatpush1.bf16.msra.mxu0 %v194
    %1027 = vmatprep.subr.bf16.mxu0 %v199
    %1028 = vmatpush1.bf16.msra.mxu0 %v198
    %1029 = vmatprep.subr.bf16.mxu0 %v203
    %1030 = vmatpush1.bf16.msra.mxu0 %v202
    %1031 = vmatprep.subr.bf16.mxu0 %v207
    %1032 = vmatpush1.bf16.msra.mxu0 %v206
    %1033 = vmatprep.subr.bf16.mxu0 0
    %1034 = vmatpush1.bf16.msra.mxu0 0
    %1035 = vmatprep.subr.bf16.mxu0 0
    %1036 = vmatpush1.bf16.msra.mxu0 0
    %1037 = vmatprep.subr.bf16.mxu0 0
    %1038 = vmatpush1.bf16.msra.mxu0 0
    %1039 = vmatprep.subr.bf16.mxu0 0
    %1040 = vmatpush1.bf16.msra.mxu0 0
    %1041 = vmatprep.subr.bf16.mxu0 0
    %1042 = vmatpush1.bf16.msra.mxu0 0
    %1043 = vmatprep.subr.bf16.mxu0 0
    %1044 = vmatpush1.bf16.msra.mxu0 0
    %1045 = vmatprep.subr.bf16.mxu0 0
    %1046 = vmatpush1.bf16.msra.mxu0 0
    %1047 = vmatprep.subr.bf16.mxu0 0
    %1048 = vmatpush1.bf16.msra.mxu0 0
    %1049 = vmatprep.mubr.bf16.mxu0 0
    %1050 = vmatmul.mubr.bf16.gmra.mrb[0].mxu0 %v820
    %v1051 = vpop.f32.mrb[0].mxu0
    %v1052 = vadd.f32 0.0, %v1051
    %v1053 = vpop.f32.mrb[0].mxu0
    %v1054 = vadd.f32 0.0, %v1053
    %v1055 = vpop.f32.mrb[0].mxu0
    %v1056 = vpop.f32.mrb[0].mxu0
    %1057 = vdwg.mxu0
    %1058 = vmatprep.subr.bf16.mxu0 %v181
    %1059 = vmatpush1.bf16.msra.mxu0 %v180
    %1060 = vmatprep.subr.bf16.mxu0 %v185
    %1061 = vmatpush1.bf16.msra.mxu0 %v184
    %1062 = vmatprep.subr.bf16.mxu0 %v189
    %1063 = vmatpush1.bf16.msra.mxu0 %v188
    %1064 = vmatprep.subr.bf16.mxu0 %v193
    %1065 = vmatpush1.bf16.msra.mxu0 %v192
    %1066 = vmatprep.subr.bf16.mxu0 %v197
    %1067 = vmatpush1.bf16.msra.mxu0 %v196
    %1068 = vmatprep.subr.bf16.mxu0 %v201
    %1069 = vmatpush1.bf16.msra.mxu0 %v200
    %1070 = vmatprep.subr.bf16.mxu0 %v205
    %1071 = vmatpush1.bf16.msra.mxu0 %v204
    %1072 = vmatprep.subr.bf16.mxu0 %v209
    %1073 = vmatpush1.bf16.msra.mxu0 %v208
    %1074 = vmatprep.subr.bf16.mxu0 0
    %1075 = vmatpush1.bf16.msra.mxu0 0
    %1076 = vmatprep.subr.bf16.mxu0 0
    %1077 = vmatpush1.bf16.msra.mxu0 0
    %1078 = vmatprep.subr.bf16.mxu0 0
    %1079 = vmatpush1.bf16.msra.mxu0 0
    %1080 = vmatprep.subr.bf16.mxu0 0
    %1081 = vmatpush1.bf16.msra.mxu0 0
    %1082 = vmatprep.subr.bf16.mxu0 0
    %1083 = vmatpush1.bf16.msra.mxu0 0
    %1084 = vmatprep.subr.bf16.mxu0 0
    %1085 = vmatpush1.bf16.msra.mxu0 0
    %1086 = vmatprep.subr.bf16.mxu0 0
    %1087 = vmatpush1.bf16.msra.mxu0 0
    %1088 = vmatprep.subr.bf16.mxu0 0
    %1089 = vmatpush1.bf16.msra.mxu0 0
    %1090 = vmatprep.mubr.bf16.mxu0 0
    %1091 = vmatmul.mubr.bf16.gmra.mrb[0].mxu0 %v820
    %v1092 = vpop.f32.mrb[0].mxu0
    %v1093 = vadd.f32 0.0, %v1092
    %v1094 = vpop.f32.mrb[0].mxu0
    %v1095 = vadd.f32 0.0, %v1094
    %v1096 = vpop.f32.mrb[0].mxu0
    %v1097 = vpop.f32.mrb[0].mxu0
    %1098 = vdwg.mxu0
    %v1103 = vcombine.low %v1052, %v1054
    %v1104 = vcombine.low %v1093, %v1095
    %v1106 = vunpack.c.l.s4 1966171168
    %v1107 = vunpack.c.0.s8 %v1106
    %v1108 = vlaneseq
    %v1109 = vshrl.u32 %v1108, 7
    %v1110 = vsub.s32 %v1107, %v1109
    %v1111 = vrot.slane %v1103, %v1110
    %v1113 = vunpack.c.l.s4 1966171168
    %v1114 = vunpack.c.0.s8 %v1113
    %v1115 = vlaneseq
    %v1116 = vshrl.u32 %v1115, 7
    %v1117 = vsub.s32 %v1114, %v1116
    %v1118 = vrot.slane %v1104, %v1117
    %v1119 = vcombine.low %v1111, %v1118
    %v1121 = vunpack.c.l.s4 1966171168
    %v1122 = vunpack.c.0.s8 %v1121
    %v1123 = vlaneseq
    %v1124 = vshrl.u32 %v1123, 7
    %v1125 = vsub.s32 %v1122, %v1124
    %v1126 = vrot.slane %v1119, %v1125
    %v1128 = vadd.f32 %v1016, %v1126
    %v1129 = vxor.u32 %v1128, 2147483648
    %v1130 = vmul.f32 %v1129, 1.442695
    %v1131 = vpow.pop %v1130
    %v1132 = vadd.f32 %v1131, 1.0
    %v1133 = vrcp.pop %v1132
    %v1134 = vmul.f32 1.0, %v1133
    %v1136 = vrot.slane %v1128, 3
    %v1138 = vtanh.pop %v1136
    %v1140 = vrot.slane %v1134, 1
    %v1142 = vmul.f32 %v1140, %v815
    %v1143 = vmul.f32 %v1134, %v1138
    %v1144 = vadd.f32 %v1142, %v1143
    %v1145 = vtanh.pop %v1144
    %v1146 = vrot.slane %v1134, 2
    %v1148 = vmul.f32 %v1146, %v1145
    %v1149 = vpack.c.bf16 %v1148, %v1148
    %1150 = vmatprep.subr.bf16.mxu0 %v275
    %1151 = vmatpush1.bf16.msra.mxu0 %v274
    %1152 = vmatprep.subr.bf16.mxu0 %v279
    %1153 = vmatpush1.bf16.msra.mxu0 %v278
    %1154 = vmatprep.subr.bf16.mxu0 %v283
    %1155 = vmatpush1.bf16.msra.mxu0 %v282
    %1156 = vmatprep.subr.bf16.mxu0 %v287
    %1157 = vmatpush1.bf16.msra.mxu0 %v286
    %1158 = vmatprep.subr.bf16.mxu0 %v291
    %1159 = vmatpush1.bf16.msra.mxu0 %v290
    %1160 = vmatprep.subr.bf16.mxu0 %v295
    %1161 = vmatpush1.bf16.msra.mxu0 %v294
    %1162 = vmatprep.subr.bf16.mxu0 %v299
    %1163 = vmatpush1.bf16.msra.mxu0 %v298
    %1164 = vmatprep.subr.bf16.mxu0 %v303
    %1165 = vmatpush1.bf16.msra.mxu0 %v302
    %1166 = vmatprep.subr.bf16.mxu0 0
    %1167 = vmatpush1.bf16.msra.mxu0 0
    %1168 = vmatprep.subr.bf16.mxu0 0
    %1169 = vmatpush1.bf16.msra.mxu0 0
    %1170 = vmatprep.subr.bf16.mxu0 0
    %1171 = vmatpush1.bf16.msra.mxu0 0
    %1172 = vmatprep.subr.bf16.mxu0 0
    %1173 = vmatpush1.bf16.msra.mxu0 0
    %1174 = vmatprep.subr.bf16.mxu0 0
    %1175 = vmatpush1.bf16.msra.mxu0 0
    %1176 = vmatprep.subr.bf16.mxu0 0
    %1177 = vmatpush1.bf16.msra.mxu0 0
    %1178 = vmatprep.subr.bf16.mxu0 0
    %1179 = vmatpush1.bf16.msra.mxu0 0
    %1180 = vmatprep.subr.bf16.mxu0 0
    %1181 = vmatpush1.bf16.msra.mxu0 0
    %1182 = vmatprep.mubr.bf16.mxu0 0
    %1183 = vmatmul.mubr.bf16.gmra.mrb[0].mxu0 %v1149
    %v1184 = vpop.f32.mrb[0].mxu0
    %v1185 = vadd.f32 0.0, %v1184
    %v1186 = vpop.f32.mrb[0].mxu0
    %v1187 = vadd.f32 0.0, %v1186
    %v1188 = vpop.f32.mrb[0].mxu0
    %v1189 = vpop.f32.mrb[0].mxu0
    %1190 = vdwg.mxu0
    %1191 = vmatprep.subr.bf16.mxu0 %v277
    %1192 = vmatpush1.bf16.msra.mxu0 %v276
    %1193 = vmatprep.subr.bf16.mxu0 %v281
    %1194 = vmatpush1.bf16.msra.mxu0 %v280
    %1195 = vmatprep.subr.bf16.mxu0 %v285
    %1196 = vmatpush1.bf16.msra.mxu0 %v284
    %1197 = vmatprep.subr.bf16.mxu0 %v289
    %1198 = vmatpush1.bf16.msra.mxu0 %v288
    %1199 = vmatprep.subr.bf16.mxu0 %v293
    %1200 = vmatpush1.bf16.msra.mxu0 %v292
    %1201 = vmatprep.subr.bf16.mxu0 %v297
    %1202 = vmatpush1.bf16.msra.mxu0 %v296
    %1203 = vmatprep.subr.bf16.mxu0 %v301
    %1204 = vmatpush1.bf16.msra.mxu0 %v300
    %1205 = vmatprep.subr.bf16.mxu0 %v305
    %1206 = vmatpush1.bf16.msra.mxu0 %v304
    %1207 = vmatprep.subr.bf16.mxu0 0
    %1208 = vmatpush1.bf16.msra.mxu0 0
    %1209 = vmatprep.subr.bf16.mxu0 0
    %1210 = vmatpush1.bf16.msra.mxu0 0
    %1211 = vmatprep.subr.bf16.mxu0 0
    %1212 = vmatpush1.bf16.msra.mxu0 0
    %1213 = vmatprep.subr.bf16.mxu0 0
    %1214 = vmatpush1.bf16.msra.mxu0 0
    %1215 = vmatprep.subr.bf16.mxu0 0
    %1216 = vmatpush1.bf16.msra.mxu0 0
    %1217 = vmatprep.subr.bf16.mxu0 0
    %1218 = vmatpush1.bf16.msra.mxu0 0
    %1219 = vmatprep.subr.bf16.mxu0 0
    %1220 = vmatpush1.bf16.msra.mxu0 0
    %1221 = vmatprep.subr.bf16.mxu0 0
    %1222 = vmatpush1.bf16.msra.mxu0 0
    %1223 = vmatprep.mubr.bf16.mxu0 0
    %1224 = vmatmul.mubr.bf16.gmra.mrb[0].mxu0 %v1149
    %v1225 = vpop.f32.mrb[0].mxu0
    %v1226 = vadd.f32 0.0, %v1225
    %v1227 = vpop.f32.mrb[0].mxu0
    %v1228 = vadd.f32 0.0, %v1227
    %v1229 = vpop.f32.mrb[0].mxu0
    %v1230 = vpop.f32.mrb[0].mxu0
    %1231 = vdwg.mxu0
    %v1232 = vadd.f32 %v968, %v1185
    %v1233 = vadd.f32 %v970, %v1187
    %v1234 = vadd.f32 %v1009, %v1226
    %v1235 = vadd.f32 %v1011, %v1228
    %v1236 = vxor.u32 %v1232, 2147483648
    %v1237 = vxor.u32 %v1233, 2147483648
    %v1238 = vxor.u32 %v1234, 2147483648
    %v1239 = vmul.f32 %v1236, 1.442695
    %v1240 = vpow.pop %v1239
    %v1241 = vmul.f32 %v1237, 1.442695
    %v1242 = vpow.pop %v1241
    %v1243 = vmul.f32 %v1238, 1.442695
    %v1244 = vpow.pop %v1243
    %v1245 = vadd.f32 %v1240, 1.0
    %v1246 = vadd.f32 %v1242, 1.0
    %v1247 = vadd.f32 %v1244, 1.0
    %v1248 = vrcp.pop %v1245
    %v1249 = vmul.f32 1.0, %v1248
    %v1250 = vrcp.pop %v1246
    %v1251 = vmul.f32 1.0, %v1250
    %v1252 = vrcp.pop %v1247
    %v1253 = vmul.f32 1.0, %v1252
    %v1254 = vtanh.pop %v1235
    %v1255 = vmul.f32 %v1251, %v928
    %v1256 = vmul.f32 %v1249, %v1254
    %v1257 = vadd.f32 %v1255, %v1256
    %v1258 = vtanh.pop %v1257
    %v1259 = vmul.f32 %v1253, %v1258
    %1260 = vst [vmem:[#allocation3 + $0x1] sm:$0x1] %v1259
    %v1261 = vpack.c.bf16 %v1259, %v1259
    %1262 = vmatprep.subr.bf16.mxu0 %v371
    %1263 = vmatpush1.bf16.msra.mxu0 %v370
    %1264 = vmatprep.subr.bf16.mxu0 %v375
    %1265 = vmatpush1.bf16.msra.mxu0 %v374
    %1266 = vmatprep.subr.bf16.mxu0 %v379
    %1267 = vmatpush1.bf16.msra.mxu0 %v378
    %1268 = vmatprep.subr.bf16.mxu0 %v383
    %1269 = vmatpush1.bf16.msra.mxu0 %v382
    %1270 = vmatprep.subr.bf16.mxu0 %v387
    %1271 = vmatpush1.bf16.msra.mxu0 %v386
    %1272 = vmatprep.subr.bf16.mxu0 %v391
    %1273 = vmatpush1.bf16.msra.mxu0 %v390
    %1274 = vmatprep.subr.bf16.mxu0 %v395
    %1275 = vmatpush1.bf16.msra.mxu0 %v394
    %1276 = vmatprep.subr.bf16.mxu0 %v399
    %1277 = vmatpush1.bf16.msra.mxu0 %v398
    %1278 = vmatprep.subr.bf16.mxu0 0
    %1279 = vmatpush1.bf16.msra.mxu0 0
    %1280 = vmatprep.subr.bf16.mxu0 0
    %1281 = vmatpush1.bf16.msra.mxu0 0
    %1282 = vmatprep.subr.bf16.mxu0 0
    %1283 = vmatpush1.bf16.msra.mxu0 0
    %1284 = vmatprep.subr.bf16.mxu0 0
    %1285 = vmatpush1.bf16.msra.mxu0 0
    %1286 = vmatprep.subr.bf16.mxu0 0
    %1287 = vmatpush1.bf16.msra.mxu0 0
    %1288 = vmatprep.subr.bf16.mxu0 0
    %1289 = vmatpush1.bf16.msra.mxu0 0
    %1290 = vmatprep.subr.bf16.mxu0 0
    %1291 = vmatpush1.bf16.msra.mxu0 0
    %1292 = vmatprep.subr.bf16.mxu0 0
    %1293 = vmatpush1.bf16.msra.mxu0 0
    %1294 = vmatprep.mubr.bf16.mxu0 0
    %1295 = vmatmul.mubr.bf16.gmra.mrb[0].mxu0 %v1261
    %v1296 = vpop.f32.mrb[0].mxu0
    %v1297 = vadd.f32 %v588, %v1296
    %v1298 = vpop.f32.mrb[0].mxu0
    %v1299 = vadd.f32 %v592, %v1298
    %v1300 = vpop.f32.mrb[0].mxu0
    %v1301 = vpop.f32.mrb[0].mxu0
    %1302 = vdwg.mxu0
    %1303 = vmatprep.subr.bf16.mxu0 %v373
    %1304 = vmatpush1.bf16.msra.mxu0 %v372
    %1305 = vmatprep.subr.bf16.mxu0 %v377
    %1306 = vmatpush1.bf16.msra.mxu0 %v376
    %1307 = vmatprep.subr.bf16.mxu0 %v381
    %1308 = vmatpush1.bf16.msra.mxu0 %v380
    %1309 = vmatprep.subr.bf16.mxu0 %v385
    %1310 = vmatpush1.bf16.msra.mxu0 %v384
    %1311 = vmatprep.subr.bf16.mxu0 %v389
    %1312 = vmatpush1.bf16.msra.mxu0 %v388
    %1313 = vmatprep.subr.bf16.mxu0 %v393
    %1314 = vmatpush1.bf16.msra.mxu0 %v392
    %1315 = vmatprep.subr.bf16.mxu0 %v397
    %1316 = vmatpush1.bf16.msra.mxu0 %v396
    %1317 = vmatprep.subr.bf16.mxu0 %v401
    %1318 = vmatpush1.bf16.msra.mxu0 %v400
    %1319 = vmatprep.subr.bf16.mxu0 0
    %1320 = vmatpush1.bf16.msra.mxu0 0
    %1321 = vmatprep.subr.bf16.mxu0 0
    %1322 = vmatpush1.bf16.msra.mxu0 0
    %1323 = vmatprep.subr.bf16.mxu0 0
    %1324 = vmatpush1.bf16.msra.mxu0 0
    %1325 = vmatprep.subr.bf16.mxu0 0
    %1326 = vmatpush1.bf16.msra.mxu0 0
    %1327 = vmatprep.subr.bf16.mxu0 0
    %1328 = vmatpush1.bf16.msra.mxu0 0
    %1329 = vmatprep.subr.bf16.mxu0 0
    %1330 = vmatpush1.bf16.msra.mxu0 0
    %1331 = vmatprep.subr.bf16.mxu0 0
    %1332 = vmatpush1.bf16.msra.mxu0 0
    %1333 = vmatprep.subr.bf16.mxu0 0
    %1334 = vmatpush1.bf16.msra.mxu0 0
    %1335 = vmatprep.mubr.bf16.mxu0 0
    %1336 = vmatmul.mubr.bf16.gmra.mrb[0].mxu0 %v1261
    %v1337 = vpop.f32.mrb[0].mxu0
    %v1338 = vadd.f32 %v596, %v1337
    %v1339 = vpop.f32.mrb[0].mxu0
    %v1340 = vadd.f32 %v600, %v1339
    %v1341 = vpop.f32.mrb[0].mxu0
    %v1342 = vpop.f32.mrb[0].mxu0
    %1343 = vdwg.mxu0
    %s1344 = scalar_lea.vmem [#allocation2], 2
    %v1345 = vld [vmem:[%s1344] ss:$8 sm:$0xf]
    %1346 = vmatprep.subr.bf16.mxu0 %v179
    %1347 = vmatpush1.bf16.msra.mxu0 %v178
    %1348 = vmatprep.subr.bf16.mxu0 %v183
    %1349 = vmatpush1.bf16.msra.mxu0 %v182
    %1350 = vmatprep.subr.bf16.mxu0 %v187
    %1351 = vmatpush1.bf16.msra.mxu0 %v186
    %1352 = vmatprep.subr.bf16.mxu0 %v191
    %1353 = vmatpush1.bf16.msra.mxu0 %v190
    %1354 = vmatprep.subr.bf16.mxu0 %v195
    %1355 = vmatpush1.bf16.msra.mxu0 %v194
    %1356 = vmatprep.subr.bf16.mxu0 %v199
    %1357 = vmatpush1.bf16.msra.mxu0 %v198
    %1358 = vmatprep.subr.bf16.mxu0 %v203
    %1359 = vmatpush1.bf16.msra.mxu0 %v202
    %1360 = vmatprep.subr.bf16.mxu0 %v207
    %1361 = vmatpush1.bf16.msra.mxu0 %v206
    %1362 = vmatprep.subr.bf16.mxu0 0
    %1363 = vmatpush1.bf16.msra.mxu0 0
    %1364 = vmatprep.subr.bf16.mxu0 0
    %1365 = vmatpush1.bf16.msra.mxu0 0
    %1366 = vmatprep.subr.bf16.mxu0 0
    %1367 = vmatpush1.bf16.msra.mxu0 0
    %1368 = vmatprep.subr.bf16.mxu0 0
    %1369 = vmatpush1.bf16.msra.mxu0 0
    %1370 = vmatprep.subr.bf16.mxu0 0
    %1371 = vmatpush1.bf16.msra.mxu0 0
    %1372 = vmatprep.subr.bf16.mxu0 0
    %1373 = vmatpush1.bf16.msra.mxu0 0
    %1374 = vmatprep.subr.bf16.mxu0 0
    %1375 = vmatpush1.bf16.msra.mxu0 0
    %1376 = vmatprep.subr.bf16.mxu0 0
    %1377 = vmatpush1.bf16.msra.mxu0 0
    %1378 = vmatprep.mubr.bf16.mxu0 0
    %1379 = vmatmul.mubr.bf16.gmra.mrb[0].mxu0 %v1149
    %v1380 = vpop.f32.mrb[0].mxu0
    %v1381 = vadd.f32 0.0, %v1380
    %v1382 = vpop.f32.mrb[0].mxu0
    %v1383 = vadd.f32 0.0, %v1382
    %v1384 = vpop.f32.mrb[0].mxu0
    %v1385 = vpop.f32.mrb[0].mxu0
    %1386 = vdwg.mxu0
    %1387 = vmatprep.subr.bf16.mxu0 %v181
    %1388 = vmatpush1.bf16.msra.mxu0 %v180
    %1389 = vmatprep.subr.bf16.mxu0 %v185
    %1390 = vmatpush1.bf16.msra.mxu0 %v184
    %1391 = vmatprep.subr.bf16.mxu0 %v189
    %1392 = vmatpush1.bf16.msra.mxu0 %v188
    %1393 = vmatprep.subr.bf16.mxu0 %v193
    %1394 = vmatpush1.bf16.msra.mxu0 %v192
    %1395 = vmatprep.subr.bf16.mxu0 %v197
    %1396 = vmatpush1.bf16.msra.mxu0 %v196
    %1397 = vmatprep.subr.bf16.mxu0 %v201
    %1398 = vmatpush1.bf16.msra.mxu0 %v200
    %1399 = vmatprep.subr.bf16.mxu0 %v205
    %1400 = vmatpush1.bf16.msra.mxu0 %v204
    %1401 = vmatprep.subr.bf16.mxu0 %v209
    %1402 = vmatpush1.bf16.msra.mxu0 %v208
    %1403 = vmatprep.subr.bf16.mxu0 0
    %1404 = vmatpush1.bf16.msra.mxu0 0
    %1405 = vmatprep.subr.bf16.mxu0 0
    %1406 = vmatpush1.bf16.msra.mxu0 0
    %1407 = vmatprep.subr.bf16.mxu0 0
    %1408 = vmatpush1.bf16.msra.mxu0 0
    %1409 = vmatprep.subr.bf16.mxu0 0
    %1410 = vmatpush1.bf16.msra.mxu0 0
    %1411 = vmatprep.subr.bf16.mxu0 0
    %1412 = vmatpush1.bf16.msra.mxu0 0
    %1413 = vmatprep.subr.bf16.mxu0 0
    %1414 = vmatpush1.bf16.msra.mxu0 0
    %1415 = vmatprep.subr.bf16.mxu0 0
    %1416 = vmatpush1.bf16.msra.mxu0 0
    %1417 = vmatprep.subr.bf16.mxu0 0
    %1418 = vmatpush1.bf16.msra.mxu0 0
    %1419 = vmatprep.mubr.bf16.mxu0 0
    %1420 = vmatmul.mubr.bf16.gmra.mrb[0].mxu0 %v1149
    %v1421 = vpop.f32.mrb[0].mxu0
    %v1422 = vadd.f32 0.0, %v1421
    %v1423 = vpop.f32.mrb[0].mxu0
    %v1424 = vadd.f32 0.0, %v1423
    %v1425 = vpop.f32.mrb[0].mxu0
    %v1426 = vpop.f32.mrb[0].mxu0
    %1427 = vdwg.mxu0
    %v1432 = vcombine.low %v1381, %v1383
    %v1433 = vcombine.low %v1422, %v1424
    %v1435 = vunpack.c.l.s4 1966171168
    %v1436 = vunpack.c.0.s8 %v1435
    %v1437 = vlaneseq
    %v1438 = vshrl.u32 %v1437, 7
    %v1439 = vsub.s32 %v1436, %v1438
    %v1440 = vrot.slane %v1432, %v1439
    %v1442 = vunpack.c.l.s4 1966171168
    %v1443 = vunpack.c.0.s8 %v1442
    %v1444 = vlaneseq
    %v1445 = vshrl.u32 %v1444, 7
    %v1446 = vsub.s32 %v1443, %v1445
    %v1447 = vrot.slane %v1433, %v1446
    %v1448 = vcombine.low %v1440, %v1447
    %v1450 = vunpack.c.l.s4 1966171168
    %v1451 = vunpack.c.0.s8 %v1450
    %v1452 = vlaneseq
    %v1453 = vshrl.u32 %v1452, 7
    %v1454 = vsub.s32 %v1451, %v1453
    %v1455 = vrot.slane %v1448, %v1454
    %v1457 = vadd.f32 %v1345, %v1455
    %v1458 = vxor.u32 %v1457, 2147483648
    %v1459 = vmul.f32 %v1458, 1.442695
    %v1460 = vpow.pop %v1459
    %v1461 = vadd.f32 %v1460, 1.0
    %v1462 = vrcp.pop %v1461
    %v1463 = vmul.f32 1.0, %v1462
    %v1465 = vrot.slane %v1457, 3
    %v1467 = vtanh.pop %v1465
    %v1469 = vrot.slane %v1463, 1
    %v1471 = vmul.f32 %v1469, %v1144
    %v1472 = vmul.f32 %v1463, %v1467
    %v1473 = vadd.f32 %v1471, %v1472
    %v1474 = vtanh.pop %v1473
    %v1475 = vrot.slane %v1463, 2
    %v1477 = vmul.f32 %v1475, %v1474
    %v1478 = vpack.c.bf16 %v1477, %v1477
    %1479 = vmatprep.subr.bf16.mxu0 %v275
    %1480 = vmatpush1.bf16.msra.mxu0 %v274
    %1481 = vmatprep.subr.bf16.mxu0 %v279
    %1482 = vmatpush1.bf16.msra.mxu0 %v278
    %1483 = vmatprep.subr.bf16.mxu0 %v283
    %1484 = vmatpush1.bf16.msra.mxu0 %v282
    %1485 = vmatprep.subr.bf16.mxu0 %v287
    %1486 = vmatpush1.bf16.msra.mxu0 %v286
    %1487 = vmatprep.subr.bf16.mxu0 %v291
    %1488 = vmatpush1.bf16.msra.mxu0 %v290
    %1489 = vmatprep.subr.bf16.mxu0 %v295
    %1490 = vmatpush1.bf16.msra.mxu0 %v294
    %1491 = vmatprep.subr.bf16.mxu0 %v299
    %1492 = vmatpush1.bf16.msra.mxu0 %v298
    %1493 = vmatprep.subr.bf16.mxu0 %v303
    %1494 = vmatpush1.bf16.msra.mxu0 %v302
    %1495 = vmatprep.subr.bf16.mxu0 0
    %1496 = vmatpush1.bf16.msra.mxu0 0
    %1497 = vmatprep.subr.bf16.mxu0 0
    %1498 = vmatpush1.bf16.msra.mxu0 0
    %1499 = vmatprep.subr.bf16.mxu0 0
    %1500 = vmatpush1.bf16.msra.mxu0 0
    %1501 = vmatprep.subr.bf16.mxu0 0
    %1502 = vmatpush1.bf16.msra.mxu0 0
    %1503 = vmatprep.subr.bf16.mxu0 0
    %1504 = vmatpush1.bf16.msra.mxu0 0
    %1505 = vmatprep.subr.bf16.mxu0 0
    %1506 = vmatpush1.bf16.msra.mxu0 0
    %1507 = vmatprep.subr.bf16.mxu0 0
    %1508 = vmatpush1.bf16.msra.mxu0 0
    %1509 = vmatprep.subr.bf16.mxu0 0
    %1510 = vmatpush1.bf16.msra.mxu0 0
    %1511 = vmatprep.mubr.bf16.mxu0 0
    %1512 = vmatmul.mubr.bf16.gmra.mrb[0].mxu0 %v1478
    %v1513 = vpop.f32.mrb[0].mxu0
    %v1514 = vadd.f32 0.0, %v1513
    %v1515 = vpop.f32.mrb[0].mxu0
    %v1516 = vadd.f32 0.0, %v1515
    %v1517 = vpop.f32.mrb[0].mxu0
    %v1518 = vpop.f32.mrb[0].mxu0
    %1519 = vdwg.mxu0
    %1520 = vmatprep.subr.bf16.mxu0 %v277
    %1521 = vmatpush1.bf16.msra.mxu0 %v276
    %1522 = vmatprep.subr.bf16.mxu0 %v281
    %1523 = vmatpush1.bf16.msra.mxu0 %v280
    %1524 = vmatprep.subr.bf16.mxu0 %v285
    %1525 = vmatpush1.bf16.msra.mxu0 %v284
    %1526 = vmatprep.subr.bf16.mxu0 %v289
    %1527 = vmatpush1.bf16.msra.mxu0 %v288
    %1528 = vmatprep.subr.bf16.mxu0 %v293
    %1529 = vmatpush1.bf16.msra.mxu0 %v292
    %1530 = vmatprep.subr.bf16.mxu0 %v297
    %1531 = vmatpush1.bf16.msra.mxu0 %v296
    %1532 = vmatprep.subr.bf16.mxu0 %v301
    %1533 = vmatpush1.bf16.msra.mxu0 %v300
    %1534 = vmatprep.subr.bf16.mxu0 %v305
    %1535 = vmatpush1.bf16.msra.mxu0 %v304
    %1536 = vmatprep.subr.bf16.mxu0 0
    %1537 = vmatpush1.bf16.msra.mxu0 0
    %1538 = vmatprep.subr.bf16.mxu0 0
    %1539 = vmatpush1.bf16.msra.mxu0 0
    %1540 = vmatprep.subr.bf16.mxu0 0
    %1541 = vmatpush1.bf16.msra.mxu0 0
    %1542 = vmatprep.subr.bf16.mxu0 0
    %1543 = vmatpush1.bf16.msra.mxu0 0
    %1544 = vmatprep.subr.bf16.mxu0 0
    %1545 = vmatpush1.bf16.msra.mxu0 0
    %1546 = vmatprep.subr.bf16.mxu0 0
    %1547 = vmatpush1.bf16.msra.mxu0 0
    %1548 = vmatprep.subr.bf16.mxu0 0
    %1549 = vmatpush1.bf16.msra.mxu0 0
    %1550 = vmatprep.subr.bf16.mxu0 0
    %1551 = vmatpush1.bf16.msra.mxu0 0
    %1552 = vmatprep.mubr.bf16.mxu0 0
    %1553 = vmatmul.mubr.bf16.gmra.mrb[0].mxu0 %v1478
    %v1554 = vpop.f32.mrb[0].mxu0
    %v1555 = vadd.f32 0.0, %v1554
    %v1556 = vpop.f32.mrb[0].mxu0
    %v1557 = vadd.f32 0.0, %v1556
    %v1558 = vpop.f32.mrb[0].mxu0
    %v1559 = vpop.f32.mrb[0].mxu0
    %1560 = vdwg.mxu0
    %v1561 = vadd.f32 %v1297, %v1514
    %v1562 = vadd.f32 %v1299, %v1516
    %v1563 = vadd.f32 %v1338, %v1555
    %v1564 = vadd.f32 %v1340, %v1557
    %v1565 = vxor.u32 %v1561, 2147483648
    %v1566 = vxor.u32 %v1562, 2147483648
    %v1567 = vxor.u32 %v1563, 2147483648
    %v1568 = vmul.f32 %v1565, 1.442695
    %v1569 = vpow.pop %v1568
    %v1570 = vmul.f32 %v1566, 1.442695
    %v1571 = vpow.pop %v1570
    %v1572 = vmul.f32 %v1567, 1.442695
    %v1573 = vpow.pop %v1572
    %v1574 = vadd.f32 %v1569, 1.0
    %v1575 = vadd.f32 %v1571, 1.0
    %v1576 = vadd.f32 %v1573, 1.0
    %v1577 = vrcp.pop %v1574
    %v1578 = vmul.f32 1.0, %v1577
    %v1579 = vrcp.pop %v1575
    %v1580 = vmul.f32 1.0, %v1579
    %v1581 = vrcp.pop %v1576
    %v1582 = vmul.f32 1.0, %v1581
    %v1583 = vtanh.pop %v1564
    %v1584 = vmul.f32 %v1580, %v1257
    %v1585 = vmul.f32 %v1578, %v1583
    %v1586 = vadd.f32 %v1584, %v1585
    %v1587 = vtanh.pop %v1586
    %v1588 = vmul.f32 %v1582, %v1587
    %1589 = vst [vmem:[#allocation3 + $0x2] sm:$0x1] %v1588
    %v1590 = vpack.c.bf16 %v1588, %v1588
    %1591 = vmatprep.subr.bf16.mxu0 %v371
    %1592 = vmatpush1.bf16.msra.mxu0 %v370
    %1593 = vmatprep.subr.bf16.mxu0 %v375
    %1594 = vmatpush1.bf16.msra.mxu0 %v374
    %1595 = vmatprep.subr.bf16.mxu0 %v379
    %1596 = vmatpush1.bf16.msra.mxu0 %v378
    %1597 = vmatprep.subr.bf16.mxu0 %v383
    %1598 = vmatpush1.bf16.msra.mxu0 %v382
    %1599 = vmatprep.subr.bf16.mxu0 %v387
    %1600 = vmatpush1.bf16.msra.mxu0 %v386
    %1601 = vmatprep.subr.bf16.mxu0 %v391
    %1602 = vmatpush1.bf16.msra.mxu0 %v390
    %1603 = vmatprep.subr.bf16.mxu0 %v395
    %1604 = vmatpush1.bf16.msra.mxu0 %v394
    %1605 = vmatprep.subr.bf16.mxu0 %v399
    %1606 = vmatpush1.bf16.msra.mxu0 %v398
    %1607 = vmatprep.subr.bf16.mxu0 0
    %1608 = vmatpush1.bf16.msra.mxu0 0
    %1609 = vmatprep.subr.bf16.mxu0 0
    %1610 = vmatpush1.bf16.msra.mxu0 0
    %1611 = vmatprep.subr.bf16.mxu0 0
    %1612 = vmatpush1.bf16.msra.mxu0 0
    %1613 = vmatprep.subr.bf16.mxu0 0
    %1614 = vmatpush1.bf16.msra.mxu0 0
    %1615 = vmatprep.subr.bf16.mxu0 0
    %1616 = vmatpush1.bf16.msra.mxu0 0
    %1617 = vmatprep.subr.bf16.mxu0 0
    %1618 = vmatpush1.bf16.msra.mxu0 0
    %1619 = vmatprep.subr.bf16.mxu0 0
    %1620 = vmatpush1.bf16.msra.mxu0 0
    %1621 = vmatprep.subr.bf16.mxu0 0
    %1622 = vmatpush1.bf16.msra.mxu0 0
    %1623 = vmatprep.mubr.bf16.mxu0 0
    %1624 = vmatmul.mubr.bf16.gmra.mrb[0].mxu0 %v1590
    %v1625 = vpop.f32.mrb[0].mxu0
    %v1626 = vadd.f32 %v588, %v1625
    %v1627 = vpop.f32.mrb[0].mxu0
    %v1628 = vadd.f32 %v592, %v1627
    %v1629 = vpop.f32.mrb[0].mxu0
    %v1630 = vpop.f32.mrb[0].mxu0
    %1631 = vdwg.mxu0
    %1632 = vmatprep.subr.bf16.mxu0 %v373
    %1633 = vmatpush1.bf16.msra.mxu0 %v372
    %1634 = vmatprep.subr.bf16.mxu0 %v377
    %1635 = vmatpush1.bf16.msra.mxu0 %v376
    %1636 = vmatprep.subr.bf16.mxu0 %v381
    %1637 = vmatpush1.bf16.msra.mxu0 %v380
    %1638 = vmatprep.subr.bf16.mxu0 %v385
    %1639 = vmatpush1.bf16.msra.mxu0 %v384
    %1640 = vmatprep.subr.bf16.mxu0 %v389
    %1641 = vmatpush1.bf16.msra.mxu0 %v388
    %1642 = vmatprep.subr.bf16.mxu0 %v393
    %1643 = vmatpush1.bf16.msra.mxu0 %v392
    %1644 = vmatprep.subr.bf16.mxu0 %v397
    %1645 = vmatpush1.bf16.msra.mxu0 %v396
    %1646 = vmatprep.subr.bf16.mxu0 %v401
    %1647 = vmatpush1.bf16.msra.mxu0 %v400
    %1648 = vmatprep.subr.bf16.mxu0 0
    %1649 = vmatpush1.bf16.msra.mxu0 0
    %1650 = vmatprep.subr.bf16.mxu0 0
    %1651 = vmatpush1.bf16.msra.mxu0 0
    %1652 = vmatprep.subr.bf16.mxu0 0
    %1653 = vmatpush1.bf16.msra.mxu0 0
    %1654 = vmatprep.subr.bf16.mxu0 0
    %1655 = vmatpush1.bf16.msra.mxu0 0
    %1656 = vmatprep.subr.bf16.mxu0 0
    %1657 = vmatpush1.bf16.msra.mxu0 0
    %1658 = vmatprep.subr.bf16.mxu0 0
    %1659 = vmatpush1.bf16.msra.mxu0 0
    %1660 = vmatprep.subr.bf16.mxu0 0
    %1661 = vmatpush1.bf16.msra.mxu0 0
    %1662 = vmatprep.subr.bf16.mxu0 0
    %1663 = vmatpush1.bf16.msra.mxu0 0
    %1664 = vmatprep.mubr.bf16.mxu0 0
    %1665 = vmatmul.mubr.bf16.gmra.mrb[0].mxu0 %v1590
    %v1666 = vpop.f32.mrb[0].mxu0
    %v1667 = vadd.f32 %v596, %v1666
    %v1668 = vpop.f32.mrb[0].mxu0
    %v1669 = vadd.f32 %v600, %v1668
    %v1670 = vpop.f32.mrb[0].mxu0
    %v1671 = vpop.f32.mrb[0].mxu0
    %1672 = vdwg.mxu0
    %s1673 = scalar_lea.vmem [#allocation2], 3
    %v1674 = vld [vmem:[%s1673] ss:$8 sm:$0xf]
    %1675 = vmatprep.subr.bf16.mxu0 %v179
    %1676 = vmatpush1.bf16.msra.mxu0 %v178
    %1677 = vmatprep.subr.bf16.mxu0 %v183
    %1678 = vmatpush1.bf16.msra.mxu0 %v182
    %1679 = vmatprep.subr.bf16.mxu0 %v187
    %1680 = vmatpush1.bf16.msra.mxu0 %v186
    %1681 = vmatprep.subr.bf16.mxu0 %v191
    %1682 = vmatpush1.bf16.msra.mxu0 %v190
    %1683 = vmatprep.subr.bf16.mxu0 %v195
    %1684 = vmatpush1.bf16.msra.mxu0 %v194
    %1685 = vmatprep.subr.bf16.mxu0 %v199
    %1686 = vmatpush1.bf16.msra.mxu0 %v198
    %1687 = vmatprep.subr.bf16.mxu0 %v203
    %1688 = vmatpush1.bf16.msra.mxu0 %v202
    %1689 = vmatprep.subr.bf16.mxu0 %v207
    %1690 = vmatpush1.bf16.msra.mxu0 %v206
    %1691 = vmatprep.subr.bf16.mxu0 0
    %1692 = vmatpush1.bf16.msra.mxu0 0
    %1693 = vmatprep.subr.bf16.mxu0 0
    %1694 = vmatpush1.bf16.msra.mxu0 0
    %1695 = vmatprep.subr.bf16.mxu0 0
    %1696 = vmatpush1.bf16.msra.mxu0 0
    %1697 = vmatprep.subr.bf16.mxu0 0
    %1698 = vmatpush1.bf16.msra.mxu0 0
    %1699 = vmatprep.subr.bf16.mxu0 0
    %1700 = vmatpush1.bf16.msra.mxu0 0
    %1701 = vmatprep.subr.bf16.mxu0 0
    %1702 = vmatpush1.bf16.msra.mxu0 0
    %1703 = vmatprep.subr.bf16.mxu0 0
    %1704 = vmatpush1.bf16.msra.mxu0 0
    %1705 = vmatprep.subr.bf16.mxu0 0
    %1706 = vmatpush1.bf16.msra.mxu0 0
    %1707 = vmatprep.mubr.bf16.mxu0 0
    %1708 = vmatmul.mubr.bf16.gmra.mrb[0].mxu0 %v1478
    %v1709 = vpop.f32.mrb[0].mxu0
    %v1710 = vadd.f32 0.0, %v1709
    %v1711 = vpop.f32.mrb[0].mxu0
    %v1712 = vadd.f32 0.0, %v1711
    %v1713 = vpop.f32.mrb[0].mxu0
    %v1714 = vpop.f32.mrb[0].mxu0
    %1715 = vdwg.mxu0
    %1716 = vmatprep.subr.bf16.mxu0 %v181
    %1717 = vmatpush1.bf16.msra.mxu0 %v180
    %1718 = vmatprep.subr.bf16.mxu0 %v185
    %1719 = vmatpush1.bf16.msra.mxu0 %v184
    %1720 = vmatprep.subr.bf16.mxu0 %v189
    %1721 = vmatpush1.bf16.msra.mxu0 %v188
    %1722 = vmatprep.subr.bf16.mxu0 %v193
    %1723 = vmatpush1.bf16.msra.mxu0 %v192
    %1724 = vmatprep.subr.bf16.mxu0 %v197
    %1725 = vmatpush1.bf16.msra.mxu0 %v196
    %1726 = vmatprep.subr.bf16.mxu0 %v201
    %1727 = vmatpush1.bf16.msra.mxu0 %v200
    %1728 = vmatprep.subr.bf16.mxu0 %v205
    %1729 = vmatpush1.bf16.msra.mxu0 %v204
    %1730 = vmatprep.subr.bf16.mxu0 %v209
    %1731 = vmatpush1.bf16.msra.mxu0 %v208
    %1732 = vmatprep.subr.bf16.mxu0 0
    %1733 = vmatpush1.bf16.msra.mxu0 0
    %1734 = vmatprep.subr.bf16.mxu0 0
    %1735 = vmatpush1.bf16.msra.mxu0 0
    %1736 = vmatprep.subr.bf16.mxu0 0
    %1737 = vmatpush1.bf16.msra.mxu0 0
    %1738 = vmatprep.subr.bf16.mxu0 0
    %1739 = vmatpush1.bf16.msra.mxu0 0
    %1740 = vmatprep.subr.bf16.mxu0 0
    %1741 = vmatpush1.bf16.msra.mxu0 0
    %1742 = vmatprep.subr.bf16.mxu0 0
    %1743 = vmatpush1.bf16.msra.mxu0 0
    %1744 = vmatprep.subr.bf16.mxu0 0
    %1745 = vmatpush1.bf16.msra.mxu0 0
    %1746 = vmatprep.subr.bf16.mxu0 0
    %1747 = vmatpush1.bf16.msra.mxu0 0
    %1748 = vmatprep.mubr.bf16.mxu0 0
    %1749 = vmatmul.mubr.bf16.gmra.mrb[0].mxu0 %v1478
    %v1750 = vpop.f32.mrb[0].mxu0
    %v1751 = vadd.f32 0.0, %v1750
    %v1752 = vpop.f32.mrb[0].mxu0
    %v1753 = vadd.f32 0.0, %v1752
    %v1754 = vpop.f32.mrb[0].mxu0
    %v1755 = vpop.f32.mrb[0].mxu0
    %1756 = vdwg.mxu0
    %v1761 = vcombine.low %v1710, %v1712
    %v1762 = vcombine.low %v1751, %v1753
    %v1764 = vunpack.c.l.s4 1966171168
    %v1765 = vunpack.c.0.s8 %v1764
    %v1766 = vlaneseq
    %v1767 = vshrl.u32 %v1766, 7
    %v1768 = vsub.s32 %v1765, %v1767
    %v1769 = vrot.slane %v1761, %v1768
    %v1771 = vunpack.c.l.s4 1966171168
    %v1772 = vunpack.c.0.s8 %v1771
    %v1773 = vlaneseq
    %v1774 = vshrl.u32 %v1773, 7
    %v1775 = vsub.s32 %v1772, %v1774
    %v1776 = vrot.slane %v1762, %v1775
    %v1777 = vcombine.low %v1769, %v1776
    %v1779 = vunpack.c.l.s4 1966171168
    %v1780 = vunpack.c.0.s8 %v1779
    %v1781 = vlaneseq
    %v1782 = vshrl.u32 %v1781, 7
    %v1783 = vsub.s32 %v1780, %v1782
    %v1784 = vrot.slane %v1777, %v1783
    %v1786 = vadd.f32 %v1674, %v1784
    %v1787 = vxor.u32 %v1786, 2147483648
    %v1788 = vmul.f32 %v1787, 1.442695
    %v1789 = vpow.pop %v1788
    %v1790 = vadd.f32 %v1789, 1.0
    %v1791 = vrcp.pop %v1790
    %v1792 = vmul.f32 1.0, %v1791
    %v1794 = vrot.slane %v1786, 3
    %v1796 = vtanh.pop %v1794
    %v1798 = vrot.slane %v1792, 1
    %v1800 = vmul.f32 %v1798, %v1473
    %v1801 = vmul.f32 %v1792, %v1796
    %v1802 = vadd.f32 %v1800, %v1801
    %v1803 = vtanh.pop %v1802
    %v1804 = vrot.slane %v1792, 2
    %v1806 = vmul.f32 %v1804, %v1803
    %v1807 = vpack.c.bf16 %v1806, %v1806
    %1808 = vmatprep.subr.bf16.mxu0 %v275
    %1809 = vmatpush1.bf16.msra.mxu0 %v274
    %1810 = vmatprep.subr.bf16.mxu0 %v279
    %1811 = vmatpush1.bf16.msra.mxu0 %v278
    %1812 = vmatprep.subr.bf16.mxu0 %v283
    %1813 = vmatpush1.bf16.msra.mxu0 %v282
    %1814 = vmatprep.subr.bf16.mxu0 %v287
    %1815 = vmatpush1.bf16.msra.mxu0 %v286
    %1816 = vmatprep.subr.bf16.mxu0 %v291
    %1817 = vmatpush1.bf16.msra.mxu0 %v290
    %1818 = vmatprep.subr.bf16.mxu0 %v295
    %1819 = vmatpush1.bf16.msra.mxu0 %v294
    %1820 = vmatprep.subr.bf16.mxu0 %v299
    %1821 = vmatpush1.bf16.msra.mxu0 %v298
    %1822 = vmatprep.subr.bf16.mxu0 %v303
    %1823 = vmatpush1.bf16.msra.mxu0 %v302
    %1824 = vmatprep.subr.bf16.mxu0 0
    %1825 = vmatpush1.bf16.msra.mxu0 0
    %1826 = vmatprep.subr.bf16.mxu0 0
    %1827 = vmatpush1.bf16.msra.mxu0 0
    %1828 = vmatprep.subr.bf16.mxu0 0
    %1829 = vmatpush1.bf16.msra.mxu0 0
    %1830 = vmatprep.subr.bf16.mxu0 0
    %1831 = vmatpush1.bf16.msra.mxu0 0
    %1832 = vmatprep.subr.bf16.mxu0 0
    %1833 = vmatpush1.bf16.msra.mxu0 0
    %1834 = vmatprep.subr.bf16.mxu0 0
    %1835 = vmatpush1.bf16.msra.mxu0 0
    %1836 = vmatprep.subr.bf16.mxu0 0
    %1837 = vmatpush1.bf16.msra.mxu0 0
    %1838 = vmatprep.subr.bf16.mxu0 0
    %1839 = vmatpush1.bf16.msra.mxu0 0
    %1840 = vmatprep.mubr.bf16.mxu0 0
    %1841 = vmatmul.mubr.bf16.gmra.mrb[0].mxu0 %v1807
    %v1842 = vpop.f32.mrb[0].mxu0
    %v1843 = vadd.f32 0.0, %v1842
    %v1844 = vpop.f32.mrb[0].mxu0
    %v1845 = vadd.f32 0.0, %v1844
    %v1846 = vpop.f32.mrb[0].mxu0
    %v1847 = vpop.f32.mrb[0].mxu0
    %1848 = vdwg.mxu0
    %1849 = vmatprep.subr.bf16.mxu0 %v277
    %1850 = vmatpush1.bf16.msra.mxu0 %v276
    %1851 = vmatprep.subr.bf16.mxu0 %v281
    %1852 = vmatpush1.bf16.msra.mxu0 %v280
    %1853 = vmatprep.subr.bf16.mxu0 %v285
    %1854 = vmatpush1.bf16.msra.mxu0 %v284
    %1855 = vmatprep.subr.bf16.mxu0 %v289
    %1856 = vmatpush1.bf16.msra.mxu0 %v288
    %1857 = vmatprep.subr.bf16.mxu0 %v293
    %1858 = vmatpush1.bf16.msra.mxu0 %v292
    %1859 = vmatprep.subr.bf16.mxu0 %v297
    %1860 = vmatpush1.bf16.msra.mxu0 %v296
    %1861 = vmatprep.subr.bf16.mxu0 %v301
    %1862 = vmatpush1.bf16.msra.mxu0 %v300
    %1863 = vmatprep.subr.bf16.mxu0 %v305
    %1864 = vmatpush1.bf16.msra.mxu0 %v304
    %1865 = vmatprep.subr.bf16.mxu0 0
    %1866 = vmatpush1.bf16.msra.mxu0 0
    %1867 = vmatprep.subr.bf16.mxu0 0
    %1868 = vmatpush1.bf16.msra.mxu0 0
    %1869 = vmatprep.subr.bf16.mxu0 0
    %1870 = vmatpush1.bf16.msra.mxu0 0
    %1871 = vmatprep.subr.bf16.mxu0 0
    %1872 = vmatpush1.bf16.msra.mxu0 0
    %1873 = vmatprep.subr.bf16.mxu0 0
    %1874 = vmatpush1.bf16.msra.mxu0 0
    %1875 = vmatprep.subr.bf16.mxu0 0
    %1876 = vmatpush1.bf16.msra.mxu0 0
    %1877 = vmatprep.subr.bf16.mxu0 0
    %1878 = vmatpush1.bf16.msra.mxu0 0
    %1879 = vmatprep.subr.bf16.mxu0 0
    %1880 = vmatpush1.bf16.msra.mxu0 0
    %1881 = vmatprep.mubr.bf16.mxu0 0
    %1882 = vmatmul.mubr.bf16.gmra.mrb[0].mxu0 %v1807
    %v1883 = vpop.f32.mrb[0].mxu0
    %v1884 = vadd.f32 0.0, %v1883
    %v1885 = vpop.f32.mrb[0].mxu0
    %v1886 = vadd.f32 0.0, %v1885
    %v1887 = vpop.f32.mrb[0].mxu0
    %v1888 = vpop.f32.mrb[0].mxu0
    %1889 = vdwg.mxu0
    %v1890 = vadd.f32 %v1626, %v1843
    %v1891 = vadd.f32 %v1628, %v1845
    %v1892 = vadd.f32 %v1667, %v1884
    %v1893 = vadd.f32 %v1669, %v1886
    %v1894 = vxor.u32 %v1890, 2147483648
    %v1895 = vxor.u32 %v1891, 2147483648
    %v1896 = vxor.u32 %v1892, 2147483648
    %v1897 = vmul.f32 %v1894, 1.442695
    %v1898 = vpow.pop %v1897
    %v1899 = vmul.f32 %v1895, 1.442695
    %v1900 = vpow.pop %v1899
    %v1901 = vmul.f32 %v1896, 1.442695
    %v1902 = vpow.pop %v1901
    %v1903 = vadd.f32 %v1898, 1.0
    %v1904 = vadd.f32 %v1900, 1.0
    %v1905 = vadd.f32 %v1902, 1.0
    %v1906 = vrcp.pop %v1903
    %v1907 = vmul.f32 1.0, %v1906
    %v1908 = vrcp.pop %v1904
    %v1909 = vmul.f32 1.0, %v1908
    %v1910 = vrcp.pop %v1905
    %v1911 = vmul.f32 1.0, %v1910
    %v1912 = vtanh.pop %v1893
    %v1913 = vmul.f32 %v1909, %v1586
    %v1914 = vmul.f32 %v1907, %v1912
    %v1915 = vadd.f32 %v1913, %v1914
    %v1916 = vtanh.pop %v1915
    %v1917 = vmul.f32 %v1911, %v1916
    %1918 = vst [vmem:[#allocation3 + $0x3] sm:$0x1] %v1917
    %v1919 = vpack.c.bf16 %v1917, %v1917
    %1920 = vmatprep.subr.bf16.mxu0 %v371
    %1921 = vmatpush1.bf16.msra.mxu0 %v370
    %1922 = vmatprep.subr.bf16.mxu0 %v375
    %1923 = vmatpush1.bf16.msra.mxu0 %v374
    %1924 = vmatprep.subr.bf16.mxu0 %v379
    %1925 = vmatpush1.bf16.msra.mxu0 %v378
    %1926 = vmatprep.subr.bf16.mxu0 %v383
    %1927 = vmatpush1.bf16.msra.mxu0 %v382
    %1928 = vmatprep.subr.bf16.mxu0 %v387
    %1929 = vmatpush1.bf16.msra.mxu0 %v386
    %1930 = vmatprep.subr.bf16.mxu0 %v391
    %1931 = vmatpush1.bf16.msra.mxu0 %v390
    %1932 = vmatprep.subr.bf16.mxu0 %v395
    %1933 = vmatpush1.bf16.msra.mxu0 %v394
    %1934 = vmatprep.subr.bf16.mxu0 %v399
    %1935 = vmatpush1.bf16.msra.mxu0 %v398
    %1936 = vmatprep.subr.bf16.mxu0 0
    %1937 = vmatpush1.bf16.msra.mxu0 0
    %1938 = vmatprep.subr.bf16.mxu0 0
    %1939 = vmatpush1.bf16.msra.mxu0 0
    %1940 = vmatprep.subr.bf16.mxu0 0
    %1941 = vmatpush1.bf16.msra.mxu0 0
    %1942 = vmatprep.subr.bf16.mxu0 0
    %1943 = vmatpush1.bf16.msra.mxu0 0
    %1944 = vmatprep.subr.bf16.mxu0 0
    %1945 = vmatpush1.bf16.msra.mxu0 0
    %1946 = vmatprep.subr.bf16.mxu0 0
    %1947 = vmatpush1.bf16.msra.mxu0 0
    %1948 = vmatprep.subr.bf16.mxu0 0
    %1949 = vmatpush1.bf16.msra.mxu0 0
    %1950 = vmatprep.subr.bf16.mxu0 0
    %1951 = vmatpush1.bf16.msra.mxu0 0
    %1952 = vmatprep.mubr.bf16.mxu0 0
    %1953 = vmatmul.mubr.bf16.gmra.mrb[0].mxu0 %v1919
    %v1954 = vpop.f32.mrb[0].mxu0
    %v1955 = vadd.f32 %v588, %v1954
    %v1956 = vpop.f32.mrb[0].mxu0
    %v1957 = vadd.f32 %v592, %v1956
    %v1958 = vpop.f32.mrb[0].mxu0
    %v1959 = vpop.f32.mrb[0].mxu0
    %1960 = vdwg.mxu0
    %1961 = vmatprep.subr.bf16.mxu0 %v373
    %1962 = vmatpush1.bf16.msra.mxu0 %v372
    %1963 = vmatprep.subr.bf16.mxu0 %v377
    %1964 = vmatpush1.bf16.msra.mxu0 %v376
    %1965 = vmatprep.subr.bf16.mxu0 %v381
    %1966 = vmatpush1.bf16.msra.mxu0 %v380
    %1967 = vmatprep.subr.bf16.mxu0 %v385
    %1968 = vmatpush1.bf16.msra.mxu0 %v384
    %1969 = vmatprep.subr.bf16.mxu0 %v389
    %1970 = vmatpush1.bf16.msra.mxu0 %v388
    %1971 = vmatprep.subr.bf16.mxu0 %v393
    %1972 = vmatpush1.bf16.msra.mxu0 %v392
    %1973 = vmatprep.subr.bf16.mxu0 %v397
    %1974 = vmatpush1.bf16.msra.mxu0 %v396
    %1975 = vmatprep.subr.bf16.mxu0 %v401
    %1976 = vmatpush1.bf16.msra.mxu0 %v400
    %1977 = vmatprep.subr.bf16.mxu0 0
    %1978 = vmatpush1.bf16.msra.mxu0 0
    %1979 = vmatprep.subr.bf16.mxu0 0
    %1980 = vmatpush1.bf16.msra.mxu0 0
    %1981 = vmatprep.subr.bf16.mxu0 0
    %1982 = vmatpush1.bf16.msra.mxu0 0
    %1983 = vmatprep.subr.bf16.mxu0 0
    %1984 = vmatpush1.bf16.msra.mxu0 0
    %1985 = vmatprep.subr.bf16.mxu0 0
    %1986 = vmatpush1.bf16.msra.mxu0 0
    %1987 = vmatprep.subr.bf16.mxu0 0
    %1988 = vmatpush1.bf16.msra.mxu0 0
    %1989 = vmatprep.subr.bf16.mxu0 0
    %1990 = vmatpush1.bf16.msra.mxu0 0
    %1991 = vmatprep.subr.bf16.mxu0 0
    %1992 = vmatpush1.bf16.msra.mxu0 0
    %1993 = vmatprep.mubr.bf16.mxu0 0
    %1994 = vmatmul.mubr.bf16.gmra.mrb[0].mxu0 %v1919
    %v1995 = vpop.f32.mrb[0].mxu0
    %v1996 = vadd.f32 %v596, %v1995
    %v1997 = vpop.f32.mrb[0].mxu0
    %v1998 = vadd.f32 %v600, %v1997
    %v1999 = vpop.f32.mrb[0].mxu0
    %v2000 = vpop.f32.mrb[0].mxu0
    %2001 = vdwg.mxu0
    %s2002 = scalar_lea.vmem [#allocation2], 4
    %v2003 = vld [vmem:[%s2002] ss:$8 sm:$0xf]
    %2004 = vmatprep.subr.bf16.mxu0 %v179
    %2005 = vmatpush1.bf16.msra.mxu0 %v178
    %2006 = vmatprep.subr.bf16.mxu0 %v183
    %2007 = vmatpush1.bf16.msra.mxu0 %v182
    %2008 = vmatprep.subr.bf16.mxu0 %v187
    %2009 = vmatpush1.bf16.msra.mxu0 %v186
    %2010 = vmatprep.subr.bf16.mxu0 %v191
    %2011 = vmatpush1.bf16.msra.mxu0 %v190
    %2012 = vmatprep.subr.bf16.mxu0 %v195
    %2013 = vmatpush1.bf16.msra.mxu0 %v194
    %2014 = vmatprep.subr.bf16.mxu0 %v199
    %2015 = vmatpush1.bf16.msra.mxu0 %v198
    %2016 = vmatprep.subr.bf16.mxu0 %v203
    %2017 = vmatpush1.bf16.msra.mxu0 %v202
    %2018 = vmatprep.subr.bf16.mxu0 %v207
    %2019 = vmatpush1.bf16.msra.mxu0 %v206
    %2020 = vmatprep.subr.bf16.mxu0 0
    %2021 = vmatpush1.bf16.msra.mxu0 0
    %2022 = vmatprep.subr.bf16.mxu0 0
    %2023 = vmatpush1.bf16.msra.mxu0 0
    %2024 = vmatprep.subr.bf16.mxu0 0
    %2025 = vmatpush1.bf16.msra.mxu0 0
    %2026 = vmatprep.subr.bf16.mxu0 0
    %2027 = vmatpush1.bf16.msra.mxu0 0
    %2028 = vmatprep.subr.bf16.mxu0 0
    %2029 = vmatpush1.bf16.msra.mxu0 0
    %2030 = vmatprep.subr.bf16.mxu0 0
    %2031 = vmatpush1.bf16.msra.mxu0 0
    %2032 = vmatprep.subr.bf16.mxu0 0
    %2033 = vmatpush1.bf16.msra.mxu0 0
    %2034 = vmatprep.subr.bf16.mxu0 0
    %2035 = vmatpush1.bf16.msra.mxu0 0
    %2036 = vmatprep.mubr.bf16.mxu0 0
    %2037 = vmatmul.mubr.bf16.gmra.mrb[0].mxu0 %v1807
    %v2038 = vpop.f32.mrb[0].mxu0
    %v2039 = vadd.f32 0.0, %v2038
    %v2040 = vpop.f32.mrb[0].mxu0
    %v2041 = vadd.f32 0.0, %v2040
    %v2042 = vpop.f32.mrb[0].mxu0
    %v2043 = vpop.f32.mrb[0].mxu0
    %2044 = vdwg.mxu0
    %2045 = vmatprep.subr.bf16.mxu0 %v181
    %2046 = vmatpush1.bf16.msra.mxu0 %v180
    %2047 = vmatprep.subr.bf16.mxu0 %v185
    %2048 = vmatpush1.bf16.msra.mxu0 %v184
    %2049 = vmatprep.subr.bf16.mxu0 %v189
    %2050 = vmatpush1.bf16.msra.mxu0 %v188
    %2051 = vmatprep.subr.bf16.mxu0 %v193
    %2052 = vmatpush1.bf16.msra.mxu0 %v192
    %2053 = vmatprep.subr.bf16.mxu0 %v197
    %2054 = vmatpush1.bf16.msra.mxu0 %v196
    %2055 = vmatprep.subr.bf16.mxu0 %v201
    %2056 = vmatpush1.bf16.msra.mxu0 %v200
    %2057 = vmatprep.subr.bf16.mxu0 %v205
    %2058 = vmatpush1.bf16.msra.mxu0 %v204
    %2059 = vmatprep.subr.bf16.mxu0 %v209
    %2060 = vmatpush1.bf16.msra.mxu0 %v208
    %2061 = vmatprep.subr.bf16.mxu0 0
    %2062 = vmatpush1.bf16.msra.mxu0 0
    %2063 = vmatprep.subr.bf16.mxu0 0
    %2064 = vmatpush1.bf16.msra.mxu0 0
    %2065 = vmatprep.subr.bf16.mxu0 0
    %2066 = vmatpush1.bf16.msra.mxu0 0
    %2067 = vmatprep.subr.bf16.mxu0 0
    %2068 = vmatpush1.bf16.msra.mxu0 0
    %2069 = vmatprep.subr.bf16.mxu0 0
    %2070 = vmatpush1.bf16.msra.mxu0 0
    %2071 = vmatprep.subr.bf16.mxu0 0
    %2072 = vmatpush1.bf16.msra.mxu0 0
    %2073 = vmatprep.subr.bf16.mxu0 0
    %2074 = vmatpush1.bf16.msra.mxu0 0
    %2075 = vmatprep.subr.bf16.mxu0 0
    %2076 = vmatpush1.bf16.msra.mxu0 0
    %2077 = vmatprep.mubr.bf16.mxu0 0
    %2078 = vmatmul.mubr.bf16.gmra.mrb[0].mxu0 %v1807
    %v2079 = vpop.f32.mrb[0].mxu0
    %v2080 = vadd.f32 0.0, %v2079
    %v2081 = vpop.f32.mrb[0].mxu0
    %v2082 = vadd.f32 0.0, %v2081
    %v2083 = vpop.f32.mrb[0].mxu0
    %v2084 = vpop.f32.mrb[0].mxu0
    %2085 = vdwg.mxu0
    %v2090 = vcombine.low %v2039, %v2041
    %v2091 = vcombine.low %v2080, %v2082
    %v2093 = vunpack.c.l.s4 1966171168
    %v2094 = vunpack.c.0.s8 %v2093
    %v2095 = vlaneseq
    %v2096 = vshrl.u32 %v2095, 7
    %v2097 = vsub.s32 %v2094, %v2096
    %v2098 = vrot.slane %v2090, %v2097
    %v2100 = vunpack.c.l.s4 1966171168
    %v2101 = vunpack.c.0.s8 %v2100
    %v2102 = vlaneseq
    %v2103 = vshrl.u32 %v2102, 7
    %v2104 = vsub.s32 %v2101, %v2103
    %v2105 = vrot.slane %v2091, %v2104
    %v2106 = vcombine.low %v2098, %v2105
    %v2108 = vunpack.c.l.s4 1966171168
    %v2109 = vunpack.c.0.s8 %v2108
    %v2110 = vlaneseq
    %v2111 = vshrl.u32 %v2110, 7
    %v2112 = vsub.s32 %v2109, %v2111
    %v2113 = vrot.slane %v2106, %v2112
    %v2115 = vadd.f32 %v2003, %v2113
    %v2116 = vxor.u32 %v2115, 2147483648
    %v2117 = vmul.f32 %v2116, 1.442695
    %v2118 = vpow.pop %v2117
    %v2119 = vadd.f32 %v2118, 1.0
    %v2120 = vrcp.pop %v2119
    %v2121 = vmul.f32 1.0, %v2120
    %v2123 = vrot.slane %v2115, 3
    %v2125 = vtanh.pop %v2123
    %v2127 = vrot.slane %v2121, 1
    %v2129 = vmul.f32 %v2127, %v1802
    %v2130 = vmul.f32 %v2121, %v2125
    %v2131 = vadd.f32 %v2129, %v2130
    %v2132 = vtanh.pop %v2131
    %v2133 = vrot.slane %v2121, 2
    %v2135 = vmul.f32 %v2133, %v2132
    %v2136 = vpack.c.bf16 %v2135, %v2135
    %2137 = vmatprep.subr.bf16.mxu0 %v275
    %2138 = vmatpush1.bf16.msra.mxu0 %v274
    %2139 = vmatprep.subr.bf16.mxu0 %v279
    %2140 = vmatpush1.bf16.msra.mxu0 %v278
    %2141 = vmatprep.subr.bf16.mxu0 %v283
    %2142 = vmatpush1.bf16.msra.mxu0 %v282
    %2143 = vmatprep.subr.bf16.mxu0 %v287
    %2144 = vmatpush1.bf16.msra.mxu0 %v286
    %2145 = vmatprep.subr.bf16.mxu0 %v291
    %2146 = vmatpush1.bf16.msra.mxu0 %v290
    %2147 = vmatprep.subr.bf16.mxu0 %v295
    %2148 = vmatpush1.bf16.msra.mxu0 %v294
    %2149 = vmatprep.subr.bf16.mxu0 %v299
    %2150 = vmatpush1.bf16.msra.mxu0 %v298
    %2151 = vmatprep.subr.bf16.mxu0 %v303
    %2152 = vmatpush1.bf16.msra.mxu0 %v302
    %2153 = vmatprep.subr.bf16.mxu0 0
    %2154 = vmatpush1.bf16.msra.mxu0 0
    %2155 = vmatprep.subr.bf16.mxu0 0
    %2156 = vmatpush1.bf16.msra.mxu0 0
    %2157 = vmatprep.subr.bf16.mxu0 0
    %2158 = vmatpush1.bf16.msra.mxu0 0
    %2159 = vmatprep.subr.bf16.mxu0 0
    %2160 = vmatpush1.bf16.msra.mxu0 0
    %2161 = vmatprep.subr.bf16.mxu0 0
    %2162 = vmatpush1.bf16.msra.mxu0 0
    %2163 = vmatprep.subr.bf16.mxu0 0
    %2164 = vmatpush1.bf16.msra.mxu0 0
    %2165 = vmatprep.subr.bf16.mxu0 0
    %2166 = vmatpush1.bf16.msra.mxu0 0
    %2167 = vmatprep.subr.bf16.mxu0 0
    %2168 = vmatpush1.bf16.msra.mxu0 0
    %2169 = vmatprep.mubr.bf16.mxu0 0
    %2170 = vmatmul.mubr.bf16.gmra.mrb[0].mxu0 %v2136
    %v2171 = vpop.f32.mrb[0].mxu0
    %v2172 = vadd.f32 0.0, %v2171
    %v2173 = vpop.f32.mrb[0].mxu0
    %v2174 = vadd.f32 0.0, %v2173
    %v2175 = vpop.f32.mrb[0].mxu0
    %v2176 = vpop.f32.mrb[0].mxu0
    %2177 = vdwg.mxu0
    %2178 = vmatprep.subr.bf16.mxu0 %v277
    %2179 = vmatpush1.bf16.msra.mxu0 %v276
    %2180 = vmatprep.subr.bf16.mxu0 %v281
    %2181 = vmatpush1.bf16.msra.mxu0 %v280
    %2182 = vmatprep.subr.bf16.mxu0 %v285
    %2183 = vmatpush1.bf16.msra.mxu0 %v284
    %2184 = vmatprep.subr.bf16.mxu0 %v289
    %2185 = vmatpush1.bf16.msra.mxu0 %v288
    %2186 = vmatprep.subr.bf16.mxu0 %v293
    %2187 = vmatpush1.bf16.msra.mxu0 %v292
    %2188 = vmatprep.subr.bf16.mxu0 %v297
    %2189 = vmatpush1.bf16.msra.mxu0 %v296
    %2190 = vmatprep.subr.bf16.mxu0 %v301
    %2191 = vmatpush1.bf16.msra.mxu0 %v300
    %2192 = vmatprep.subr.bf16.mxu0 %v305
    %2193 = vmatpush1.bf16.msra.mxu0 %v304
    %2194 = vmatprep.subr.bf16.mxu0 0
    %2195 = vmatpush1.bf16.msra.mxu0 0
    %2196 = vmatprep.subr.bf16.mxu0 0
    %2197 = vmatpush1.bf16.msra.mxu0 0
    %2198 = vmatprep.subr.bf16.mxu0 0
    %2199 = vmatpush1.bf16.msra.mxu0 0
    %2200 = vmatprep.subr.bf16.mxu0 0
    %2201 = vmatpush1.bf16.msra.mxu0 0
    %2202 = vmatprep.subr.bf16.mxu0 0
    %2203 = vmatpush1.bf16.msra.mxu0 0
    %2204 = vmatprep.subr.bf16.mxu0 0
    %2205 = vmatpush1.bf16.msra.mxu0 0
    %2206 = vmatprep.subr.bf16.mxu0 0
    %2207 = vmatpush1.bf16.msra.mxu0 0
    %2208 = vmatprep.subr.bf16.mxu0 0
    %2209 = vmatpush1.bf16.msra.mxu0 0
    %2210 = vmatprep.mubr.bf16.mxu0 0
    %2211 = vmatmul.mubr.bf16.gmra.mrb[0].mxu0 %v2136
    %v2212 = vpop.f32.mrb[0].mxu0
    %v2213 = vadd.f32 0.0, %v2212
    %v2214 = vpop.f32.mrb[0].mxu0
    %v2215 = vadd.f32 0.0, %v2214
    %v2216 = vpop.f32.mrb[0].mxu0
    %v2217 = vpop.f32.mrb[0].mxu0
    %2218 = vdwg.mxu0
    %v2219 = vadd.f32 %v1955, %v2172
    %v2220 = vadd.f32 %v1957, %v2174
    %v2221 = vadd.f32 %v1996, %v2213
    %v2222 = vadd.f32 %v1998, %v2215
    %v2223 = vxor.u32 %v2219, 2147483648
    %v2224 = vxor.u32 %v2220, 2147483648
    %v2225 = vxor.u32 %v2221, 2147483648
    %v2226 = vmul.f32 %v2223, 1.442695
    %v2227 = vpow.pop %v2226
    %v2228 = vmul.f32 %v2224, 1.442695
    %v2229 = vpow.pop %v2228
    %v2230 = vmul.f32 %v2225, 1.442695
    %v2231 = vpow.pop %v2230
    %v2232 = vadd.f32 %v2227, 1.0
    %v2233 = vadd.f32 %v2229, 1.0
    %v2234 = vadd.f32 %v2231, 1.0
    %v2235 = vrcp.pop %v2232
    %v2236 = vmul.f32 1.0, %v2235
    %v2237 = vrcp.pop %v2233
    %v2238 = vmul.f32 1.0, %v2237
    %v2239 = vrcp.pop %v2234
    %v2240 = vmul.f32 1.0, %v2239
    %v2241 = vtanh.pop %v2222
    %v2242 = vmul.f32 %v2238, %v1915
    %v2243 = vmul.f32 %v2236, %v2241
    %v2244 = vadd.f32 %v2242, %v2243
    %v2245 = vtanh.pop %v2244
    %v2246 = vmul.f32 %v2240, %v2245
    %2247 = vst [vmem:[#allocation3 + $0x4] sm:$0x1] %v2246
    %v2248 = vpack.c.bf16 %v2246, %v2246
    %2249 = vmatprep.subr.bf16.mxu0 %v371
    %2250 = vmatpush1.bf16.msra.mxu0 %v370
    %2251 = vmatprep.subr.bf16.mxu0 %v375
    %2252 = vmatpush1.bf16.msra.mxu0 %v374
    %2253 = vmatprep.subr.bf16.mxu0 %v379
    %2254 = vmatpush1.bf16.msra.mxu0 %v378
    %2255 = vmatprep.subr.bf16.mxu0 %v383
    %2256 = vmatpush1.bf16.msra.mxu0 %v382
    %2257 = vmatprep.subr.bf16.mxu0 %v387
    %2258 = vmatpush1.bf16.msra.mxu0 %v386
    %2259 = vmatprep.subr.bf16.mxu0 %v391
    %2260 = vmatpush1.bf16.msra.mxu0 %v390
    %2261 = vmatprep.subr.bf16.mxu0 %v395
    %2262 = vmatpush1.bf16.msra.mxu0 %v394
    %2263 = vmatprep.subr.bf16.mxu0 %v399
    %2264 = vmatpush1.bf16.msra.mxu0 %v398
    %2265 = vmatprep.subr.bf16.mxu0 0
    %2266 = vmatpush1.bf16.msra.mxu0 0
    %2267 = vmatprep.subr.bf16.mxu0 0
    %2268 = vmatpush1.bf16.msra.mxu0 0
    %2269 = vmatprep.subr.bf16.mxu0 0
    %2270 = vmatpush1.bf16.msra.mxu0 0
    %2271 = vmatprep.subr.bf16.mxu0 0
    %2272 = vmatpush1.bf16.msra.mxu0 0
    %2273 = vmatprep.subr.bf16.mxu0 0
    %2274 = vmatpush1.bf16.msra.mxu0 0
    %2275 = vmatprep.subr.bf16.mxu0 0
    %2276 = vmatpush1.bf16.msra.mxu0 0
    %2277 = vmatprep.subr.bf16.mxu0 0
    %2278 = vmatpush1.bf16.msra.mxu0 0
    %2279 = vmatprep.subr.bf16.mxu0 0
    %2280 = vmatpush1.bf16.msra.mxu0 0
    %2281 = vmatprep.mubr.bf16.mxu0 0
    %2282 = vmatmul.mubr.bf16.gmra.mrb[0].mxu0 %v2248
    %v2283 = vpop.f32.mrb[0].mxu0
    %v2284 = vadd.f32 %v588, %v2283
    %v2285 = vpop.f32.mrb[0].mxu0
    %v2286 = vadd.f32 %v592, %v2285
    %v2287 = vpop.f32.mrb[0].mxu0
    %v2288 = vpop.f32.mrb[0].mxu0
    %2289 = vdwg.mxu0
    %2290 = vmatprep.subr.bf16.mxu0 %v373
    %2291 = vmatpush1.bf16.msra.mxu0 %v372
    %2292 = vmatprep.subr.bf16.mxu0 %v377
    %2293 = vmatpush1.bf16.msra.mxu0 %v376
    %2294 = vmatprep.subr.bf16.mxu0 %v381
    %2295 = vmatpush1.bf16.msra.mxu0 %v380
    %2296 = vmatprep.subr.bf16.mxu0 %v385
    %2297 = vmatpush1.bf16.msra.mxu0 %v384
    %2298 = vmatprep.subr.bf16.mxu0 %v389
    %2299 = vmatpush1.bf16.msra.mxu0 %v388
    %2300 = vmatprep.subr.bf16.mxu0 %v393
    %2301 = vmatpush1.bf16.msra.mxu0 %v392
    %2302 = vmatprep.subr.bf16.mxu0 %v397
    %2303 = vmatpush1.bf16.msra.mxu0 %v396
    %2304 = vmatprep.subr.bf16.mxu0 %v401
    %2305 = vmatpush1.bf16.msra.mxu0 %v400
    %2306 = vmatprep.subr.bf16.mxu0 0
    %2307 = vmatpush1.bf16.msra.mxu0 0
    %2308 = vmatprep.subr.bf16.mxu0 0
    %2309 = vmatpush1.bf16.msra.mxu0 0
    %2310 = vmatprep.subr.bf16.mxu0 0
    %2311 = vmatpush1.bf16.msra.mxu0 0
    %2312 = vmatprep.subr.bf16.mxu0 0
    %2313 = vmatpush1.bf16.msra.mxu0 0
    %2314 = vmatprep.subr.bf16.mxu0 0
    %2315 = vmatpush1.bf16.msra.mxu0 0
    %2316 = vmatprep.subr.bf16.mxu0 0
    %2317 = vmatpush1.bf16.msra.mxu0 0
    %2318 = vmatprep.subr.bf16.mxu0 0
    %2319 = vmatpush1.bf16.msra.mxu0 0
    %2320 = vmatprep.subr.bf16.mxu0 0
    %2321 = vmatpush1.bf16.msra.mxu0 0
    %2322 = vmatprep.mubr.bf16.mxu0 0
    %2323 = vmatmul.mubr.bf16.gmra.mrb[0].mxu0 %v2248
    %v2324 = vpop.f32.mrb[0].mxu0
    %v2325 = vadd.f32 %v596, %v2324
    %v2326 = vpop.f32.mrb[0].mxu0
    %v2327 = vadd.f32 %v600, %v2326
    %v2328 = vpop.f32.mrb[0].mxu0
    %v2329 = vpop.f32.mrb[0].mxu0
    %2330 = vdwg.mxu0
    %s2331 = scalar_lea.vmem [#allocation2], 5
    %v2332 = vld [vmem:[%s2331] ss:$8 sm:$0xf]
    %2333 = vmatprep.subr.bf16.mxu0 %v179
    %2334 = vmatpush1.bf16.msra.mxu0 %v178
    %2335 = vmatprep.subr.bf16.mxu0 %v183
    %2336 = vmatpush1.bf16.msra.mxu0 %v182
    %2337 = vmatprep.subr.bf16.mxu0 %v187
    %2338 = vmatpush1.bf16.msra.mxu0 %v186
    %2339 = vmatprep.subr.bf16.mxu0 %v191
    %2340 = vmatpush1.bf16.msra.mxu0 %v190
    %2341 = vmatprep.subr.bf16.mxu0 %v195
    %2342 = vmatpush1.bf16.msra.mxu0 %v194
    %2343 = vmatprep.subr.bf16.mxu0 %v199
    %2344 = vmatpush1.bf16.msra.mxu0 %v198
    %2345 = vmatprep.subr.bf16.mxu0 %v203
    %2346 = vmatpush1.bf16.msra.mxu0 %v202
    %2347 = vmatprep.subr.bf16.mxu0 %v207
    %2348 = vmatpush1.bf16.msra.mxu0 %v206
    %2349 = vmatprep.subr.bf16.mxu0 0
    %2350 = vmatpush1.bf16.msra.mxu0 0
    %2351 = vmatprep.subr.bf16.mxu0 0
    %2352 = vmatpush1.bf16.msra.mxu0 0
    %2353 = vmatprep.subr.bf16.mxu0 0
    %2354 = vmatpush1.bf16.msra.mxu0 0
    %2355 = vmatprep.subr.bf16.mxu0 0
    %2356 = vmatpush1.bf16.msra.mxu0 0
    %2357 = vmatprep.subr.bf16.mxu0 0
    %2358 = vmatpush1.bf16.msra.mxu0 0
    %2359 = vmatprep.subr.bf16.mxu0 0
    %2360 = vmatpush1.bf16.msra.mxu0 0
    %2361 = vmatprep.subr.bf16.mxu0 0
    %2362 = vmatpush1.bf16.msra.mxu0 0
    %2363 = vmatprep.subr.bf16.mxu0 0
    %2364 = vmatpush1.bf16.msra.mxu0 0
    %2365 = vmatprep.mubr.bf16.mxu0 0
    %2366 = vmatmul.mubr.bf16.gmra.mrb[0].mxu0 %v2136
    %v2367 = vpop.f32.mrb[0].mxu0
    %v2368 = vadd.f32 0.0, %v2367
    %v2369 = vpop.f32.mrb[0].mxu0
    %v2370 = vadd.f32 0.0, %v2369
    %v2371 = vpop.f32.mrb[0].mxu0
    %v2372 = vpop.f32.mrb[0].mxu0
    %2373 = vdwg.mxu0
    %2374 = vmatprep.subr.bf16.mxu0 %v181
    %2375 = vmatpush1.bf16.msra.mxu0 %v180
    %2376 = vmatprep.subr.bf16.mxu0 %v185
    %2377 = vmatpush1.bf16.msra.mxu0 %v184
    %2378 = vmatprep.subr.bf16.mxu0 %v189
    %2379 = vmatpush1.bf16.msra.mxu0 %v188
    %2380 = vmatprep.subr.bf16.mxu0 %v193
    %2381 = vmatpush1.bf16.msra.mxu0 %v192
    %2382 = vmatprep.subr.bf16.mxu0 %v197
    %2383 = vmatpush1.bf16.msra.mxu0 %v196
    %2384 = vmatprep.subr.bf16.mxu0 %v201
    %2385 = vmatpush1.bf16.msra.mxu0 %v200
    %2386 = vmatprep.subr.bf16.mxu0 %v205
    %2387 = vmatpush1.bf16.msra.mxu0 %v204
    %2388 = vmatprep.subr.bf16.mxu0 %v209
    %2389 = vmatpush1.bf16.msra.mxu0 %v208
    %2390 = vmatprep.subr.bf16.mxu0 0
    %2391 = vmatpush1.bf16.msra.mxu0 0
    %2392 = vmatprep.subr.bf16.mxu0 0
    %2393 = vmatpush1.bf16.msra.mxu0 0
    %2394 = vmatprep.subr.bf16.mxu0 0
    %2395 = vmatpush1.bf16.msra.mxu0 0
    %2396 = vmatprep.subr.bf16.mxu0 0
    %2397 = vmatpush1.bf16.msra.mxu0 0
    %2398 = vmatprep.subr.bf16.mxu0 0
    %2399 = vmatpush1.bf16.msra.mxu0 0
    %2400 = vmatprep.subr.bf16.mxu0 0
    %2401 = vmatpush1.bf16.msra.mxu0 0
    %2402 = vmatprep.subr.bf16.mxu0 0
    %2403 = vmatpush1.bf16.msra.mxu0 0
    %2404 = vmatprep.subr.bf16.mxu0 0
    %2405 = vmatpush1.bf16.msra.mxu0 0
    %2406 = vmatprep.mubr.bf16.mxu0 0
    %2407 = vmatmul.mubr.bf16.gmra.mrb[0].mxu0 %v2136
    %v2408 = vpop.f32.mrb[0].mxu0
    %v2409 = vadd.f32 0.0, %v2408
    %v2410 = vpop.f32.mrb[0].mxu0
    %v2411 = vadd.f32 0.0, %v2410
    %v2412 = vpop.f32.mrb[0].mxu0
    %v2413 = vpop.f32.mrb[0].mxu0
    %2414 = vdwg.mxu0
    %v2419 = vcombine.low %v2368, %v2370
    %v2420 = vcombine.low %v2409, %v2411
    %v2422 = vunpack.c.l.s4 1966171168
    %v2423 = vunpack.c.0.s8 %v2422
    %v2424 = vlaneseq
    %v2425 = vshrl.u32 %v2424, 7
    %v2426 = vsub.s32 %v2423, %v2425
    %v2427 = vrot.slane %v2419, %v2426
    %v2429 = vunpack.c.l.s4 1966171168
    %v2430 = vunpack.c.0.s8 %v2429
    %v2431 = vlaneseq
    %v2432 = vshrl.u32 %v2431, 7
    %v2433 = vsub.s32 %v2430, %v2432
    %v2434 = vrot.slane %v2420, %v2433
    %v2435 = vcombine.low %v2427, %v2434
    %v2437 = vunpack.c.l.s4 1966171168
    %v2438 = vunpack.c.0.s8 %v2437
    %v2439 = vlaneseq
    %v2440 = vshrl.u32 %v2439, 7
    %v2441 = vsub.s32 %v2438, %v2440
    %v2442 = vrot.slane %v2435, %v2441
    %v2444 = vadd.f32 %v2332, %v2442
    %v2445 = vxor.u32 %v2444, 2147483648
    %v2446 = vmul.f32 %v2445, 1.442695
    %v2447 = vpow.pop %v2446
    %v2448 = vadd.f32 %v2447, 1.0
    %v2449 = vrcp.pop %v2448
    %v2450 = vmul.f32 1.0, %v2449
    %v2452 = vrot.slane %v2444, 3
    %v2454 = vtanh.pop %v2452
    %v2456 = vrot.slane %v2450, 1
    %v2458 = vmul.f32 %v2456, %v2131
    %v2459 = vmul.f32 %v2450, %v2454
    %v2460 = vadd.f32 %v2458, %v2459
    %v2461 = vtanh.pop %v2460
    %v2462 = vrot.slane %v2450, 2
    %v2464 = vmul.f32 %v2462, %v2461
    %v2465 = vpack.c.bf16 %v2464, %v2464
    %2466 = vmatprep.subr.bf16.mxu0 %v275
    %2467 = vmatpush1.bf16.msra.mxu0 %v274
    %2468 = vmatprep.subr.bf16.mxu0 %v279
    %2469 = vmatpush1.bf16.msra.mxu0 %v278
    %2470 = vmatprep.subr.bf16.mxu0 %v283
    %2471 = vmatpush1.bf16.msra.mxu0 %v282
    %2472 = vmatprep.subr.bf16.mxu0 %v287
    %2473 = vmatpush1.bf16.msra.mxu0 %v286
    %2474 = vmatprep.subr.bf16.mxu0 %v291
    %2475 = vmatpush1.bf16.msra.mxu0 %v290
    %2476 = vmatprep.subr.bf16.mxu0 %v295
    %2477 = vmatpush1.bf16.msra.mxu0 %v294
    %2478 = vmatprep.subr.bf16.mxu0 %v299
    %2479 = vmatpush1.bf16.msra.mxu0 %v298
    %2480 = vmatprep.subr.bf16.mxu0 %v303
    %2481 = vmatpush1.bf16.msra.mxu0 %v302
    %2482 = vmatprep.subr.bf16.mxu0 0
    %2483 = vmatpush1.bf16.msra.mxu0 0
    %2484 = vmatprep.subr.bf16.mxu0 0
    %2485 = vmatpush1.bf16.msra.mxu0 0
    %2486 = vmatprep.subr.bf16.mxu0 0
    %2487 = vmatpush1.bf16.msra.mxu0 0
    %2488 = vmatprep.subr.bf16.mxu0 0
    %2489 = vmatpush1.bf16.msra.mxu0 0
    %2490 = vmatprep.subr.bf16.mxu0 0
    %2491 = vmatpush1.bf16.msra.mxu0 0
    %2492 = vmatprep.subr.bf16.mxu0 0
    %2493 = vmatpush1.bf16.msra.mxu0 0
    %2494 = vmatprep.subr.bf16.mxu0 0
    %2495 = vmatpush1.bf16.msra.mxu0 0
    %2496 = vmatprep.subr.bf16.mxu0 0
    %2497 = vmatpush1.bf16.msra.mxu0 0
    %2498 = vmatprep.mubr.bf16.mxu0 0
    %2499 = vmatmul.mubr.bf16.gmra.mrb[0].mxu0 %v2465
    %v2500 = vpop.f32.mrb[0].mxu0
    %v2501 = vadd.f32 0.0, %v2500
    %v2502 = vpop.f32.mrb[0].mxu0
    %v2503 = vadd.f32 0.0, %v2502
    %v2504 = vpop.f32.mrb[0].mxu0
    %v2505 = vpop.f32.mrb[0].mxu0
    %2506 = vdwg.mxu0
    %2507 = vmatprep.subr.bf16.mxu0 %v277
    %2508 = vmatpush1.bf16.msra.mxu0 %v276
    %2509 = vmatprep.subr.bf16.mxu0 %v281
    %2510 = vmatpush1.bf16.msra.mxu0 %v280
    %2511 = vmatprep.subr.bf16.mxu0 %v285
    %2512 = vmatpush1.bf16.msra.mxu0 %v284
    %2513 = vmatprep.subr.bf16.mxu0 %v289
    %2514 = vmatpush1.bf16.msra.mxu0 %v288
    %2515 = vmatprep.subr.bf16.mxu0 %v293
    %2516 = vmatpush1.bf16.msra.mxu0 %v292
    %2517 = vmatprep.subr.bf16.mxu0 %v297
    %2518 = vmatpush1.bf16.msra.mxu0 %v296
    %2519 = vmatprep.subr.bf16.mxu0 %v301
    %2520 = vmatpush1.bf16.msra.mxu0 %v300
    %2521 = vmatprep.subr.bf16.mxu0 %v305
    %2522 = vmatpush1.bf16.msra.mxu0 %v304
    %2523 = vmatprep.subr.bf16.mxu0 0
    %2524 = vmatpush1.bf16.msra.mxu0 0
    %2525 = vmatprep.subr.bf16.mxu0 0
    %2526 = vmatpush1.bf16.msra.mxu0 0
    %2527 = vmatprep.subr.bf16.mxu0 0
    %2528 = vmatpush1.bf16.msra.mxu0 0
    %2529 = vmatprep.subr.bf16.mxu0 0
    %2530 = vmatpush1.bf16.msra.mxu0 0
    %2531 = vmatprep.subr.bf16.mxu0 0
    %2532 = vmatpush1.bf16.msra.mxu0 0
    %2533 = vmatprep.subr.bf16.mxu0 0
    %2534 = vmatpush1.bf16.msra.mxu0 0
    %2535 = vmatprep.subr.bf16.mxu0 0
    %2536 = vmatpush1.bf16.msra.mxu0 0
    %2537 = vmatprep.subr.bf16.mxu0 0
    %2538 = vmatpush1.bf16.msra.mxu0 0
    %2539 = vmatprep.mubr.bf16.mxu0 0
    %2540 = vmatmul.mubr.bf16.gmra.mrb[0].mxu0 %v2465
    %v2541 = vpop.f32.mrb[0].mxu0
    %v2542 = vadd.f32 0.0, %v2541
    %v2543 = vpop.f32.mrb[0].mxu0
    %v2544 = vadd.f32 0.0, %v2543
    %v2545 = vpop.f32.mrb[0].mxu0
    %v2546 = vpop.f32.mrb[0].mxu0
    %2547 = vdwg.mxu0
    %v2548 = vadd.f32 %v2284, %v2501
    %v2549 = vadd.f32 %v2286, %v2503
    %v2550 = vadd.f32 %v2325, %v2542
    %v2551 = vadd.f32 %v2327, %v2544
    %v2552 = vxor.u32 %v2548, 2147483648
    %v2553 = vxor.u32 %v2549, 2147483648
    %v2554 = vxor.u32 %v2550, 2147483648
    %v2555 = vmul.f32 %v2552, 1.442695
    %v2556 = vpow.pop %v2555
    %v2557 = vmul.f32 %v2553, 1.442695
    %v2558 = vpow.pop %v2557
    %v2559 = vmul.f32 %v2554, 1.442695
    %v2560 = vpow.pop %v2559
    %v2561 = vadd.f32 %v2556, 1.0
    %v2562 = vadd.f32 %v2558, 1.0
    %v2563 = vadd.f32 %v2560, 1.0
    %v2564 = vrcp.pop %v2561
    %v2565 = vmul.f32 1.0, %v2564
    %v2566 = vrcp.pop %v2562
    %v2567 = vmul.f32 1.0, %v2566
    %v2568 = vrcp.pop %v2563
    %v2569 = vmul.f32 1.0, %v2568
    %v2570 = vtanh.pop %v2551
    %v2571 = vmul.f32 %v2567, %v2244
    %v2572 = vmul.f32 %v2565, %v2570
    %v2573 = vadd.f32 %v2571, %v2572
    %v2574 = vtanh.pop %v2573
    %v2575 = vmul.f32 %v2569, %v2574
    %2576 = vst [vmem:[#allocation3 + $0x5] sm:$0x1] %v2575
    %v2577 = vpack.c.bf16 %v2575, %v2575
    %2578 = vmatprep.subr.bf16.mxu0 %v371
    %2579 = vmatpush1.bf16.msra.mxu0 %v370
    %2580 = vmatprep.subr.bf16.mxu0 %v375
    %2581 = vmatpush1.bf16.msra.mxu0 %v374
    %2582 = vmatprep.subr.bf16.mxu0 %v379
    %2583 = vmatpush1.bf16.msra.mxu0 %v378
    %2584 = vmatprep.subr.bf16.mxu0 %v383
    %2585 = vmatpush1.bf16.msra.mxu0 %v382
    %2586 = vmatprep.subr.bf16.mxu0 %v387
    %2587 = vmatpush1.bf16.msra.mxu0 %v386
    %2588 = vmatprep.subr.bf16.mxu0 %v391
    %2589 = vmatpush1.bf16.msra.mxu0 %v390
    %2590 = vmatprep.subr.bf16.mxu0 %v395
    %2591 = vmatpush1.bf16.msra.mxu0 %v394
    %2592 = vmatprep.subr.bf16.mxu0 %v399
    %2593 = vmatpush1.bf16.msra.mxu0 %v398
    %2594 = vmatprep.subr.bf16.mxu0 0
    %2595 = vmatpush1.bf16.msra.mxu0 0
    %2596 = vmatprep.subr.bf16.mxu0 0
    %2597 = vmatpush1.bf16.msra.mxu0 0
    %2598 = vmatprep.subr.bf16.mxu0 0
    %2599 = vmatpush1.bf16.msra.mxu0 0
    %2600 = vmatprep.subr.bf16.mxu0 0
    %2601 = vmatpush1.bf16.msra.mxu0 0
    %2602 = vmatprep.subr.bf16.mxu0 0
    %2603 = vmatpush1.bf16.msra.mxu0 0
    %2604 = vmatprep.subr.bf16.mxu0 0
    %2605 = vmatpush1.bf16.msra.mxu0 0
    %2606 = vmatprep.subr.bf16.mxu0 0
    %2607 = vmatpush1.bf16.msra.mxu0 0
    %2608 = vmatprep.subr.bf16.mxu0 0
    %2609 = vmatpush1.bf16.msra.mxu0 0
    %2610 = vmatprep.mubr.bf16.mxu0 0
    %2611 = vmatmul.mubr.bf16.gmra.mrb[0].mxu0 %v2577
    %v2612 = vpop.f32.mrb[0].mxu0
    %v2613 = vadd.f32 %v588, %v2612
    %v2614 = vpop.f32.mrb[0].mxu0
    %v2615 = vadd.f32 %v592, %v2614
    %v2616 = vpop.f32.mrb[0].mxu0
    %v2617 = vpop.f32.mrb[0].mxu0
    %2618 = vdwg.mxu0
    %2619 = vmatprep.subr.bf16.mxu0 %v373
    %2620 = vmatpush1.bf16.msra.mxu0 %v372
    %2621 = vmatprep.subr.bf16.mxu0 %v377
    %2622 = vmatpush1.bf16.msra.mxu0 %v376
    %2623 = vmatprep.subr.bf16.mxu0 %v381
    %2624 = vmatpush1.bf16.msra.mxu0 %v380
    %2625 = vmatprep.subr.bf16.mxu0 %v385
    %2626 = vmatpush1.bf16.msra.mxu0 %v384
    %2627 = vmatprep.subr.bf16.mxu0 %v389
    %2628 = vmatpush1.bf16.msra.mxu0 %v388
    %2629 = vmatprep.subr.bf16.mxu0 %v393
    %2630 = vmatpush1.bf16.msra.mxu0 %v392
    %2631 = vmatprep.subr.bf16.mxu0 %v397
    %2632 = vmatpush1.bf16.msra.mxu0 %v396
    %2633 = vmatprep.subr.bf16.mxu0 %v401
    %2634 = vmatpush1.bf16.msra.mxu0 %v400
    %2635 = vmatprep.subr.bf16.mxu0 0
    %2636 = vmatpush1.bf16.msra.mxu0 0
    %2637 = vmatprep.subr.bf16.mxu0 0
    %2638 = vmatpush1.bf16.msra.mxu0 0
    %2639 = vmatprep.subr.bf16.mxu0 0
    %2640 = vmatpush1.bf16.msra.mxu0 0
    %2641 = vmatprep.subr.bf16.mxu0 0
    %2642 = vmatpush1.bf16.msra.mxu0 0
    %2643 = vmatprep.subr.bf16.mxu0 0
    %2644 = vmatpush1.bf16.msra.mxu0 0
    %2645 = vmatprep.subr.bf16.mxu0 0
    %2646 = vmatpush1.bf16.msra.mxu0 0
    %2647 = vmatprep.subr.bf16.mxu0 0
    %2648 = vmatpush1.bf16.msra.mxu0 0
    %2649 = vmatprep.subr.bf16.mxu0 0
    %2650 = vmatpush1.bf16.msra.mxu0 0
    %2651 = vmatprep.mubr.bf16.mxu0 0
    %2652 = vmatmul.mubr.bf16.gmra.mrb[0].mxu0 %v2577
    %v2653 = vpop.f32.mrb[0].mxu0
    %v2654 = vadd.f32 %v596, %v2653
    %v2655 = vpop.f32.mrb[0].mxu0
    %v2656 = vadd.f32 %v600, %v2655
    %v2657 = vpop.f32.mrb[0].mxu0
    %v2658 = vpop.f32.mrb[0].mxu0
    %2659 = vdwg.mxu0
    %s2660 = scalar_lea.vmem [#allocation2], 6
    %v2661 = vld [vmem:[%s2660] ss:$8 sm:$0xf]
    %2662 = vmatprep.subr.bf16.mxu0 %v179
    %2663 = vmatpush1.bf16.msra.mxu0 %v178
    %2664 = vmatprep.subr.bf16.mxu0 %v183
    %2665 = vmatpush1.bf16.msra.mxu0 %v182
    %2666 = vmatprep.subr.bf16.mxu0 %v187
    %2667 = vmatpush1.bf16.msra.mxu0 %v186
    %2668 = vmatprep.subr.bf16.mxu0 %v191
    %2669 = vmatpush1.bf16.msra.mxu0 %v190
    %2670 = vmatprep.subr.bf16.mxu0 %v195
    %2671 = vmatpush1.bf16.msra.mxu0 %v194
    %2672 = vmatprep.subr.bf16.mxu0 %v199
    %2673 = vmatpush1.bf16.msra.mxu0 %v198
    %2674 = vmatprep.subr.bf16.mxu0 %v203
    %2675 = vmatpush1.bf16.msra.mxu0 %v202
    %2676 = vmatprep.subr.bf16.mxu0 %v207
    %2677 = vmatpush1.bf16.msra.mxu0 %v206
    %2678 = vmatprep.subr.bf16.mxu0 0
    %2679 = vmatpush1.bf16.msra.mxu0 0
    %2680 = vmatprep.subr.bf16.mxu0 0
    %2681 = vmatpush1.bf16.msra.mxu0 0
    %2682 = vmatprep.subr.bf16.mxu0 0
    %2683 = vmatpush1.bf16.msra.mxu0 0
    %2684 = vmatprep.subr.bf16.mxu0 0
    %2685 = vmatpush1.bf16.msra.mxu0 0
    %2686 = vmatprep.subr.bf16.mxu0 0
    %2687 = vmatpush1.bf16.msra.mxu0 0
    %2688 = vmatprep.subr.bf16.mxu0 0
    %2689 = vmatpush1.bf16.msra.mxu0 0
    %2690 = vmatprep.subr.bf16.mxu0 0
    %2691 = vmatpush1.bf16.msra.mxu0 0
    %2692 = vmatprep.subr.bf16.mxu0 0
    %2693 = vmatpush1.bf16.msra.mxu0 0
    %2694 = vmatprep.mubr.bf16.mxu0 0
    %2695 = vmatmul.mubr.bf16.gmra.mrb[0].mxu0 %v2465
    %v2696 = vpop.f32.mrb[0].mxu0
    %v2697 = vadd.f32 0.0, %v2696
    %v2698 = vpop.f32.mrb[0].mxu0
    %v2699 = vadd.f32 0.0, %v2698
    %v2700 = vpop.f32.mrb[0].mxu0
    %v2701 = vpop.f32.mrb[0].mxu0
    %2702 = vdwg.mxu0
    %2703 = vmatprep.subr.bf16.mxu0 %v181
    %2704 = vmatpush1.bf16.msra.mxu0 %v180
    %2705 = vmatprep.subr.bf16.mxu0 %v185
    %2706 = vmatpush1.bf16.msra.mxu0 %v184
    %2707 = vmatprep.subr.bf16.mxu0 %v189
    %2708 = vmatpush1.bf16.msra.mxu0 %v188
    %2709 = vmatprep.subr.bf16.mxu0 %v193
    %2710 = vmatpush1.bf16.msra.mxu0 %v192
    %2711 = vmatprep.subr.bf16.mxu0 %v197
    %2712 = vmatpush1.bf16.msra.mxu0 %v196
    %2713 = vmatprep.subr.bf16.mxu0 %v201
    %2714 = vmatpush1.bf16.msra.mxu0 %v200
    %2715 = vmatprep.subr.bf16.mxu0 %v205
    %2716 = vmatpush1.bf16.msra.mxu0 %v204
    %2717 = vmatprep.subr.bf16.mxu0 %v209
    %2718 = vmatpush1.bf16.msra.mxu0 %v208
    %2719 = vmatprep.subr.bf16.mxu0 0
    %2720 = vmatpush1.bf16.msra.mxu0 0
    %2721 = vmatprep.subr.bf16.mxu0 0
    %2722 = vmatpush1.bf16.msra.mxu0 0
    %2723 = vmatprep.subr.bf16.mxu0 0
    %2724 = vmatpush1.bf16.msra.mxu0 0
    %2725 = vmatprep.subr.bf16.mxu0 0
    %2726 = vmatpush1.bf16.msra.mxu0 0
    %2727 = vmatprep.subr.bf16.mxu0 0
    %2728 = vmatpush1.bf16.msra.mxu0 0
    %2729 = vmatprep.subr.bf16.mxu0 0
    %2730 = vmatpush1.bf16.msra.mxu0 0
    %2731 = vmatprep.subr.bf16.mxu0 0
    %2732 = vmatpush1.bf16.msra.mxu0 0
    %2733 = vmatprep.subr.bf16.mxu0 0
    %2734 = vmatpush1.bf16.msra.mxu0 0
    %2735 = vmatprep.mubr.bf16.mxu0 0
    %2736 = vmatmul.mubr.bf16.gmra.mrb[0].mxu0 %v2465
    %v2737 = vpop.f32.mrb[0].mxu0
    %v2738 = vadd.f32 0.0, %v2737
    %v2739 = vpop.f32.mrb[0].mxu0
    %v2740 = vadd.f32 0.0, %v2739
    %v2741 = vpop.f32.mrb[0].mxu0
    %v2742 = vpop.f32.mrb[0].mxu0
    %2743 = vdwg.mxu0
    %v2748 = vcombine.low %v2697, %v2699
    %v2749 = vcombine.low %v2738, %v2740
    %v2751 = vunpack.c.l.s4 1966171168
    %v2752 = vunpack.c.0.s8 %v2751
    %v2753 = vlaneseq
    %v2754 = vshrl.u32 %v2753, 7
    %v2755 = vsub.s32 %v2752, %v2754
    %v2756 = vrot.slane %v2748, %v2755
    %v2758 = vunpack.c.l.s4 1966171168
    %v2759 = vunpack.c.0.s8 %v2758
    %v2760 = vlaneseq
    %v2761 = vshrl.u32 %v2760, 7
    %v2762 = vsub.s32 %v2759, %v2761
    %v2763 = vrot.slane %v2749, %v2762
    %v2764 = vcombine.low %v2756, %v2763
    %v2766 = vunpack.c.l.s4 1966171168
    %v2767 = vunpack.c.0.s8 %v2766
    %v2768 = vlaneseq
    %v2769 = vshrl.u32 %v2768, 7
    %v2770 = vsub.s32 %v2767, %v2769
    %v2771 = vrot.slane %v2764, %v2770
    %v2773 = vadd.f32 %v2661, %v2771
    %v2774 = vxor.u32 %v2773, 2147483648
    %v2775 = vmul.f32 %v2774, 1.442695
    %v2776 = vpow.pop %v2775
    %v2777 = vadd.f32 %v2776, 1.0
    %v2778 = vrcp.pop %v2777
    %v2779 = vmul.f32 1.0, %v2778
    %v2781 = vrot.slane %v2773, 3
    %v2783 = vtanh.pop %v2781
    %v2785 = vrot.slane %v2779, 1
    %v2787 = vmul.f32 %v2785, %v2460
    %v2788 = vmul.f32 %v2779, %v2783
    %v2789 = vadd.f32 %v2787, %v2788
    %v2790 = vtanh.pop %v2789
    %v2791 = vrot.slane %v2779, 2
    %v2793 = vmul.f32 %v2791, %v2790
    %v2794 = vpack.c.bf16 %v2793, %v2793
    %2795 = vmatprep.subr.bf16.mxu0 %v275
    %2796 = vmatpush1.bf16.msra.mxu0 %v274
    %2797 = vmatprep.subr.bf16.mxu0 %v279
    %2798 = vmatpush1.bf16.msra.mxu0 %v278
    %2799 = vmatprep.subr.bf16.mxu0 %v283
    %2800 = vmatpush1.bf16.msra.mxu0 %v282
    %2801 = vmatprep.subr.bf16.mxu0 %v287
    %2802 = vmatpush1.bf16.msra.mxu0 %v286
    %2803 = vmatprep.subr.bf16.mxu0 %v291
    %2804 = vmatpush1.bf16.msra.mxu0 %v290
    %2805 = vmatprep.subr.bf16.mxu0 %v295
    %2806 = vmatpush1.bf16.msra.mxu0 %v294
    %2807 = vmatprep.subr.bf16.mxu0 %v299
    %2808 = vmatpush1.bf16.msra.mxu0 %v298
    %2809 = vmatprep.subr.bf16.mxu0 %v303
    %2810 = vmatpush1.bf16.msra.mxu0 %v302
    %2811 = vmatprep.subr.bf16.mxu0 0
    %2812 = vmatpush1.bf16.msra.mxu0 0
    %2813 = vmatprep.subr.bf16.mxu0 0
    %2814 = vmatpush1.bf16.msra.mxu0 0
    %2815 = vmatprep.subr.bf16.mxu0 0
    %2816 = vmatpush1.bf16.msra.mxu0 0
    %2817 = vmatprep.subr.bf16.mxu0 0
    %2818 = vmatpush1.bf16.msra.mxu0 0
    %2819 = vmatprep.subr.bf16.mxu0 0
    %2820 = vmatpush1.bf16.msra.mxu0 0
    %2821 = vmatprep.subr.bf16.mxu0 0
    %2822 = vmatpush1.bf16.msra.mxu0 0
    %2823 = vmatprep.subr.bf16.mxu0 0
    %2824 = vmatpush1.bf16.msra.mxu0 0
    %2825 = vmatprep.subr.bf16.mxu0 0
    %2826 = vmatpush1.bf16.msra.mxu0 0
    %2827 = vmatprep.mubr.bf16.mxu0 0
    %2828 = vmatmul.mubr.bf16.gmra.mrb[0].mxu0 %v2794
    %v2829 = vpop.f32.mrb[0].mxu0
    %v2830 = vadd.f32 0.0, %v2829
    %v2831 = vpop.f32.mrb[0].mxu0
    %v2832 = vadd.f32 0.0, %v2831
    %v2833 = vpop.f32.mrb[0].mxu0
    %v2834 = vpop.f32.mrb[0].mxu0
    %2835 = vdwg.mxu0
    %2836 = vmatprep.subr.bf16.mxu0 %v277
    %2837 = vmatpush1.bf16.msra.mxu0 %v276
    %2838 = vmatprep.subr.bf16.mxu0 %v281
    %2839 = vmatpush1.bf16.msra.mxu0 %v280
    %2840 = vmatprep.subr.bf16.mxu0 %v285
    %2841 = vmatpush1.bf16.msra.mxu0 %v284
    %2842 = vmatprep.subr.bf16.mxu0 %v289
    %2843 = vmatpush1.bf16.msra.mxu0 %v288
    %2844 = vmatprep.subr.bf16.mxu0 %v293
    %2845 = vmatpush1.bf16.msra.mxu0 %v292
    %2846 = vmatprep.subr.bf16.mxu0 %v297
    %2847 = vmatpush1.bf16.msra.mxu0 %v296
    %2848 = vmatprep.subr.bf16.mxu0 %v301
    %2849 = vmatpush1.bf16.msra.mxu0 %v300
    %2850 = vmatprep.subr.bf16.mxu0 %v305
    %2851 = vmatpush1.bf16.msra.mxu0 %v304
    %2852 = vmatprep.subr.bf16.mxu0 0
    %2853 = vmatpush1.bf16.msra.mxu0 0
    %2854 = vmatprep.subr.bf16.mxu0 0
    %2855 = vmatpush1.bf16.msra.mxu0 0
    %2856 = vmatprep.subr.bf16.mxu0 0
    %2857 = vmatpush1.bf16.msra.mxu0 0
    %2858 = vmatprep.subr.bf16.mxu0 0
    %2859 = vmatpush1.bf16.msra.mxu0 0
    %2860 = vmatprep.subr.bf16.mxu0 0
    %2861 = vmatpush1.bf16.msra.mxu0 0
    %2862 = vmatprep.subr.bf16.mxu0 0
    %2863 = vmatpush1.bf16.msra.mxu0 0
    %2864 = vmatprep.subr.bf16.mxu0 0
    %2865 = vmatpush1.bf16.msra.mxu0 0
    %2866 = vmatprep.subr.bf16.mxu0 0
    %2867 = vmatpush1.bf16.msra.mxu0 0
    %2868 = vmatprep.mubr.bf16.mxu0 0
    %2869 = vmatmul.mubr.bf16.gmra.mrb[0].mxu0 %v2794
    %v2870 = vpop.f32.mrb[0].mxu0
    %v2871 = vadd.f32 0.0, %v2870
    %v2872 = vpop.f32.mrb[0].mxu0
    %v2873 = vadd.f32 0.0, %v2872
    %v2874 = vpop.f32.mrb[0].mxu0
    %v2875 = vpop.f32.mrb[0].mxu0
    %2876 = vdwg.mxu0
    %v2877 = vadd.f32 %v2613, %v2830
    %v2878 = vadd.f32 %v2615, %v2832
    %v2879 = vadd.f32 %v2654, %v2871
    %v2880 = vadd.f32 %v2656, %v2873
    %v2881 = vxor.u32 %v2877, 2147483648
    %v2882 = vxor.u32 %v2878, 2147483648
    %v2883 = vxor.u32 %v2879, 2147483648
    %v2884 = vmul.f32 %v2881, 1.442695
    %v2885 = vpow.pop %v2884
    %v2886 = vmul.f32 %v2882, 1.442695
    %v2887 = vpow.pop %v2886
    %v2888 = vmul.f32 %v2883, 1.442695
    %v2889 = vpow.pop %v2888
    %v2890 = vadd.f32 %v2885, 1.0
    %v2891 = vadd.f32 %v2887, 1.0
    %v2892 = vadd.f32 %v2889, 1.0
    %v2893 = vrcp.pop %v2890
    %v2894 = vmul.f32 1.0, %v2893
    %v2895 = vrcp.pop %v2891
    %v2896 = vmul.f32 1.0, %v2895
    %v2897 = vrcp.pop %v2892
    %v2898 = vmul.f32 1.0, %v2897
    %v2899 = vtanh.pop %v2880
    %v2900 = vmul.f32 %v2896, %v2573
    %v2901 = vmul.f32 %v2894, %v2899
    %v2902 = vadd.f32 %v2900, %v2901
    %v2903 = vtanh.pop %v2902
    %v2904 = vmul.f32 %v2898, %v2903
    %2905 = vst [vmem:[#allocation3 + $0x6] sm:$0x1] %v2904
    %v2906 = vpack.c.bf16 %v2904, %v2904
    %2907 = vmatprep.subr.bf16.mxu0 %v371
    %2908 = vmatpush1.bf16.msra.mxu0 %v370
    %2909 = vmatprep.subr.bf16.mxu0 %v375
    %2910 = vmatpush1.bf16.msra.mxu0 %v374
    %2911 = vmatprep.subr.bf16.mxu0 %v379
    %2912 = vmatpush1.bf16.msra.mxu0 %v378
    %2913 = vmatprep.subr.bf16.mxu0 %v383
    %2914 = vmatpush1.bf16.msra.mxu0 %v382
    %2915 = vmatprep.subr.bf16.mxu0 %v387
    %2916 = vmatpush1.bf16.msra.mxu0 %v386
    %2917 = vmatprep.subr.bf16.mxu0 %v391
    %2918 = vmatpush1.bf16.msra.mxu0 %v390
    %2919 = vmatprep.subr.bf16.mxu0 %v395
    %2920 = vmatpush1.bf16.msra.mxu0 %v394
    %2921 = vmatprep.subr.bf16.mxu0 %v399
    %2922 = vmatpush1.bf16.msra.mxu0 %v398
    %2923 = vmatprep.subr.bf16.mxu0 0
    %2924 = vmatpush1.bf16.msra.mxu0 0
    %2925 = vmatprep.subr.bf16.mxu0 0
    %2926 = vmatpush1.bf16.msra.mxu0 0
    %2927 = vmatprep.subr.bf16.mxu0 0
    %2928 = vmatpush1.bf16.msra.mxu0 0
    %2929 = vmatprep.subr.bf16.mxu0 0
    %2930 = vmatpush1.bf16.msra.mxu0 0
    %2931 = vmatprep.subr.bf16.mxu0 0
    %2932 = vmatpush1.bf16.msra.mxu0 0
    %2933 = vmatprep.subr.bf16.mxu0 0
    %2934 = vmatpush1.bf16.msra.mxu0 0
    %2935 = vmatprep.subr.bf16.mxu0 0
    %2936 = vmatpush1.bf16.msra.mxu0 0
    %2937 = vmatprep.subr.bf16.mxu0 0
    %2938 = vmatpush1.bf16.msra.mxu0 0
    %2939 = vmatprep.mubr.bf16.mxu0 0
    %2940 = vmatmul.mubr.bf16.gmra.mrb[0].mxu0 %v2906
    %v2941 = vpop.f32.mrb[0].mxu0
    %v2942 = vadd.f32 %v588, %v2941
    %v2943 = vpop.f32.mrb[0].mxu0
    %v2944 = vadd.f32 %v592, %v2943
    %v2945 = vpop.f32.mrb[0].mxu0
    %v2946 = vpop.f32.mrb[0].mxu0
    %2947 = vdwg.mxu0
    %2948 = vmatprep.subr.bf16.mxu0 %v373
    %2949 = vmatpush1.bf16.msra.mxu0 %v372
    %2950 = vmatprep.subr.bf16.mxu0 %v377
    %2951 = vmatpush1.bf16.msra.mxu0 %v376
    %2952 = vmatprep.subr.bf16.mxu0 %v381
    %2953 = vmatpush1.bf16.msra.mxu0 %v380
    %2954 = vmatprep.subr.bf16.mxu0 %v385
    %2955 = vmatpush1.bf16.msra.mxu0 %v384
    %2956 = vmatprep.subr.bf16.mxu0 %v389
    %2957 = vmatpush1.bf16.msra.mxu0 %v388
    %2958 = vmatprep.subr.bf16.mxu0 %v393
    %2959 = vmatpush1.bf16.msra.mxu0 %v392
    %2960 = vmatprep.subr.bf16.mxu0 %v397
    %2961 = vmatpush1.bf16.msra.mxu0 %v396
    %2962 = vmatprep.subr.bf16.mxu0 %v401
    %2963 = vmatpush1.bf16.msra.mxu0 %v400
    %2964 = vmatprep.subr.bf16.mxu0 0
    %2965 = vmatpush1.bf16.msra.mxu0 0
    %2966 = vmatprep.subr.bf16.mxu0 0
    %2967 = vmatpush1.bf16.msra.mxu0 0
    %2968 = vmatprep.subr.bf16.mxu0 0
    %2969 = vmatpush1.bf16.msra.mxu0 0
    %2970 = vmatprep.subr.bf16.mxu0 0
    %2971 = vmatpush1.bf16.msra.mxu0 0
    %2972 = vmatprep.subr.bf16.mxu0 0
    %2973 = vmatpush1.bf16.msra.mxu0 0
    %2974 = vmatprep.subr.bf16.mxu0 0
    %2975 = vmatpush1.bf16.msra.mxu0 0
    %2976 = vmatprep.subr.bf16.mxu0 0
    %2977 = vmatpush1.bf16.msra.mxu0 0
    %2978 = vmatprep.subr.bf16.mxu0 0
    %2979 = vmatpush1.bf16.msra.mxu0 0
    %2980 = vmatprep.mubr.bf16.mxu0 0
    %2981 = vmatmul.mubr.bf16.gmra.mrb[0].mxu0 %v2906
    %v2982 = vpop.f32.mrb[0].mxu0
    %v2983 = vadd.f32 %v596, %v2982
    %v2984 = vpop.f32.mrb[0].mxu0
    %v2985 = vadd.f32 %v600, %v2984
    %v2986 = vpop.f32.mrb[0].mxu0
    %v2987 = vpop.f32.mrb[0].mxu0
    %2988 = vdwg.mxu0
    %s2989 = scalar_lea.vmem [#allocation2], 7
    %v2990 = vld [vmem:[%s2989] ss:$8 sm:$0xf]
    %2991 = vmatprep.subr.bf16.mxu0 %v179
    %2992 = vmatpush1.bf16.msra.mxu0 %v178
    %2993 = vmatprep.subr.bf16.mxu0 %v183
    %2994 = vmatpush1.bf16.msra.mxu0 %v182
    %2995 = vmatprep.subr.bf16.mxu0 %v187
    %2996 = vmatpush1.bf16.msra.mxu0 %v186
    %2997 = vmatprep.subr.bf16.mxu0 %v191
    %2998 = vmatpush1.bf16.msra.mxu0 %v190
    %2999 = vmatprep.subr.bf16.mxu0 %v195
    %3000 = vmatpush1.bf16.msra.mxu0 %v194
    %3001 = vmatprep.subr.bf16.mxu0 %v199
    %3002 = vmatpush1.bf16.msra.mxu0 %v198
    %3003 = vmatprep.subr.bf16.mxu0 %v203
    %3004 = vmatpush1.bf16.msra.mxu0 %v202
    %3005 = vmatprep.subr.bf16.mxu0 %v207
    %3006 = vmatpush1.bf16.msra.mxu0 %v206
    %3007 = vmatprep.subr.bf16.mxu0 0
    %3008 = vmatpush1.bf16.msra.mxu0 0
    %3009 = vmatprep.subr.bf16.mxu0 0
    %3010 = vmatpush1.bf16.msra.mxu0 0
    %3011 = vmatprep.subr.bf16.mxu0 0
    %3012 = vmatpush1.bf16.msra.mxu0 0
    %3013 = vmatprep.subr.bf16.mxu0 0
    %3014 = vmatpush1.bf16.msra.mxu0 0
    %3015 = vmatprep.subr.bf16.mxu0 0
    %3016 = vmatpush1.bf16.msra.mxu0 0
    %3017 = vmatprep.subr.bf16.mxu0 0
    %3018 = vmatpush1.bf16.msra.mxu0 0
    %3019 = vmatprep.subr.bf16.mxu0 0
    %3020 = vmatpush1.bf16.msra.mxu0 0
    %3021 = vmatprep.subr.bf16.mxu0 0
    %3022 = vmatpush1.bf16.msra.mxu0 0
    %3023 = vmatprep.mubr.bf16.mxu0 0
    %3024 = vmatmul.mubr.bf16.gmra.mrb[0].mxu0 %v2794
    %v3025 = vpop.f32.mrb[0].mxu0
    %v3026 = vadd.f32 0.0, %v3025
    %v3027 = vpop.f32.mrb[0].mxu0
    %v3028 = vadd.f32 0.0, %v3027
    %v3029 = vpop.f32.mrb[0].mxu0
    %v3030 = vpop.f32.mrb[0].mxu0
    %3031 = vdwg.mxu0
    %3032 = vmatprep.subr.bf16.mxu0 %v181
    %3033 = vmatpush1.bf16.msra.mxu0 %v180
    %3034 = vmatprep.subr.bf16.mxu0 %v185
    %3035 = vmatpush1.bf16.msra.mxu0 %v184
    %3036 = vmatprep.subr.bf16.mxu0 %v189
    %3037 = vmatpush1.bf16.msra.mxu0 %v188
    %3038 = vmatprep.subr.bf16.mxu0 %v193
    %3039 = vmatpush1.bf16.msra.mxu0 %v192
    %3040 = vmatprep.subr.bf16.mxu0 %v197
    %3041 = vmatpush1.bf16.msra.mxu0 %v196
    %3042 = vmatprep.subr.bf16.mxu0 %v201
    %3043 = vmatpush1.bf16.msra.mxu0 %v200
    %3044 = vmatprep.subr.bf16.mxu0 %v205
    %3045 = vmatpush1.bf16.msra.mxu0 %v204
    %3046 = vmatprep.subr.bf16.mxu0 %v209
    %3047 = vmatpush1.bf16.msra.mxu0 %v208
    %3048 = vmatprep.subr.bf16.mxu0 0
    %3049 = vmatpush1.bf16.msra.mxu0 0
    %3050 = vmatprep.subr.bf16.mxu0 0
    %3051 = vmatpush1.bf16.msra.mxu0 0
    %3052 = vmatprep.subr.bf16.mxu0 0
    %3053 = vmatpush1.bf16.msra.mxu0 0
    %3054 = vmatprep.subr.bf16.mxu0 0
    %3055 = vmatpush1.bf16.msra.mxu0 0
    %3056 = vmatprep.subr.bf16.mxu0 0
    %3057 = vmatpush1.bf16.msra.mxu0 0
    %3058 = vmatprep.subr.bf16.mxu0 0
    %3059 = vmatpush1.bf16.msra.mxu0 0
    %3060 = vmatprep.subr.bf16.mxu0 0
    %3061 = vmatpush1.bf16.msra.mxu0 0
    %3062 = vmatprep.subr.bf16.mxu0 0
    %3063 = vmatpush1.bf16.msra.mxu0 0
    %3064 = vmatprep.mubr.bf16.mxu0 0
    %3065 = vmatmul.mubr.bf16.gmra.mrb[0].mxu0 %v2794
    %v3066 = vpop.f32.mrb[0].mxu0
    %v3067 = vadd.f32 0.0, %v3066
    %v3068 = vpop.f32.mrb[0].mxu0
    %v3069 = vadd.f32 0.0, %v3068
    %v3070 = vpop.f32.mrb[0].mxu0
    %v3071 = vpop.f32.mrb[0].mxu0
    %3072 = vdwg.mxu0
    %v3077 = vcombine.low %v3026, %v3028
    %v3078 = vcombine.low %v3067, %v3069
    %v3080 = vunpack.c.l.s4 1966171168
    %v3081 = vunpack.c.0.s8 %v3080
    %v3082 = vlaneseq
    %v3083 = vshrl.u32 %v3082, 7
    %v3084 = vsub.s32 %v3081, %v3083
    %v3085 = vrot.slane %v3077, %v3084
    %v3087 = vunpack.c.l.s4 1966171168
    %v3088 = vunpack.c.0.s8 %v3087
    %v3089 = vlaneseq
    %v3090 = vshrl.u32 %v3089, 7
    %v3091 = vsub.s32 %v3088, %v3090
    %v3092 = vrot.slane %v3078, %v3091
    %v3093 = vcombine.low %v3085, %v3092
    %v3095 = vunpack.c.l.s4 1966171168
    %v3096 = vunpack.c.0.s8 %v3095
    %v3097 = vlaneseq
    %v3098 = vshrl.u32 %v3097, 7
    %v3099 = vsub.s32 %v3096, %v3098
    %v3100 = vrot.slane %v3093, %v3099
    %v3102 = vadd.f32 %v2990, %v3100
    %v3103 = vxor.u32 %v3102, 2147483648
    %v3104 = vmul.f32 %v3103, 1.442695
    %v3105 = vpow.pop %v3104
    %v3106 = vadd.f32 %v3105, 1.0
    %v3107 = vrcp.pop %v3106
    %v3108 = vmul.f32 1.0, %v3107
    %v3110 = vrot.slane %v3102, 3
    %v3112 = vtanh.pop %v3110
    %v3114 = vrot.slane %v3108, 1
    %v3116 = vmul.f32 %v3114, %v2789
    %v3117 = vmul.f32 %v3108, %v3112
    %v3118 = vadd.f32 %v3116, %v3117
    %v3119 = vtanh.pop %v3118
    %v3120 = vrot.slane %v3108, 2
    %v3122 = vmul.f32 %v3120, %v3119
    %v3123 = vpack.c.bf16 %v3122, %v3122
    %3124 = vmatprep.subr.bf16.mxu0 %v275
    %3125 = vmatpush1.bf16.msra.mxu0 %v274
    %3126 = vmatprep.subr.bf16.mxu0 %v279
    %3127 = vmatpush1.bf16.msra.mxu0 %v278
    %3128 = vmatprep.subr.bf16.mxu0 %v283
    %3129 = vmatpush1.bf16.msra.mxu0 %v282
    %3130 = vmatprep.subr.bf16.mxu0 %v287
    %3131 = vmatpush1.bf16.msra.mxu0 %v286
    %3132 = vmatprep.subr.bf16.mxu0 %v291
    %3133 = vmatpush1.bf16.msra.mxu0 %v290
    %3134 = vmatprep.subr.bf16.mxu0 %v295
    %3135 = vmatpush1.bf16.msra.mxu0 %v294
    %3136 = vmatprep.subr.bf16.mxu0 %v299
    %3137 = vmatpush1.bf16.msra.mxu0 %v298
    %3138 = vmatprep.subr.bf16.mxu0 %v303
    %3139 = vmatpush1.bf16.msra.mxu0 %v302
    %3140 = vmatprep.subr.bf16.mxu0 0
    %3141 = vmatpush1.bf16.msra.mxu0 0
    %3142 = vmatprep.subr.bf16.mxu0 0
    %3143 = vmatpush1.bf16.msra.mxu0 0
    %3144 = vmatprep.subr.bf16.mxu0 0
    %3145 = vmatpush1.bf16.msra.mxu0 0
    %3146 = vmatprep.subr.bf16.mxu0 0
    %3147 = vmatpush1.bf16.msra.mxu0 0
    %3148 = vmatprep.subr.bf16.mxu0 0
    %3149 = vmatpush1.bf16.msra.mxu0 0
    %3150 = vmatprep.subr.bf16.mxu0 0
    %3151 = vmatpush1.bf16.msra.mxu0 0
    %3152 = vmatprep.subr.bf16.mxu0 0
    %3153 = vmatpush1.bf16.msra.mxu0 0
    %3154 = vmatprep.subr.bf16.mxu0 0
    %3155 = vmatpush1.bf16.msra.mxu0 0
    %3156 = vmatprep.mubr.bf16.mxu0 0
    %3157 = vmatmul.mubr.bf16.gmra.mrb[0].mxu0 %v3123
    %v3158 = vpop.f32.mrb[0].mxu0
    %v3159 = vadd.f32 0.0, %v3158
    %v3160 = vpop.f32.mrb[0].mxu0
    %v3161 = vadd.f32 0.0, %v3160
    %v3162 = vpop.f32.mrb[0].mxu0
    %v3163 = vpop.f32.mrb[0].mxu0
    %3164 = vdwg.mxu0
    %3165 = vmatprep.subr.bf16.mxu0 %v277
    %3166 = vmatpush1.bf16.msra.mxu0 %v276
    %3167 = vmatprep.subr.bf16.mxu0 %v281
    %3168 = vmatpush1.bf16.msra.mxu0 %v280
    %3169 = vmatprep.subr.bf16.mxu0 %v285
    %3170 = vmatpush1.bf16.msra.mxu0 %v284
    %3171 = vmatprep.subr.bf16.mxu0 %v289
    %3172 = vmatpush1.bf16.msra.mxu0 %v288
    %3173 = vmatprep.subr.bf16.mxu0 %v293
    %3174 = vmatpush1.bf16.msra.mxu0 %v292
    %3175 = vmatprep.subr.bf16.mxu0 %v297
    %3176 = vmatpush1.bf16.msra.mxu0 %v296
    %3177 = vmatprep.subr.bf16.mxu0 %v301
    %3178 = vmatpush1.bf16.msra.mxu0 %v300
    %3179 = vmatprep.subr.bf16.mxu0 %v305
    %3180 = vmatpush1.bf16.msra.mxu0 %v304
    %3181 = vmatprep.subr.bf16.mxu0 0
    %3182 = vmatpush1.bf16.msra.mxu0 0
    %3183 = vmatprep.subr.bf16.mxu0 0
    %3184 = vmatpush1.bf16.msra.mxu0 0
    %3185 = vmatprep.subr.bf16.mxu0 0
    %3186 = vmatpush1.bf16.msra.mxu0 0
    %3187 = vmatprep.subr.bf16.mxu0 0
    %3188 = vmatpush1.bf16.msra.mxu0 0
    %3189 = vmatprep.subr.bf16.mxu0 0
    %3190 = vmatpush1.bf16.msra.mxu0 0
    %3191 = vmatprep.subr.bf16.mxu0 0
    %3192 = vmatpush1.bf16.msra.mxu0 0
    %3193 = vmatprep.subr.bf16.mxu0 0
    %3194 = vmatpush1.bf16.msra.mxu0 0
    %3195 = vmatprep.subr.bf16.mxu0 0
    %3196 = vmatpush1.bf16.msra.mxu0 0
    %3197 = vmatprep.mubr.bf16.mxu0 0
    %3198 = vmatmul.mubr.bf16.gmra.mrb[0].mxu0 %v3123
    %v3199 = vpop.f32.mrb[0].mxu0
    %v3200 = vadd.f32 0.0, %v3199
    %v3201 = vpop.f32.mrb[0].mxu0
    %v3202 = vadd.f32 0.0, %v3201
    %v3203 = vpop.f32.mrb[0].mxu0
    %v3204 = vpop.f32.mrb[0].mxu0
    %3205 = vdwg.mxu0
    %v3206 = vadd.f32 %v2942, %v3159
    %v3207 = vadd.f32 %v2944, %v3161
    %v3208 = vadd.f32 %v2983, %v3200
    %v3209 = vadd.f32 %v2985, %v3202
    %v3210 = vxor.u32 %v3206, 2147483648
    %v3211 = vxor.u32 %v3207, 2147483648
    %v3212 = vxor.u32 %v3208, 2147483648
    %v3213 = vmul.f32 %v3210, 1.442695
    %v3214 = vpow.pop %v3213
    %v3215 = vmul.f32 %v3211, 1.442695
    %v3216 = vpow.pop %v3215
    %v3217 = vmul.f32 %v3212, 1.442695
    %v3218 = vpow.pop %v3217
    %v3219 = vadd.f32 %v3214, 1.0
    %v3220 = vadd.f32 %v3216, 1.0
    %v3221 = vadd.f32 %v3218, 1.0
    %v3222 = vrcp.pop %v3219
    %v3223 = vmul.f32 1.0, %v3222
    %v3224 = vrcp.pop %v3220
    %v3225 = vmul.f32 1.0, %v3224
    %v3226 = vrcp.pop %v3221
    %v3227 = vmul.f32 1.0, %v3226
    %v3228 = vtanh.pop %v3209
    %v3229 = vmul.f32 %v3225, %v2902
    %v3230 = vmul.f32 %v3223, %v3228
    %v3231 = vadd.f32 %v3229, %v3230
    %v3232 = vtanh.pop %v3231
    %v3233 = vmul.f32 %v3227, %v3232
    %3234 = vst [vmem:[#allocation3 + $0x7] sm:$0x1] %v3233
    %v3235 = vld [vmem:[#allocation3] sm:$0xff]
    %v3236 = vld [vmem:[#allocation13] sm:$0xff]
    %v3237 = vld [vmem:[#allocation13 + $0x8] sm:$0xff]
    %v3238 = vld [vmem:[#allocation13 + $0x10] sm:$0xff]
    %v3239 = vld [vmem:[#allocation13 + $0x18] sm:$0xff]
    %v3240 = vld [vmem:[#allocation13 + $0x20] sm:$0xff]
    %v3241 = vld [vmem:[#allocation13 + $0x28] sm:$0xff]
    %v3242 = vld [vmem:[#allocation13 + $0x30] sm:$0xff]
    %v3243 = vld [vmem:[#allocation13 + $0x38] sm:$0xff]
    %v3244 = vld [vmem:[#allocation13 + $0x40] sm:$0xff]
    %v3245 = vld [vmem:[#allocation13 + $0x48] sm:$0xff]
    %v3246 = vld [vmem:[#allocation13 + $0x50] sm:$0xff]
    %v3247 = vld [vmem:[#allocation13 + $0x58] sm:$0xff]
    %v3248 = vld [vmem:[#allocation13 + $0x60] sm:$0xff]
    %v3249 = vld [vmem:[#allocation13 + $0x68] sm:$0xff]
    %v3250 = vld [vmem:[#allocation13 + $0x70] sm:$0xff]
    %v3251 = vld [vmem:[#allocation13 + $0x78] sm:$0xff]
    %v3252 = vld [vmem:[%s8] sm:$0x1]
    %v3254 = vlaneseq
    %v3255 = vshrl.u32 %v3254, 7
    %v3256 = vsub.s32 0, %v3255
    %v3257 = vrot.slane %v3252, %v3256
    %3259 = vmatprep.subr.mxu0 0.0
    %3260 = vmatpush1.msra.mxu0 %v3236
    %3261 = vmatprep.subr.mxu0 0.0
    %3262 = vmatpush1.msra.mxu0 %v3237
    %3263 = vmatprep.subr.mxu0 0.0
    %3264 = vmatpush1.msra.mxu0 %v3238
    %3265 = vmatprep.subr.mxu0 0.0
    %3266 = vmatpush1.msra.mxu0 %v3239
    %3267 = vmatprep.subr.mxu0 0.0
    %3268 = vmatpush1.msra.mxu0 %v3240
    %3269 = vmatprep.subr.mxu0 0.0
    %3270 = vmatpush1.msra.mxu0 %v3241
    %3271 = vmatprep.subr.mxu0 0.0
    %3272 = vmatpush1.msra.mxu0 %v3242
    %3273 = vmatprep.subr.mxu0 0.0
    %3274 = vmatpush1.msra.mxu0 %v3243
    %3275 = vmatprep.subr.mxu0 0.0
    %3276 = vmatpush1.msra.mxu0 %v3244
    %3277 = vmatprep.subr.mxu0 0.0
    %3278 = vmatpush1.msra.mxu0 %v3245
    %3279 = vmatprep.subr.mxu0 0.0
    %3280 = vmatpush1.msra.mxu0 %v3246
    %3281 = vmatprep.subr.mxu0 0.0
    %3282 = vmatpush1.msra.mxu0 %v3247
    %3283 = vmatprep.subr.mxu0 0.0
    %3284 = vmatpush1.msra.mxu0 %v3248
    %3285 = vmatprep.subr.mxu0 0.0
    %3286 = vmatpush1.msra.mxu0 %v3249
    %3287 = vmatprep.subr.mxu0 0.0
    %3288 = vmatpush1.msra.mxu0 %v3250
    %3289 = vmatprep.subr.mxu0 0.0
    %3290 = vmatpush1.msra.mxu0 %v3251
    %3291 = vmatprep.subr.mxu0 0.0
    %3292 = vmatpush1.msra.mxu0 0.0
    %3293 = vmatprep.subr.mxu0 0.0
    %3294 = vmatpush1.msra.mxu0 0.0
    %3295 = vmatprep.subr.mxu0 0.0
    %3296 = vmatpush1.msra.mxu0 0.0
    %3297 = vmatprep.subr.mxu0 0.0
    %3298 = vmatpush1.msra.mxu0 0.0
    %3299 = vmatprep.subr.mxu0 0.0
    %3300 = vmatpush1.msra.mxu0 0.0
    %3301 = vmatprep.subr.mxu0 0.0
    %3302 = vmatpush1.msra.mxu0 0.0
    %3303 = vmatprep.subr.mxu0 0.0
    %3304 = vmatpush1.msra.mxu0 0.0
    %3305 = vmatprep.subr.mxu0 0.0
    %3306 = vmatpush1.msra.mxu0 0.0
    %3307 = vmatprep.subr.mxu0 0.0
    %3308 = vmatpush1.msra.mxu0 0.0
    %3309 = vmatprep.subr.mxu0 0.0
    %3310 = vmatpush1.msra.mxu0 0.0
    %3311 = vmatprep.subr.mxu0 0.0
    %3312 = vmatpush1.msra.mxu0 0.0
    %3313 = vmatprep.subr.mxu0 0.0
    %3314 = vmatpush1.msra.mxu0 0.0
    %3315 = vmatprep.subr.mxu0 0.0
    %3316 = vmatpush1.msra.mxu0 0.0
    %3317 = vmatprep.subr.mxu0 0.0
    %3318 = vmatpush1.msra.mxu0 0.0
    %3319 = vmatprep.subr.mxu0 0.0
    %3320 = vmatpush1.msra.mxu0 0.0
    %3321 = vmatprep.subr.mxu0 0.0
    %3322 = vmatpush1.msra.mxu0 0.0
    %3323 = vmatprep.mubr.f32.mxu0 0.0
    %3324 = vmatmul.mubr.f32.gmra.mrb[0].mxu0 %v3235
    %v3325 = vpop.f32.mrb[0].mxu0
    %v3326 = vadd.f32 %v3257, %v3325
    %v3327 = vpop.f32.mrb[0].mxu0
    %3328 = vdwg.mxu0
    %3329 = vst [vmem:[#allocation15] sm:$0xff] %v3326
    // Predicated region
    $region62: #{tpu_custom_call.1} parent=1 // pred_check
      _
    $region63: #{tpu_custom_call.1} parent=1 // pred_check_branch
      %3331 = sbr.rel (0) target = $region65
    $region64: #{tpu_custom_call.1} parent=1 // pred_region
      %s3333 = ssub.s32 128, 128
      %3334 = vsyncadd [#allocation6], %s3333
      %s3336 = sshll.u32 [#allocation15], 4
      %s3337 = int_to_ptr.vmem [resolvable:$true] %s3336
      %3339 = dma.vmem_to_hbm [thread:$0]  %s3337, 128, %s9, [#allocation6]
    $region65: #{tpu_custom_call.1} parent=1 // pred_fallthru
      _
    // Predicated region
    $region66: #{tpu_custom_call.1} parent=1 // pred_check
      _
    $region67: #{tpu_custom_call.1} parent=1 // pred_check_branch
      %3341 = sbr.rel (0) target = $region69
    $region68: #{tpu_custom_call.1} parent=1 // pred_region
      %3342 = dma.done [#allocation6], 128
    $region69: #{tpu_custom_call.1} parent=1 // pred_fallthru
      _
    %3343 = vsyncpa [#allocation5], 1
    %3344 = vsyncpa [#allocation8], 1
    %3345 = vsyncpa [#allocation11], 1
    %3346 = vsyncpa [#allocation14], 1
    %3347 = vsyncpa [#allocation6], 1

</llo_original>
